<compile_context>
chip_gen: v7x
topology: tpu7x:2x2x1
jax: 0.10.0
libtpu: 0.0.40
codegen_flags: <defaults>
</compile_context>

<pallas_src>
import functools
import math

import jax
import jax.numpy as jnp
from jax.experimental import pallas as pl
from jax.experimental.pallas import tpu as pltpu

# ---- config (mirrors `args` of the TimeGAN discriminator) -------------------
HIDDEN_DIM = 32      # args.hidden_dim (input feature dim E == hidden_dim)
NUM_LAYERS = 2       # args.num_layers
BATCH = 4            # args.batch_size
MAX_SEQ_LEN = 8      # args.max_seq_len
LN_EPS = 1e-5        # torch.nn.LayerNorm default eps
# TODO(synk): encode_mode='gru' (pack_padded_sequence) and 'transformer'
# branches are not implemented; only the 'layer_norm_gru' branch is lowered.


def _ln_zero_mean(v):
    """LayerNorm(elementwise_affine=False) specialised to zero-mean input.
    init_params pre-centers every LN group's weights/bias, so mean(v) == 0
    analytically and LN(v) == v * rsqrt(mean(v*v) + eps)."""
    ms = jnp.mean(v * v, axis=-1, keepdims=True)
    return v * jax.lax.rsqrt(ms + LN_EPS)


def _layer_norm_ref(v):
    """Two-pass form, mirrors the PyTorch module for the reference check."""
    mu = jnp.mean(v, axis=-1, keepdims=True)
    var = jnp.mean(jnp.square(v - mu), axis=-1, keepdims=True)
    return (v - mu) * jax.lax.rsqrt(var + LN_EPS)


def _disc_kernel(x_ref, h0_ref, w_ref, b_ref, woutblk_ref, bout_ref, out_ref,
                 *, num_layers, hidden_dim, seq_len):
    """Single grid step: the whole stacked LayerNormGRU recurrence, unrolled."""
    Hd = hidden_dim
    B = h0_ref.shape[0]
    h0 = h0_ref[...]                                 # (B, H)
    h = [h0 for _ in range(num_layers)]              # state in vregs, not VMEM

    # hoist bias loads + sublane broadcasts out of the statically unrolled loop
    b_bc = [jnp.broadcast_to(b_ref[l], (B, 6 * Hd)) for l in range(num_layers)]

    h_top = []
    for t in range(seq_len):                         # static unroll over time
        inp = x_ref[t]                               # (B, E)
        for l in range(num_layers):                  # static unroll over layers
            h_prev = h[l]                            # (B, H)
            # ONE fused matmul per (t, l): (B, 2H) @ (2H, 6H) block-diagonal
            #   cols: [i2h_gates(2H) | h2h_gates(2H) | cand_x(H) | cand_h(H)]
            xh = jnp.concatenate([inp, h_prev], axis=1)          # (B, 2H)
            p = jnp.dot(xh, w_ref[l],
                        preferred_element_type=jnp.float32) + b_bc[l]  # (B, 6H)
            gates = jax.nn.sigmoid(
                _ln_zero_mean(p[:, 0:2 * Hd])
                + _ln_zero_mean(p[:, 2 * Hd:4 * Hd]))            # (B, 2H)
            z_t = gates[:, :Hd]
            r_t = gates[:, Hd:]
            h_hat = jnp.tanh(
                _ln_zero_mean(p[:, 4 * Hd:5 * Hd])
                + r_t * _ln_zero_mean(p[:, 5 * Hd:6 * Hd]))
            h_new = (1.0 - z_t) * h_prev + z_t * h_hat
            h[l] = h_new
            inp = h_new                              # feed next layer
        h_top.append(inp)                            # top-layer output at step t

    # epilogue: one MXU matmul against block-diag wout, one lane-dense store
    hcat = jnp.concatenate(h_top, axis=1)            # (B, T0*H)
    out_ref[...] = (jnp.dot(hcat, woutblk_ref[...],
                            preferred_element_type=jnp.float32)
                    + bout_ref[...])                 # (B, T0)


def _center_group(w, b):
    """Subtract the per-row column-group mean from W and the group mean from b
    so the LN input xW' + b' has exactly zero mean over the group."""
    return (w - jnp.mean(w, axis=-1, keepdims=True),
            b - jnp.mean(b, axis=-1, keepdims=True))


def init_params(key, batch, hidden_dim, num_layers):
    """Deterministic parameter init (LayerNormGRUCell uses uniform(-std, std))."""
    std = 1.0 / math.sqrt(hidden_dim)
    keys = jax.random.split(key, 12)
    u = lambda k, shape: jax.random.uniform(k, shape, jnp.float32, -std, std)
    L, H = num_layers, hidden_dim
    params = dict(
        # weights stored already transposed to (in, out) for direct x @ W
        wi=u(keys[0], (L, H, 2 * H)),  bi=u(keys[1], (L, 1, 2 * H)),
        wh=u(keys[2], (L, H, 2 * H)),  bh=u(keys[3], (L, 1, 2 * H)),
        whw=u(keys[4], (L, H, H)),     bhw=u(keys[5], (L, 1, H)),
        whu=u(keys[6], (L, H, H)),     bhu=u(keys[7], (L, 1, H)),
    )
    # dis_linear: xavier_uniform weight, zero bias
    xav_out = math.sqrt(6.0 / (H + 1))
    params["wout"] = jax.random.uniform(keys[8], (1, H), jnp.float32,
                                        -xav_out, xav_out)
    params["bout"] = jnp.zeros((1, 1), jnp.float32)
    # h_init: xavier_uniform(batch, hidden) (made deterministic here)
    xav_h = math.sqrt(6.0 / (batch + H))
    params["h0"] = jax.random.uniform(keys[9], (batch, H), jnp.float32,
                                      -xav_h, xav_h)

    # --- pre-centered, fused block-diagonal weights for the kernel ----------
    wi_c, bi_c = _center_group(params["wi"], params["bi"])
    wh_c, bh_c = _center_group(params["wh"], params["bh"])
    whw_c, bhw_c = _center_group(params["whw"], params["bhw"])
    whu_c, bhu_c = _center_group(params["whu"], params["bhu"])
    wbig = jnp.zeros((L, 2 * H, 6 * H), jnp.float32)
    wbig = wbig.at[:, :H, 0:2 * H].set(wi_c)        # x rows   -> i2h gates
    wbig = wbig.at[:, H:, 2 * H:4 * H].set(wh_c)    # h rows   -> h2h gates
    wbig = wbig.at[:, :H, 4 * H:5 * H].set(whw_c)   # x rows   -> candidate x
    wbig = wbig.at[:, H:, 5 * H:6 * H].set(whu_c)   # h rows   -> candidate h
    bbig = jnp.concatenate([bi_c, bh_c, bhw_c, bhu_c], axis=-1)   # (L, 1, 6H)
    params["wbig"] = wbig
    params["bbig"] = bbig
    return params


def discriminator_forward(H, T, params):
    """H: (B, S, E) latent, T: (B,) lengths.  Returns logits (B, T[0])."""
    B, S, E = H.shape
    Hd = HIDDEN_DIM
    # TODO(synk): variable per-sample lengths (pack_padded) not supported;
    # all batch elements are assumed to share T[0] steps.
    T0 = int(T[0])
    x_tm = jnp.transpose(H, (1, 0, 2))[:T0]          # (T0, B, E) time-major

    # block-diagonal replication of wout: (T0*H, T0) so the epilogue is one MXU op
    wout_blk = jnp.zeros((T0 * Hd, T0), jnp.float32)
    for t in range(T0):
        wout_blk = wout_blk.at[t * Hd:(t + 1) * Hd, t].set(params["wout"][0])

    kernel = functools.partial(_disc_kernel,
                               num_layers=NUM_LAYERS,
                               hidden_dim=Hd,
                               seq_len=T0)

    def full(shape):
        # whole array as a single resident VMEM block (constant index map)
        n = len(shape)
        return pl.BlockSpec(shape, lambda i, _n=n: (0,) * _n)

    operands = (x_tm, params["h0"], params["wbig"], params["bbig"],
                wout_blk, params["bout"])

    flops = (2 * T0 * NUM_LAYERS * B * (2 * Hd) * (6 * Hd)
             + 2 * B * (T0 * Hd) * T0)
    transcendentals = T0 * NUM_LAYERS * B * (3 * Hd + 4)
    bytes_accessed = (sum(int(op.size) * 4 for op in operands) + B * T0 * 4)

    out = pl.pallas_call(
        kernel,
        out_shape=jax.ShapeDtypeStruct((B, T0), jnp.float32),
        grid=(1,),                                   # single step: loop is in-kernel
        in_specs=[full(op.shape) for op in operands],
        out_specs=full((B, T0)),
        compiler_params=pltpu.CompilerParams(
            dimension_semantics=("arbitrary",)),
        cost_estimate=pl.CostEstimate(flops=flops,
                                      transcendentals=transcendentals,
                                      bytes_accessed=bytes_accessed),
    )(*operands)

    return out                                       # (B, T0), matches PyTorch


def reference_forward(H, T0, params):
    """Pure-JAX reference mirroring the PyTorch loop (for correctness check).
    Uses the ORIGINAL (un-centered, un-fused) weights and two-pass LayerNorm."""
    L, Hd = NUM_LAYERS, HIDDEN_DIM
    h_state = [params["h0"] for _ in range(L)]
    outs = []
    for t in range(T0):
        inp = H[:, t, :]
        for l in range(L):
            h_prev = h_state[l]
            i2h = _layer_norm_ref(inp @ params["wi"][l] + params["bi"][l][0])
            h2h = _layer_norm_ref(h_prev @ params["wh"][l] + params["bh"][l][0])
            gates = jax.nn.sigmoid(i2h + h2h)
            z_t, r_t = gates[:, :Hd], gates[:, Hd:]
            hh_x = _layer_norm_ref(inp @ params["whw"][l] + params["bhw"][l][0])
            hh_h = _layer_norm_ref(h_prev @ params["whu"][l] + params["bhu"][l][0])
            h_hat = jnp.tanh(hh_x + r_t * hh_h)
            h_new = (1.0 - z_t) * h_prev + z_t * h_hat
            h_state[l] = h_new
            inp = h_new
        outs.append(jnp.sum(inp * params["wout"], axis=-1)
                    + params["bout"][0, 0])
    return jnp.stack(outs, axis=1)                   # (B, T0)


if __name__ == "__main__":
    key = jax.random.PRNGKey(0)
    k_param, k_data = jax.random.split(key)

    params = init_params(k_param, BATCH, HIDDEN_DIM, NUM_LAYERS)
    H = jax.random.normal(k_data, (BATCH, MAX_SEQ_LEN, HIDDEN_DIM),
                          dtype=jnp.float32)
    T = jnp.full((BATCH,), MAX_SEQ_LEN, dtype=jnp.int32)

    logits = discriminator_forward(H, T, params)
    logits = jax.block_until_ready(logits)

    ref = reference_forward(H, int(T[0]), params)
    assert logits.shape == (BATCH, MAX_SEQ_LEN), logits.shape
    assert jnp.allclose(logits, ref, atol=1e-4, rtol=1e-4), (
        f"max abs diff {jnp.max(jnp.abs(logits - ref))}")

    print("KERNEL_OK")
</pallas_src>

<mosaic_0001>
module attributes {stable_mosaic.version = 11 : i64} {
  func.func @_disc_kernel(%arg0: i32, %arg1: memref<8x4x32xf32, #tpu.memory_space<vmem>>, %arg2: memref<4x32xf32, #tpu.memory_space<vmem>>, %arg3: memref<2x64x192xf32, #tpu.memory_space<vmem>>, %arg4: memref<2x1x192xf32, #tpu.memory_space<vmem>>, %arg5: memref<256x8xf32, #tpu.memory_space<vmem>>, %arg6: memref<1x1xf32, #tpu.memory_space<vmem>>, %arg7: memref<4x8xf32, #tpu.memory_space<vmem>>) attributes {dimension_semantics = [#tpu.dimension_semantics<arbitrary>], iteration_bounds = array<i64: 1>, scalar_prefetch = 0 : i64, scratch_operands = 0 : i64, tpu.core_type = #tpu.core_type<tc>, window_params = [{pipeline_mode = #tpu.pipeline_mode<synchronous>, transform_indices = @transform_0, window_bounds = array<i64: 8, 4, 32>}, {pipeline_mode = #tpu.pipeline_mode<synchronous>, transform_indices = @transform_1, window_bounds = array<i64: 4, 32>}, {pipeline_mode = #tpu.pipeline_mode<synchronous>, transform_indices = @transform_2, window_bounds = array<i64: 2, 64, 192>}, {pipeline_mode = #tpu.pipeline_mode<synchronous>, transform_indices = @transform_3, window_bounds = array<i64: 2, 1, 192>}, {pipeline_mode = #tpu.pipeline_mode<synchronous>, transform_indices = @transform_4, window_bounds = array<i64: 256, 8>}, {pipeline_mode = #tpu.pipeline_mode<synchronous>, transform_indices = @transform_5, window_bounds = array<i64: 1, 1>}, {pipeline_mode = #tpu.pipeline_mode<synchronous>, transform_indices = @transform_6, window_bounds = array<i64: 4, 8>}]} {
    %c0 = arith.constant 0 : index
    %c0_0 = arith.constant 0 : index
    %0 = vector.load %arg2[%c0, %c0_0] : memref<4x32xf32, #tpu.memory_space<vmem>>, vector<4x32xf32>
    %c0_1 = arith.constant 0 : index
    %c0_2 = arith.constant 0 : index
    %c0_3 = arith.constant 0 : index
    %1 = vector.load %arg4[%c0_1, %c0_2, %c0_3] : memref<2x1x192xf32, #tpu.memory_space<vmem>>, vector<1x1x192xf32>
    %2 = vector.shape_cast %1 : vector<1x1x192xf32> to vector<1x192xf32>
    %3 = vector.shape_cast %2 : vector<1x192xf32> to vector<1x192xf32>
    %4 = vector.broadcast %3 : vector<1x192xf32> to vector<4x192xf32>
    %c1 = arith.constant 1 : index
    %c0_4 = arith.constant 0 : index
    %c0_5 = arith.constant 0 : index
    %5 = vector.load %arg4[%c1, %c0_4, %c0_5] : memref<2x1x192xf32, #tpu.memory_space<vmem>>, vector<1x1x192xf32>
    %6 = vector.shape_cast %5 : vector<1x1x192xf32> to vector<1x192xf32>
    %7 = vector.shape_cast %6 : vector<1x192xf32> to vector<1x192xf32>
    %8 = vector.broadcast %7 : vector<1x192xf32> to vector<4x192xf32>
    %c0_6 = arith.constant 0 : index
    %c0_7 = arith.constant 0 : index
    %c0_8 = arith.constant 0 : index
    %9 = vector.load %arg1[%c0_6, %c0_7, %c0_8] : memref<8x4x32xf32, #tpu.memory_space<vmem>>, vector<1x4x32xf32>
    %10 = vector.shape_cast %9 : vector<1x4x32xf32> to vector<4x32xf32>
    %11 = tpu.concatenate %10, %0 in 1 : vector<4x32xf32>, vector<4x32xf32> -> vector<4x64xf32>
    %c0_9 = arith.constant 0 : index
    %c0_10 = arith.constant 0 : index
    %c0_11 = arith.constant 0 : index
    %12 = vector.load %arg3[%c0_9, %c0_10, %c0_11] : memref<2x64x192xf32, #tpu.memory_space<vmem>>, vector<1x64x192xf32>
    %13 = vector.shape_cast %12 : vector<1x64x192xf32> to vector<64x192xf32>
    %cst = arith.constant dense<0.000000e+00> : vector<4x192xf32>
    %14 = tpu.matmul %11, %13, %cst {dimension_numbers = #tpu.dot_dimension_numbers<[1], [0], [0], [1], [0, 0, 1, 1], [], []>} : vector<4x64xf32>, vector<64x192xf32>, vector<4x192xf32> -> vector<4x192xf32>
    %15 = arith.addf %14, %4 : vector<4x192xf32>
    %16 = vector.extract_strided_slice %15 {offsets = [0, 0], sizes = [4, 64], strides = [1, 1]} : vector<4x192xf32> to vector<4x64xf32>
    %17 = arith.mulf %16, %16 : vector<4x64xf32>
    %cst_12 = arith.constant dense<0.000000e+00> : vector<4xf32>
    %18 = vector.multi_reduction <add>, %17, %cst_12 [1] : vector<4x64xf32> to vector<4xf32>
    %19 = vector.shape_cast %18 : vector<4xf32> to vector<4x1xf32>
    %cst_13 = arith.constant 6.400000e+01 : f32
    %20 = vector.broadcast %cst_13 : f32 to vector<4x1xf32>
    %21 = arith.divf %19, %20 : vector<4x1xf32>
    %cst_14 = arith.constant 9.99999974E-6 : f32
    %22 = vector.broadcast %cst_14 : f32 to vector<4x1xf32>
    %23 = arith.addf %21, %22 : vector<4x1xf32>
    %24 = math.rsqrt %23 : vector<4x1xf32>
    %25 = vector.broadcast %24 : vector<4x1xf32> to vector<4x64xf32>
    %26 = arith.mulf %16, %25 : vector<4x64xf32>
    %27 = vector.extract_strided_slice %15 {offsets = [0, 64], sizes = [4, 64], strides = [1, 1]} : vector<4x192xf32> to vector<4x64xf32>
    %28 = arith.mulf %27, %27 : vector<4x64xf32>
    %cst_15 = arith.constant dense<0.000000e+00> : vector<4xf32>
    %29 = vector.multi_reduction <add>, %28, %cst_15 [1] : vector<4x64xf32> to vector<4xf32>
    %30 = vector.shape_cast %29 : vector<4xf32> to vector<4x1xf32>
    %cst_16 = arith.constant 6.400000e+01 : f32
    %31 = vector.broadcast %cst_16 : f32 to vector<4x1xf32>
    %32 = arith.divf %30, %31 : vector<4x1xf32>
    %cst_17 = arith.constant 9.99999974E-6 : f32
    %33 = vector.broadcast %cst_17 : f32 to vector<4x1xf32>
    %34 = arith.addf %32, %33 : vector<4x1xf32>
    %35 = math.rsqrt %34 : vector<4x1xf32>
    %36 = vector.broadcast %35 : vector<4x1xf32> to vector<4x64xf32>
    %37 = arith.mulf %27, %36 : vector<4x64xf32>
    %38 = arith.addf %26, %37 : vector<4x64xf32>
    %39 = arith.negf %38 : vector<4x64xf32>
    %40 = math.exp %39 : vector<4x64xf32>
    %cst_18 = arith.constant 1.000000e+00 : f32
    %41 = vector.broadcast %cst_18 : f32 to vector<4x64xf32>
    %42 = arith.addf %41, %40 : vector<4x64xf32>
    %43 = arith.divf %41, %42 : vector<4x64xf32>
    %44 = vector.extract_strided_slice %43 {offsets = [0, 0], sizes = [4, 32], strides = [1, 1]} : vector<4x64xf32> to vector<4x32xf32>
    %45 = vector.extract_strided_slice %43 {offsets = [0, 32], sizes = [4, 32], strides = [1, 1]} : vector<4x64xf32> to vector<4x32xf32>
    %46 = vector.extract_strided_slice %15 {offsets = [0, 128], sizes = [4, 32], strides = [1, 1]} : vector<4x192xf32> to vector<4x32xf32>
    %47 = arith.mulf %46, %46 : vector<4x32xf32>
    %cst_19 = arith.constant dense<0.000000e+00> : vector<4xf32>
    %48 = vector.multi_reduction <add>, %47, %cst_19 [1] : vector<4x32xf32> to vector<4xf32>
    %49 = vector.shape_cast %48 : vector<4xf32> to vector<4x1xf32>
    %cst_20 = arith.constant 3.200000e+01 : f32
    %50 = vector.broadcast %cst_20 : f32 to vector<4x1xf32>
    %51 = arith.divf %49, %50 : vector<4x1xf32>
    %cst_21 = arith.constant 9.99999974E-6 : f32
    %52 = vector.broadcast %cst_21 : f32 to vector<4x1xf32>
    %53 = arith.addf %51, %52 : vector<4x1xf32>
    %54 = math.rsqrt %53 : vector<4x1xf32>
    %55 = vector.broadcast %54 : vector<4x1xf32> to vector<4x32xf32>
    %56 = arith.mulf %46, %55 : vector<4x32xf32>
    %57 = vector.extract_strided_slice %15 {offsets = [0, 160], sizes = [4, 32], strides = [1, 1]} : vector<4x192xf32> to vector<4x32xf32>
    %58 = arith.mulf %57, %57 : vector<4x32xf32>
    %cst_22 = arith.constant dense<0.000000e+00> : vector<4xf32>
    %59 = vector.multi_reduction <add>, %58, %cst_22 [1] : vector<4x32xf32> to vector<4xf32>
    %60 = vector.shape_cast %59 : vector<4xf32> to vector<4x1xf32>
    %cst_23 = arith.constant 3.200000e+01 : f32
    %61 = vector.broadcast %cst_23 : f32 to vector<4x1xf32>
    %62 = arith.divf %60, %61 : vector<4x1xf32>
    %cst_24 = arith.constant 9.99999974E-6 : f32
    %63 = vector.broadcast %cst_24 : f32 to vector<4x1xf32>
    %64 = arith.addf %62, %63 : vector<4x1xf32>
    %65 = math.rsqrt %64 : vector<4x1xf32>
    %66 = vector.broadcast %65 : vector<4x1xf32> to vector<4x32xf32>
    %67 = arith.mulf %57, %66 : vector<4x32xf32>
    %68 = arith.mulf %45, %67 : vector<4x32xf32>
    %69 = arith.addf %56, %68 : vector<4x32xf32>
    %70 = math.tanh %69 : vector<4x32xf32>
    %cst_25 = arith.constant 1.000000e+00 : f32
    %71 = vector.broadcast %cst_25 : f32 to vector<4x32xf32>
    %72 = arith.subf %71, %44 : vector<4x32xf32>
    %73 = arith.mulf %72, %0 : vector<4x32xf32>
    %74 = arith.mulf %44, %70 : vector<4x32xf32>
    %75 = arith.addf %73, %74 : vector<4x32xf32>
    %76 = tpu.concatenate %75, %0 in 1 : vector<4x32xf32>, vector<4x32xf32> -> vector<4x64xf32>
    %c1_26 = arith.constant 1 : index
    %c0_27 = arith.constant 0 : index
    %c0_28 = arith.constant 0 : index
    %77 = vector.load %arg3[%c1_26, %c0_27, %c0_28] : memref<2x64x192xf32, #tpu.memory_space<vmem>>, vector<1x64x192xf32>
    %78 = vector.shape_cast %77 : vector<1x64x192xf32> to vector<64x192xf32>
    %cst_29 = arith.constant dense<0.000000e+00> : vector<4x192xf32>
    %79 = tpu.matmul %76, %78, %cst_29 {dimension_numbers = #tpu.dot_dimension_numbers<[1], [0], [0], [1], [0, 0, 1, 1], [], []>} : vector<4x64xf32>, vector<64x192xf32>, vector<4x192xf32> -> vector<4x192xf32>
    %80 = arith.addf %79, %8 : vector<4x192xf32>
    %81 = vector.extract_strided_slice %80 {offsets = [0, 0], sizes = [4, 64], strides = [1, 1]} : vector<4x192xf32> to vector<4x64xf32>
    %82 = arith.mulf %81, %81 : vector<4x64xf32>
    %cst_30 = arith.constant dense<0.000000e+00> : vector<4xf32>
    %83 = vector.multi_reduction <add>, %82, %cst_30 [1] : vector<4x64xf32> to vector<4xf32>
    %84 = vector.shape_cast %83 : vector<4xf32> to vector<4x1xf32>
    %cst_31 = arith.constant 6.400000e+01 : f32
    %85 = vector.broadcast %cst_31 : f32 to vector<4x1xf32>
    %86 = arith.divf %84, %85 : vector<4x1xf32>
    %cst_32 = arith.constant 9.99999974E-6 : f32
    %87 = vector.broadcast %cst_32 : f32 to vector<4x1xf32>
    %88 = arith.addf %86, %87 : vector<4x1xf32>
    %89 = math.rsqrt %88 : vector<4x1xf32>
    %90 = vector.broadcast %89 : vector<4x1xf32> to vector<4x64xf32>
    %91 = arith.mulf %81, %90 : vector<4x64xf32>
    %92 = vector.extract_strided_slice %80 {offsets = [0, 64], sizes = [4, 64], strides = [1, 1]} : vector<4x192xf32> to vector<4x64xf32>
    %93 = arith.mulf %92, %92 : vector<4x64xf32>
    %cst_33 = arith.constant dense<0.000000e+00> : vector<4xf32>
    %94 = vector.multi_reduction <add>, %93, %cst_33 [1] : vector<4x64xf32> to vector<4xf32>
    %95 = vector.shape_cast %94 : vector<4xf32> to vector<4x1xf32>
    %cst_34 = arith.constant 6.400000e+01 : f32
    %96 = vector.broadcast %cst_34 : f32 to vector<4x1xf32>
    %97 = arith.divf %95, %96 : vector<4x1xf32>
    %cst_35 = arith.constant 9.99999974E-6 : f32
    %98 = vector.broadcast %cst_35 : f32 to vector<4x1xf32>
    %99 = arith.addf %97, %98 : vector<4x1xf32>
    %100 = math.rsqrt %99 : vector<4x1xf32>
    %101 = vector.broadcast %100 : vector<4x1xf32> to vector<4x64xf32>
    %102 = arith.mulf %92, %101 : vector<4x64xf32>
    %103 = arith.addf %91, %102 : vector<4x64xf32>
    %104 = arith.negf %103 : vector<4x64xf32>
    %105 = math.exp %104 : vector<4x64xf32>
    %cst_36 = arith.constant 1.000000e+00 : f32
    %106 = vector.broadcast %cst_36 : f32 to vector<4x64xf32>
    %107 = arith.addf %106, %105 : vector<4x64xf32>
    %108 = arith.divf %106, %107 : vector<4x64xf32>
    %109 = vector.extract_strided_slice %108 {offsets = [0, 0], sizes = [4, 32], strides = [1, 1]} : vector<4x64xf32> to vector<4x32xf32>
    %110 = vector.extract_strided_slice %108 {offsets = [0, 32], sizes = [4, 32], strides = [1, 1]} : vector<4x64xf32> to vector<4x32xf32>
    %111 = vector.extract_strided_slice %80 {offsets = [0, 128], sizes = [4, 32], strides = [1, 1]} : vector<4x192xf32> to vector<4x32xf32>
    %112 = arith.mulf %111, %111 : vector<4x32xf32>
    %cst_37 = arith.constant dense<0.000000e+00> : vector<4xf32>
    %113 = vector.multi_reduction <add>, %112, %cst_37 [1] : vector<4x32xf32> to vector<4xf32>
    %114 = vector.shape_cast %113 : vector<4xf32> to vector<4x1xf32>
    %cst_38 = arith.constant 3.200000e+01 : f32
    %115 = vector.broadcast %cst_38 : f32 to vector<4x1xf32>
    %116 = arith.divf %114, %115 : vector<4x1xf32>
    %cst_39 = arith.constant 9.99999974E-6 : f32
    %117 = vector.broadcast %cst_39 : f32 to vector<4x1xf32>
    %118 = arith.addf %116, %117 : vector<4x1xf32>
    %119 = math.rsqrt %118 : vector<4x1xf32>
    %120 = vector.broadcast %119 : vector<4x1xf32> to vector<4x32xf32>
    %121 = arith.mulf %111, %120 : vector<4x32xf32>
    %122 = vector.extract_strided_slice %80 {offsets = [0, 160], sizes = [4, 32], strides = [1, 1]} : vector<4x192xf32> to vector<4x32xf32>
    %123 = arith.mulf %122, %122 : vector<4x32xf32>
    %cst_40 = arith.constant dense<0.000000e+00> : vector<4xf32>
    %124 = vector.multi_reduction <add>, %123, %cst_40 [1] : vector<4x32xf32> to vector<4xf32>
    %125 = vector.shape_cast %124 : vector<4xf32> to vector<4x1xf32>
    %cst_41 = arith.constant 3.200000e+01 : f32
    %126 = vector.broadcast %cst_41 : f32 to vector<4x1xf32>
    %127 = arith.divf %125, %126 : vector<4x1xf32>
    %cst_42 = arith.constant 9.99999974E-6 : f32
    %128 = vector.broadcast %cst_42 : f32 to vector<4x1xf32>
    %129 = arith.addf %127, %128 : vector<4x1xf32>
    %130 = math.rsqrt %129 : vector<4x1xf32>
    %131 = vector.broadcast %130 : vector<4x1xf32> to vector<4x32xf32>
    %132 = arith.mulf %122, %131 : vector<4x32xf32>
    %133 = arith.mulf %110, %132 : vector<4x32xf32>
    %134 = arith.addf %121, %133 : vector<4x32xf32>
    %135 = math.tanh %134 : vector<4x32xf32>
    %cst_43 = arith.constant 1.000000e+00 : f32
    %136 = vector.broadcast %cst_43 : f32 to vector<4x32xf32>
    %137 = arith.subf %136, %109 : vector<4x32xf32>
    %138 = arith.mulf %137, %0 : vector<4x32xf32>
    %139 = arith.mulf %109, %135 : vector<4x32xf32>
    %140 = arith.addf %138, %139 : vector<4x32xf32>
    %c1_44 = arith.constant 1 : index
    %c0_45 = arith.constant 0 : index
    %c0_46 = arith.constant 0 : index
    %141 = vector.load %arg1[%c1_44, %c0_45, %c0_46] : memref<8x4x32xf32, #tpu.memory_space<vmem>>, vector<1x4x32xf32>
    %142 = vector.shape_cast %141 : vector<1x4x32xf32> to vector<4x32xf32>
    %143 = tpu.concatenate %142, %75 in 1 : vector<4x32xf32>, vector<4x32xf32> -> vector<4x64xf32>
    %c0_47 = arith.constant 0 : index
    %c0_48 = arith.constant 0 : index
    %c0_49 = arith.constant 0 : index
    %144 = vector.load %arg3[%c0_47, %c0_48, %c0_49] : memref<2x64x192xf32, #tpu.memory_space<vmem>>, vector<1x64x192xf32>
    %145 = vector.shape_cast %144 : vector<1x64x192xf32> to vector<64x192xf32>
    %cst_50 = arith.constant dense<0.000000e+00> : vector<4x192xf32>
    %146 = tpu.matmul %143, %145, %cst_50 {dimension_numbers = #tpu.dot_dimension_numbers<[1], [0], [0], [1], [0, 0, 1, 1], [], []>} : vector<4x64xf32>, vector<64x192xf32>, vector<4x192xf32> -> vector<4x192xf32>
    %147 = arith.addf %146, %4 : vector<4x192xf32>
    %148 = vector.extract_strided_slice %147 {offsets = [0, 0], sizes = [4, 64], strides = [1, 1]} : vector<4x192xf32> to vector<4x64xf32>
    %149 = arith.mulf %148, %148 : vector<4x64xf32>
    %cst_51 = arith.constant dense<0.000000e+00> : vector<4xf32>
    %150 = vector.multi_reduction <add>, %149, %cst_51 [1] : vector<4x64xf32> to vector<4xf32>
    %151 = vector.shape_cast %150 : vector<4xf32> to vector<4x1xf32>
    %cst_52 = arith.constant 6.400000e+01 : f32
    %152 = vector.broadcast %cst_52 : f32 to vector<4x1xf32>
    %153 = arith.divf %151, %152 : vector<4x1xf32>
    %cst_53 = arith.constant 9.99999974E-6 : f32
    %154 = vector.broadcast %cst_53 : f32 to vector<4x1xf32>
    %155 = arith.addf %153, %154 : vector<4x1xf32>
    %156 = math.rsqrt %155 : vector<4x1xf32>
    %157 = vector.broadcast %156 : vector<4x1xf32> to vector<4x64xf32>
    %158 = arith.mulf %148, %157 : vector<4x64xf32>
    %159 = vector.extract_strided_slice %147 {offsets = [0, 64], sizes = [4, 64], strides = [1, 1]} : vector<4x192xf32> to vector<4x64xf32>
    %160 = arith.mulf %159, %159 : vector<4x64xf32>
    %cst_54 = arith.constant dense<0.000000e+00> : vector<4xf32>
    %161 = vector.multi_reduction <add>, %160, %cst_54 [1] : vector<4x64xf32> to vector<4xf32>
    %162 = vector.shape_cast %161 : vector<4xf32> to vector<4x1xf32>
    %cst_55 = arith.constant 6.400000e+01 : f32
    %163 = vector.broadcast %cst_55 : f32 to vector<4x1xf32>
    %164 = arith.divf %162, %163 : vector<4x1xf32>
    %cst_56 = arith.constant 9.99999974E-6 : f32
    %165 = vector.broadcast %cst_56 : f32 to vector<4x1xf32>
    %166 = arith.addf %164, %165 : vector<4x1xf32>
    %167 = math.rsqrt %166 : vector<4x1xf32>
    %168 = vector.broadcast %167 : vector<4x1xf32> to vector<4x64xf32>
    %169 = arith.mulf %159, %168 : vector<4x64xf32>
    %170 = arith.addf %158, %169 : vector<4x64xf32>
    %171 = arith.negf %170 : vector<4x64xf32>
    %172 = math.exp %171 : vector<4x64xf32>
    %cst_57 = arith.constant 1.000000e+00 : f32
    %173 = vector.broadcast %cst_57 : f32 to vector<4x64xf32>
    %174 = arith.addf %173, %172 : vector<4x64xf32>
    %175 = arith.divf %173, %174 : vector<4x64xf32>
    %176 = vector.extract_strided_slice %175 {offsets = [0, 0], sizes = [4, 32], strides = [1, 1]} : vector<4x64xf32> to vector<4x32xf32>
    %177 = vector.extract_strided_slice %175 {offsets = [0, 32], sizes = [4, 32], strides = [1, 1]} : vector<4x64xf32> to vector<4x32xf32>
    %178 = vector.extract_strided_slice %147 {offsets = [0, 128], sizes = [4, 32], strides = [1, 1]} : vector<4x192xf32> to vector<4x32xf32>
    %179 = arith.mulf %178, %178 : vector<4x32xf32>
    %cst_58 = arith.constant dense<0.000000e+00> : vector<4xf32>
    %180 = vector.multi_reduction <add>, %179, %cst_58 [1] : vector<4x32xf32> to vector<4xf32>
    %181 = vector.shape_cast %180 : vector<4xf32> to vector<4x1xf32>
    %cst_59 = arith.constant 3.200000e+01 : f32
    %182 = vector.broadcast %cst_59 : f32 to vector<4x1xf32>
    %183 = arith.divf %181, %182 : vector<4x1xf32>
    %cst_60 = arith.constant 9.99999974E-6 : f32
    %184 = vector.broadcast %cst_60 : f32 to vector<4x1xf32>
    %185 = arith.addf %183, %184 : vector<4x1xf32>
    %186 = math.rsqrt %185 : vector<4x1xf32>
    %187 = vector.broadcast %186 : vector<4x1xf32> to vector<4x32xf32>
    %188 = arith.mulf %178, %187 : vector<4x32xf32>
    %189 = vector.extract_strided_slice %147 {offsets = [0, 160], sizes = [4, 32], strides = [1, 1]} : vector<4x192xf32> to vector<4x32xf32>
    %190 = arith.mulf %189, %189 : vector<4x32xf32>
    %cst_61 = arith.constant dense<0.000000e+00> : vector<4xf32>
    %191 = vector.multi_reduction <add>, %190, %cst_61 [1] : vector<4x32xf32> to vector<4xf32>
    %192 = vector.shape_cast %191 : vector<4xf32> to vector<4x1xf32>
    %cst_62 = arith.constant 3.200000e+01 : f32
    %193 = vector.broadcast %cst_62 : f32 to vector<4x1xf32>
    %194 = arith.divf %192, %193 : vector<4x1xf32>
    %cst_63 = arith.constant 9.99999974E-6 : f32
    %195 = vector.broadcast %cst_63 : f32 to vector<4x1xf32>
    %196 = arith.addf %194, %195 : vector<4x1xf32>
    %197 = math.rsqrt %196 : vector<4x1xf32>
    %198 = vector.broadcast %197 : vector<4x1xf32> to vector<4x32xf32>
    %199 = arith.mulf %189, %198 : vector<4x32xf32>
    %200 = arith.mulf %177, %199 : vector<4x32xf32>
    %201 = arith.addf %188, %200 : vector<4x32xf32>
    %202 = math.tanh %201 : vector<4x32xf32>
    %cst_64 = arith.constant 1.000000e+00 : f32
    %203 = vector.broadcast %cst_64 : f32 to vector<4x32xf32>
    %204 = arith.subf %203, %176 : vector<4x32xf32>
    %205 = arith.mulf %204, %75 : vector<4x32xf32>
    %206 = arith.mulf %176, %202 : vector<4x32xf32>
    %207 = arith.addf %205, %206 : vector<4x32xf32>
    %208 = tpu.concatenate %207, %140 in 1 : vector<4x32xf32>, vector<4x32xf32> -> vector<4x64xf32>
    %c1_65 = arith.constant 1 : index
    %c0_66 = arith.constant 0 : index
    %c0_67 = arith.constant 0 : index
    %209 = vector.load %arg3[%c1_65, %c0_66, %c0_67] : memref<2x64x192xf32, #tpu.memory_space<vmem>>, vector<1x64x192xf32>
    %210 = vector.shape_cast %209 : vector<1x64x192xf32> to vector<64x192xf32>
    %cst_68 = arith.constant dense<0.000000e+00> : vector<4x192xf32>
    %211 = tpu.matmul %208, %210, %cst_68 {dimension_numbers = #tpu.dot_dimension_numbers<[1], [0], [0], [1], [0, 0, 1, 1], [], []>} : vector<4x64xf32>, vector<64x192xf32>, vector<4x192xf32> -> vector<4x192xf32>
    %212 = arith.addf %211, %8 : vector<4x192xf32>
    %213 = vector.extract_strided_slice %212 {offsets = [0, 0], sizes = [4, 64], strides = [1, 1]} : vector<4x192xf32> to vector<4x64xf32>
    %214 = arith.mulf %213, %213 : vector<4x64xf32>
    %cst_69 = arith.constant dense<0.000000e+00> : vector<4xf32>
    %215 = vector.multi_reduction <add>, %214, %cst_69 [1] : vector<4x64xf32> to vector<4xf32>
    %216 = vector.shape_cast %215 : vector<4xf32> to vector<4x1xf32>
    %cst_70 = arith.constant 6.400000e+01 : f32
    %217 = vector.broadcast %cst_70 : f32 to vector<4x1xf32>
    %218 = arith.divf %216, %217 : vector<4x1xf32>
    %cst_71 = arith.constant 9.99999974E-6 : f32
    %219 = vector.broadcast %cst_71 : f32 to vector<4x1xf32>
    %220 = arith.addf %218, %219 : vector<4x1xf32>
    %221 = math.rsqrt %220 : vector<4x1xf32>
    %222 = vector.broadcast %221 : vector<4x1xf32> to vector<4x64xf32>
    %223 = arith.mulf %213, %222 : vector<4x64xf32>
    %224 = vector.extract_strided_slice %212 {offsets = [0, 64], sizes = [4, 64], strides = [1, 1]} : vector<4x192xf32> to vector<4x64xf32>
    %225 = arith.mulf %224, %224 : vector<4x64xf32>
    %cst_72 = arith.constant dense<0.000000e+00> : vector<4xf32>
    %226 = vector.multi_reduction <add>, %225, %cst_72 [1] : vector<4x64xf32> to vector<4xf32>
    %227 = vector.shape_cast %226 : vector<4xf32> to vector<4x1xf32>
    %cst_73 = arith.constant 6.400000e+01 : f32
    %228 = vector.broadcast %cst_73 : f32 to vector<4x1xf32>
    %229 = arith.divf %227, %228 : vector<4x1xf32>
    %cst_74 = arith.constant 9.99999974E-6 : f32
    %230 = vector.broadcast %cst_74 : f32 to vector<4x1xf32>
    %231 = arith.addf %229, %230 : vector<4x1xf32>
    %232 = math.rsqrt %231 : vector<4x1xf32>
    %233 = vector.broadcast %232 : vector<4x1xf32> to vector<4x64xf32>
    %234 = arith.mulf %224, %233 : vector<4x64xf32>
    %235 = arith.addf %223, %234 : vector<4x64xf32>
    %236 = arith.negf %235 : vector<4x64xf32>
    %237 = math.exp %236 : vector<4x64xf32>
    %cst_75 = arith.constant 1.000000e+00 : f32
    %238 = vector.broadcast %cst_75 : f32 to vector<4x64xf32>
    %239 = arith.addf %238, %237 : vector<4x64xf32>
    %240 = arith.divf %238, %239 : vector<4x64xf32>
    %241 = vector.extract_strided_slice %240 {offsets = [0, 0], sizes = [4, 32], strides = [1, 1]} : vector<4x64xf32> to vector<4x32xf32>
    %242 = vector.extract_strided_slice %240 {offsets = [0, 32], sizes = [4, 32], strides = [1, 1]} : vector<4x64xf32> to vector<4x32xf32>
    %243 = vector.extract_strided_slice %212 {offsets = [0, 128], sizes = [4, 32], strides = [1, 1]} : vector<4x192xf32> to vector<4x32xf32>
    %244 = arith.mulf %243, %243 : vector<4x32xf32>
    %cst_76 = arith.constant dense<0.000000e+00> : vector<4xf32>
    %245 = vector.multi_reduction <add>, %244, %cst_76 [1] : vector<4x32xf32> to vector<4xf32>
    %246 = vector.shape_cast %245 : vector<4xf32> to vector<4x1xf32>
    %cst_77 = arith.constant 3.200000e+01 : f32
    %247 = vector.broadcast %cst_77 : f32 to vector<4x1xf32>
    %248 = arith.divf %246, %247 : vector<4x1xf32>
    %cst_78 = arith.constant 9.99999974E-6 : f32
    %249 = vector.broadcast %cst_78 : f32 to vector<4x1xf32>
    %250 = arith.addf %248, %249 : vector<4x1xf32>
    %251 = math.rsqrt %250 : vector<4x1xf32>
    %252 = vector.broadcast %251 : vector<4x1xf32> to vector<4x32xf32>
    %253 = arith.mulf %243, %252 : vector<4x32xf32>
    %254 = vector.extract_strided_slice %212 {offsets = [0, 160], sizes = [4, 32], strides = [1, 1]} : vector<4x192xf32> to vector<4x32xf32>
    %255 = arith.mulf %254, %254 : vector<4x32xf32>
    %cst_79 = arith.constant dense<0.000000e+00> : vector<4xf32>
    %256 = vector.multi_reduction <add>, %255, %cst_79 [1] : vector<4x32xf32> to vector<4xf32>
    %257 = vector.shape_cast %256 : vector<4xf32> to vector<4x1xf32>
    %cst_80 = arith.constant 3.200000e+01 : f32
    %258 = vector.broadcast %cst_80 : f32 to vector<4x1xf32>
    %259 = arith.divf %257, %258 : vector<4x1xf32>
    %cst_81 = arith.constant 9.99999974E-6 : f32
    %260 = vector.broadcast %cst_81 : f32 to vector<4x1xf32>
    %261 = arith.addf %259, %260 : vector<4x1xf32>
    %262 = math.rsqrt %261 : vector<4x1xf32>
    %263 = vector.broadcast %262 : vector<4x1xf32> to vector<4x32xf32>
    %264 = arith.mulf %254, %263 : vector<4x32xf32>
    %265 = arith.mulf %242, %264 : vector<4x32xf32>
    %266 = arith.addf %253, %265 : vector<4x32xf32>
    %267 = math.tanh %266 : vector<4x32xf32>
    %cst_82 = arith.constant 1.000000e+00 : f32
    %268 = vector.broadcast %cst_82 : f32 to vector<4x32xf32>
    %269 = arith.subf %268, %241 : vector<4x32xf32>
    %270 = arith.mulf %269, %140 : vector<4x32xf32>
    %271 = arith.mulf %241, %267 : vector<4x32xf32>
    %272 = arith.addf %270, %271 : vector<4x32xf32>
    %c2 = arith.constant 2 : index
    %c0_83 = arith.constant 0 : index
    %c0_84 = arith.constant 0 : index
    %273 = vector.load %arg1[%c2, %c0_83, %c0_84] : memref<8x4x32xf32, #tpu.memory_space<vmem>>, vector<1x4x32xf32>
    %274 = vector.shape_cast %273 : vector<1x4x32xf32> to vector<4x32xf32>
    %275 = tpu.concatenate %274, %207 in 1 : vector<4x32xf32>, vector<4x32xf32> -> vector<4x64xf32>
    %c0_85 = arith.constant 0 : index
    %c0_86 = arith.constant 0 : index
    %c0_87 = arith.constant 0 : index
    %276 = vector.load %arg3[%c0_85, %c0_86, %c0_87] : memref<2x64x192xf32, #tpu.memory_space<vmem>>, vector<1x64x192xf32>
    %277 = vector.shape_cast %276 : vector<1x64x192xf32> to vector<64x192xf32>
    %cst_88 = arith.constant dense<0.000000e+00> : vector<4x192xf32>
    %278 = tpu.matmul %275, %277, %cst_88 {dimension_numbers = #tpu.dot_dimension_numbers<[1], [0], [0], [1], [0, 0, 1, 1], [], []>} : vector<4x64xf32>, vector<64x192xf32>, vector<4x192xf32> -> vector<4x192xf32>
    %279 = arith.addf %278, %4 : vector<4x192xf32>
    %280 = vector.extract_strided_slice %279 {offsets = [0, 0], sizes = [4, 64], strides = [1, 1]} : vector<4x192xf32> to vector<4x64xf32>
    %281 = arith.mulf %280, %280 : vector<4x64xf32>
    %cst_89 = arith.constant dense<0.000000e+00> : vector<4xf32>
    %282 = vector.multi_reduction <add>, %281, %cst_89 [1] : vector<4x64xf32> to vector<4xf32>
    %283 = vector.shape_cast %282 : vector<4xf32> to vector<4x1xf32>
    %cst_90 = arith.constant 6.400000e+01 : f32
    %284 = vector.broadcast %cst_90 : f32 to vector<4x1xf32>
    %285 = arith.divf %283, %284 : vector<4x1xf32>
    %cst_91 = arith.constant 9.99999974E-6 : f32
    %286 = vector.broadcast %cst_91 : f32 to vector<4x1xf32>
    %287 = arith.addf %285, %286 : vector<4x1xf32>
    %288 = math.rsqrt %287 : vector<4x1xf32>
    %289 = vector.broadcast %288 : vector<4x1xf32> to vector<4x64xf32>
    %290 = arith.mulf %280, %289 : vector<4x64xf32>
    %291 = vector.extract_strided_slice %279 {offsets = [0, 64], sizes = [4, 64], strides = [1, 1]} : vector<4x192xf32> to vector<4x64xf32>
    %292 = arith.mulf %291, %291 : vector<4x64xf32>
    %cst_92 = arith.constant dense<0.000000e+00> : vector<4xf32>
    %293 = vector.multi_reduction <add>, %292, %cst_92 [1] : vector<4x64xf32> to vector<4xf32>
    %294 = vector.shape_cast %293 : vector<4xf32> to vector<4x1xf32>
    %cst_93 = arith.constant 6.400000e+01 : f32
    %295 = vector.broadcast %cst_93 : f32 to vector<4x1xf32>
    %296 = arith.divf %294, %295 : vector<4x1xf32>
    %cst_94 = arith.constant 9.99999974E-6 : f32
    %297 = vector.broadcast %cst_94 : f32 to vector<4x1xf32>
    %298 = arith.addf %296, %297 : vector<4x1xf32>
    %299 = math.rsqrt %298 : vector<4x1xf32>
    %300 = vector.broadcast %299 : vector<4x1xf32> to vector<4x64xf32>
    %301 = arith.mulf %291, %300 : vector<4x64xf32>
    %302 = arith.addf %290, %301 : vector<4x64xf32>
    %303 = arith.negf %302 : vector<4x64xf32>
    %304 = math.exp %303 : vector<4x64xf32>
    %cst_95 = arith.constant 1.000000e+00 : f32
    %305 = vector.broadcast %cst_95 : f32 to vector<4x64xf32>
    %306 = arith.addf %305, %304 : vector<4x64xf32>
    %307 = arith.divf %305, %306 : vector<4x64xf32>
    %308 = vector.extract_strided_slice %307 {offsets = [0, 0], sizes = [4, 32], strides = [1, 1]} : vector<4x64xf32> to vector<4x32xf32>
    %309 = vector.extract_strided_slice %307 {offsets = [0, 32], sizes = [4, 32], strides = [1, 1]} : vector<4x64xf32> to vector<4x32xf32>
    %310 = vector.extract_strided_slice %279 {offsets = [0, 128], sizes = [4, 32], strides = [1, 1]} : vector<4x192xf32> to vector<4x32xf32>
    %311 = arith.mulf %310, %310 : vector<4x32xf32>
    %cst_96 = arith.constant dense<0.000000e+00> : vector<4xf32>
    %312 = vector.multi_reduction <add>, %311, %cst_96 [1] : vector<4x32xf32> to vector<4xf32>
    %313 = vector.shape_cast %312 : vector<4xf32> to vector<4x1xf32>
    %cst_97 = arith.constant 3.200000e+01 : f32
    %314 = vector.broadcast %cst_97 : f32 to vector<4x1xf32>
    %315 = arith.divf %313, %314 : vector<4x1xf32>
    %cst_98 = arith.constant 9.99999974E-6 : f32
    %316 = vector.broadcast %cst_98 : f32 to vector<4x1xf32>
    %317 = arith.addf %315, %316 : vector<4x1xf32>
    %318 = math.rsqrt %317 : vector<4x1xf32>
    %319 = vector.broadcast %318 : vector<4x1xf32> to vector<4x32xf32>
    %320 = arith.mulf %310, %319 : vector<4x32xf32>
    %321 = vector.extract_strided_slice %279 {offsets = [0, 160], sizes = [4, 32], strides = [1, 1]} : vector<4x192xf32> to vector<4x32xf32>
    %322 = arith.mulf %321, %321 : vector<4x32xf32>
    %cst_99 = arith.constant dense<0.000000e+00> : vector<4xf32>
    %323 = vector.multi_reduction <add>, %322, %cst_99 [1] : vector<4x32xf32> to vector<4xf32>
    %324 = vector.shape_cast %323 : vector<4xf32> to vector<4x1xf32>
    %cst_100 = arith.constant 3.200000e+01 : f32
    %325 = vector.broadcast %cst_100 : f32 to vector<4x1xf32>
    %326 = arith.divf %324, %325 : vector<4x1xf32>
    %cst_101 = arith.constant 9.99999974E-6 : f32
    %327 = vector.broadcast %cst_101 : f32 to vector<4x1xf32>
    %328 = arith.addf %326, %327 : vector<4x1xf32>
    %329 = math.rsqrt %328 : vector<4x1xf32>
    %330 = vector.broadcast %329 : vector<4x1xf32> to vector<4x32xf32>
    %331 = arith.mulf %321, %330 : vector<4x32xf32>
    %332 = arith.mulf %309, %331 : vector<4x32xf32>
    %333 = arith.addf %320, %332 : vector<4x32xf32>
    %334 = math.tanh %333 : vector<4x32xf32>
    %cst_102 = arith.constant 1.000000e+00 : f32
    %335 = vector.broadcast %cst_102 : f32 to vector<4x32xf32>
    %336 = arith.subf %335, %308 : vector<4x32xf32>
    %337 = arith.mulf %336, %207 : vector<4x32xf32>
    %338 = arith.mulf %308, %334 : vector<4x32xf32>
    %339 = arith.addf %337, %338 : vector<4x32xf32>
    %340 = tpu.concatenate %339, %272 in 1 : vector<4x32xf32>, vector<4x32xf32> -> vector<4x64xf32>
    %c1_103 = arith.constant 1 : index
    %c0_104 = arith.constant 0 : index
    %c0_105 = arith.constant 0 : index
    %341 = vector.load %arg3[%c1_103, %c0_104, %c0_105] : memref<2x64x192xf32, #tpu.memory_space<vmem>>, vector<1x64x192xf32>
    %342 = vector.shape_cast %341 : vector<1x64x192xf32> to vector<64x192xf32>
    %cst_106 = arith.constant dense<0.000000e+00> : vector<4x192xf32>
    %343 = tpu.matmul %340, %342, %cst_106 {dimension_numbers = #tpu.dot_dimension_numbers<[1], [0], [0], [1], [0, 0, 1, 1], [], []>} : vector<4x64xf32>, vector<64x192xf32>, vector<4x192xf32> -> vector<4x192xf32>
    %344 = arith.addf %343, %8 : vector<4x192xf32>
    %345 = vector.extract_strided_slice %344 {offsets = [0, 0], sizes = [4, 64], strides = [1, 1]} : vector<4x192xf32> to vector<4x64xf32>
    %346 = arith.mulf %345, %345 : vector<4x64xf32>
    %cst_107 = arith.constant dense<0.000000e+00> : vector<4xf32>
    %347 = vector.multi_reduction <add>, %346, %cst_107 [1] : vector<4x64xf32> to vector<4xf32>
    %348 = vector.shape_cast %347 : vector<4xf32> to vector<4x1xf32>
    %cst_108 = arith.constant 6.400000e+01 : f32
    %349 = vector.broadcast %cst_108 : f32 to vector<4x1xf32>
    %350 = arith.divf %348, %349 : vector<4x1xf32>
    %cst_109 = arith.constant 9.99999974E-6 : f32
    %351 = vector.broadcast %cst_109 : f32 to vector<4x1xf32>
    %352 = arith.addf %350, %351 : vector<4x1xf32>
    %353 = math.rsqrt %352 : vector<4x1xf32>
    %354 = vector.broadcast %353 : vector<4x1xf32> to vector<4x64xf32>
    %355 = arith.mulf %345, %354 : vector<4x64xf32>
    %356 = vector.extract_strided_slice %344 {offsets = [0, 64], sizes = [4, 64], strides = [1, 1]} : vector<4x192xf32> to vector<4x64xf32>
    %357 = arith.mulf %356, %356 : vector<4x64xf32>
    %cst_110 = arith.constant dense<0.000000e+00> : vector<4xf32>
    %358 = vector.multi_reduction <add>, %357, %cst_110 [1] : vector<4x64xf32> to vector<4xf32>
    %359 = vector.shape_cast %358 : vector<4xf32> to vector<4x1xf32>
    %cst_111 = arith.constant 6.400000e+01 : f32
    %360 = vector.broadcast %cst_111 : f32 to vector<4x1xf32>
    %361 = arith.divf %359, %360 : vector<4x1xf32>
    %cst_112 = arith.constant 9.99999974E-6 : f32
    %362 = vector.broadcast %cst_112 : f32 to vector<4x1xf32>
    %363 = arith.addf %361, %362 : vector<4x1xf32>
    %364 = math.rsqrt %363 : vector<4x1xf32>
    %365 = vector.broadcast %364 : vector<4x1xf32> to vector<4x64xf32>
    %366 = arith.mulf %356, %365 : vector<4x64xf32>
    %367 = arith.addf %355, %366 : vector<4x64xf32>
    %368 = arith.negf %367 : vector<4x64xf32>
    %369 = math.exp %368 : vector<4x64xf32>
    %cst_113 = arith.constant 1.000000e+00 : f32
    %370 = vector.broadcast %cst_113 : f32 to vector<4x64xf32>
    %371 = arith.addf %370, %369 : vector<4x64xf32>
    %372 = arith.divf %370, %371 : vector<4x64xf32>
    %373 = vector.extract_strided_slice %372 {offsets = [0, 0], sizes = [4, 32], strides = [1, 1]} : vector<4x64xf32> to vector<4x32xf32>
    %374 = vector.extract_strided_slice %372 {offsets = [0, 32], sizes = [4, 32], strides = [1, 1]} : vector<4x64xf32> to vector<4x32xf32>
    %375 = vector.extract_strided_slice %344 {offsets = [0, 128], sizes = [4, 32], strides = [1, 1]} : vector<4x192xf32> to vector<4x32xf32>
    %376 = arith.mulf %375, %375 : vector<4x32xf32>
    %cst_114 = arith.constant dense<0.000000e+00> : vector<4xf32>
    %377 = vector.multi_reduction <add>, %376, %cst_114 [1] : vector<4x32xf32> to vector<4xf32>
    %378 = vector.shape_cast %377 : vector<4xf32> to vector<4x1xf32>
    %cst_115 = arith.constant 3.200000e+01 : f32
    %379 = vector.broadcast %cst_115 : f32 to vector<4x1xf32>
    %380 = arith.divf %378, %379 : vector<4x1xf32>
    %cst_116 = arith.constant 9.99999974E-6 : f32
    %381 = vector.broadcast %cst_116 : f32 to vector<4x1xf32>
    %382 = arith.addf %380, %381 : vector<4x1xf32>
    %383 = math.rsqrt %382 : vector<4x1xf32>
    %384 = vector.broadcast %383 : vector<4x1xf32> to vector<4x32xf32>
    %385 = arith.mulf %375, %384 : vector<4x32xf32>
    %386 = vector.extract_strided_slice %344 {offsets = [0, 160], sizes = [4, 32], strides = [1, 1]} : vector<4x192xf32> to vector<4x32xf32>
    %387 = arith.mulf %386, %386 : vector<4x32xf32>
    %cst_117 = arith.constant dense<0.000000e+00> : vector<4xf32>
    %388 = vector.multi_reduction <add>, %387, %cst_117 [1] : vector<4x32xf32> to vector<4xf32>
    %389 = vector.shape_cast %388 : vector<4xf32> to vector<4x1xf32>
    %cst_118 = arith.constant 3.200000e+01 : f32
    %390 = vector.broadcast %cst_118 : f32 to vector<4x1xf32>
    %391 = arith.divf %389, %390 : vector<4x1xf32>
    %cst_119 = arith.constant 9.99999974E-6 : f32
    %392 = vector.broadcast %cst_119 : f32 to vector<4x1xf32>
    %393 = arith.addf %391, %392 : vector<4x1xf32>
    %394 = math.rsqrt %393 : vector<4x1xf32>
    %395 = vector.broadcast %394 : vector<4x1xf32> to vector<4x32xf32>
    %396 = arith.mulf %386, %395 : vector<4x32xf32>
    %397 = arith.mulf %374, %396 : vector<4x32xf32>
    %398 = arith.addf %385, %397 : vector<4x32xf32>
    %399 = math.tanh %398 : vector<4x32xf32>
    %cst_120 = arith.constant 1.000000e+00 : f32
    %400 = vector.broadcast %cst_120 : f32 to vector<4x32xf32>
    %401 = arith.subf %400, %373 : vector<4x32xf32>
    %402 = arith.mulf %401, %272 : vector<4x32xf32>
    %403 = arith.mulf %373, %399 : vector<4x32xf32>
    %404 = arith.addf %402, %403 : vector<4x32xf32>
    %c3 = arith.constant 3 : index
    %c0_121 = arith.constant 0 : index
    %c0_122 = arith.constant 0 : index
    %405 = vector.load %arg1[%c3, %c0_121, %c0_122] : memref<8x4x32xf32, #tpu.memory_space<vmem>>, vector<1x4x32xf32>
    %406 = vector.shape_cast %405 : vector<1x4x32xf32> to vector<4x32xf32>
    %407 = tpu.concatenate %406, %339 in 1 : vector<4x32xf32>, vector<4x32xf32> -> vector<4x64xf32>
    %c0_123 = arith.constant 0 : index
    %c0_124 = arith.constant 0 : index
    %c0_125 = arith.constant 0 : index
    %408 = vector.load %arg3[%c0_123, %c0_124, %c0_125] : memref<2x64x192xf32, #tpu.memory_space<vmem>>, vector<1x64x192xf32>
    %409 = vector.shape_cast %408 : vector<1x64x192xf32> to vector<64x192xf32>
    %cst_126 = arith.constant dense<0.000000e+00> : vector<4x192xf32>
    %410 = tpu.matmul %407, %409, %cst_126 {dimension_numbers = #tpu.dot_dimension_numbers<[1], [0], [0], [1], [0, 0, 1, 1], [], []>} : vector<4x64xf32>, vector<64x192xf32>, vector<4x192xf32> -> vector<4x192xf32>
    %411 = arith.addf %410, %4 : vector<4x192xf32>
    %412 = vector.extract_strided_slice %411 {offsets = [0, 0], sizes = [4, 64], strides = [1, 1]} : vector<4x192xf32> to vector<4x64xf32>
    %413 = arith.mulf %412, %412 : vector<4x64xf32>
    %cst_127 = arith.constant dense<0.000000e+00> : vector<4xf32>
    %414 = vector.multi_reduction <add>, %413, %cst_127 [1] : vector<4x64xf32> to vector<4xf32>
    %415 = vector.shape_cast %414 : vector<4xf32> to vector<4x1xf32>
    %cst_128 = arith.constant 6.400000e+01 : f32
    %416 = vector.broadcast %cst_128 : f32 to vector<4x1xf32>
    %417 = arith.divf %415, %416 : vector<4x1xf32>
    %cst_129 = arith.constant 9.99999974E-6 : f32
    %418 = vector.broadcast %cst_129 : f32 to vector<4x1xf32>
    %419 = arith.addf %417, %418 : vector<4x1xf32>
    %420 = math.rsqrt %419 : vector<4x1xf32>
    %421 = vector.broadcast %420 : vector<4x1xf32> to vector<4x64xf32>
    %422 = arith.mulf %412, %421 : vector<4x64xf32>
    %423 = vector.extract_strided_slice %411 {offsets = [0, 64], sizes = [4, 64], strides = [1, 1]} : vector<4x192xf32> to vector<4x64xf32>
    %424 = arith.mulf %423, %423 : vector<4x64xf32>
    %cst_130 = arith.constant dense<0.000000e+00> : vector<4xf32>
    %425 = vector.multi_reduction <add>, %424, %cst_130 [1] : vector<4x64xf32> to vector<4xf32>
    %426 = vector.shape_cast %425 : vector<4xf32> to vector<4x1xf32>
    %cst_131 = arith.constant 6.400000e+01 : f32
    %427 = vector.broadcast %cst_131 : f32 to vector<4x1xf32>
    %428 = arith.divf %426, %427 : vector<4x1xf32>
    %cst_132 = arith.constant 9.99999974E-6 : f32
    %429 = vector.broadcast %cst_132 : f32 to vector<4x1xf32>
    %430 = arith.addf %428, %429 : vector<4x1xf32>
    %431 = math.rsqrt %430 : vector<4x1xf32>
    %432 = vector.broadcast %431 : vector<4x1xf32> to vector<4x64xf32>
    %433 = arith.mulf %423, %432 : vector<4x64xf32>
    %434 = arith.addf %422, %433 : vector<4x64xf32>
    %435 = arith.negf %434 : vector<4x64xf32>
    %436 = math.exp %435 : vector<4x64xf32>
    %cst_133 = arith.constant 1.000000e+00 : f32
    %437 = vector.broadcast %cst_133 : f32 to vector<4x64xf32>
    %438 = arith.addf %437, %436 : vector<4x64xf32>
    %439 = arith.divf %437, %438 : vector<4x64xf32>
    %440 = vector.extract_strided_slice %439 {offsets = [0, 0], sizes = [4, 32], strides = [1, 1]} : vector<4x64xf32> to vector<4x32xf32>
    %441 = vector.extract_strided_slice %439 {offsets = [0, 32], sizes = [4, 32], strides = [1, 1]} : vector<4x64xf32> to vector<4x32xf32>
    %442 = vector.extract_strided_slice %411 {offsets = [0, 128], sizes = [4, 32], strides = [1, 1]} : vector<4x192xf32> to vector<4x32xf32>
    %443 = arith.mulf %442, %442 : vector<4x32xf32>
    %cst_134 = arith.constant dense<0.000000e+00> : vector<4xf32>
    %444 = vector.multi_reduction <add>, %443, %cst_134 [1] : vector<4x32xf32> to vector<4xf32>
    %445 = vector.shape_cast %444 : vector<4xf32> to vector<4x1xf32>
    %cst_135 = arith.constant 3.200000e+01 : f32
    %446 = vector.broadcast %cst_135 : f32 to vector<4x1xf32>
    %447 = arith.divf %445, %446 : vector<4x1xf32>
    %cst_136 = arith.constant 9.99999974E-6 : f32
    %448 = vector.broadcast %cst_136 : f32 to vector<4x1xf32>
    %449 = arith.addf %447, %448 : vector<4x1xf32>
    %450 = math.rsqrt %449 : vector<4x1xf32>
    %451 = vector.broadcast %450 : vector<4x1xf32> to vector<4x32xf32>
    %452 = arith.mulf %442, %451 : vector<4x32xf32>
    %453 = vector.extract_strided_slice %411 {offsets = [0, 160], sizes = [4, 32], strides = [1, 1]} : vector<4x192xf32> to vector<4x32xf32>
    %454 = arith.mulf %453, %453 : vector<4x32xf32>
    %cst_137 = arith.constant dense<0.000000e+00> : vector<4xf32>
    %455 = vector.multi_reduction <add>, %454, %cst_137 [1] : vector<4x32xf32> to vector<4xf32>
    %456 = vector.shape_cast %455 : vector<4xf32> to vector<4x1xf32>
    %cst_138 = arith.constant 3.200000e+01 : f32
    %457 = vector.broadcast %cst_138 : f32 to vector<4x1xf32>
    %458 = arith.divf %456, %457 : vector<4x1xf32>
    %cst_139 = arith.constant 9.99999974E-6 : f32
    %459 = vector.broadcast %cst_139 : f32 to vector<4x1xf32>
    %460 = arith.addf %458, %459 : vector<4x1xf32>
    %461 = math.rsqrt %460 : vector<4x1xf32>
    %462 = vector.broadcast %461 : vector<4x1xf32> to vector<4x32xf32>
    %463 = arith.mulf %453, %462 : vector<4x32xf32>
    %464 = arith.mulf %441, %463 : vector<4x32xf32>
    %465 = arith.addf %452, %464 : vector<4x32xf32>
    %466 = math.tanh %465 : vector<4x32xf32>
    %cst_140 = arith.constant 1.000000e+00 : f32
    %467 = vector.broadcast %cst_140 : f32 to vector<4x32xf32>
    %468 = arith.subf %467, %440 : vector<4x32xf32>
    %469 = arith.mulf %468, %339 : vector<4x32xf32>
    %470 = arith.mulf %440, %466 : vector<4x32xf32>
    %471 = arith.addf %469, %470 : vector<4x32xf32>
    %472 = tpu.concatenate %471, %404 in 1 : vector<4x32xf32>, vector<4x32xf32> -> vector<4x64xf32>
    %c1_141 = arith.constant 1 : index
    %c0_142 = arith.constant 0 : index
    %c0_143 = arith.constant 0 : index
    %473 = vector.load %arg3[%c1_141, %c0_142, %c0_143] : memref<2x64x192xf32, #tpu.memory_space<vmem>>, vector<1x64x192xf32>
    %474 = vector.shape_cast %473 : vector<1x64x192xf32> to vector<64x192xf32>
    %cst_144 = arith.constant dense<0.000000e+00> : vector<4x192xf32>
    %475 = tpu.matmul %472, %474, %cst_144 {dimension_numbers = #tpu.dot_dimension_numbers<[1], [0], [0], [1], [0, 0, 1, 1], [], []>} : vector<4x64xf32>, vector<64x192xf32>, vector<4x192xf32> -> vector<4x192xf32>
    %476 = arith.addf %475, %8 : vector<4x192xf32>
    %477 = vector.extract_strided_slice %476 {offsets = [0, 0], sizes = [4, 64], strides = [1, 1]} : vector<4x192xf32> to vector<4x64xf32>
    %478 = arith.mulf %477, %477 : vector<4x64xf32>
    %cst_145 = arith.constant dense<0.000000e+00> : vector<4xf32>
    %479 = vector.multi_reduction <add>, %478, %cst_145 [1] : vector<4x64xf32> to vector<4xf32>
    %480 = vector.shape_cast %479 : vector<4xf32> to vector<4x1xf32>
    %cst_146 = arith.constant 6.400000e+01 : f32
    %481 = vector.broadcast %cst_146 : f32 to vector<4x1xf32>
    %482 = arith.divf %480, %481 : vector<4x1xf32>
    %cst_147 = arith.constant 9.99999974E-6 : f32
    %483 = vector.broadcast %cst_147 : f32 to vector<4x1xf32>
    %484 = arith.addf %482, %483 : vector<4x1xf32>
    %485 = math.rsqrt %484 : vector<4x1xf32>
    %486 = vector.broadcast %485 : vector<4x1xf32> to vector<4x64xf32>
    %487 = arith.mulf %477, %486 : vector<4x64xf32>
    %488 = vector.extract_strided_slice %476 {offsets = [0, 64], sizes = [4, 64], strides = [1, 1]} : vector<4x192xf32> to vector<4x64xf32>
    %489 = arith.mulf %488, %488 : vector<4x64xf32>
    %cst_148 = arith.constant dense<0.000000e+00> : vector<4xf32>
    %490 = vector.multi_reduction <add>, %489, %cst_148 [1] : vector<4x64xf32> to vector<4xf32>
    %491 = vector.shape_cast %490 : vector<4xf32> to vector<4x1xf32>
    %cst_149 = arith.constant 6.400000e+01 : f32
    %492 = vector.broadcast %cst_149 : f32 to vector<4x1xf32>
    %493 = arith.divf %491, %492 : vector<4x1xf32>
    %cst_150 = arith.constant 9.99999974E-6 : f32
    %494 = vector.broadcast %cst_150 : f32 to vector<4x1xf32>
    %495 = arith.addf %493, %494 : vector<4x1xf32>
    %496 = math.rsqrt %495 : vector<4x1xf32>
    %497 = vector.broadcast %496 : vector<4x1xf32> to vector<4x64xf32>
    %498 = arith.mulf %488, %497 : vector<4x64xf32>
    %499 = arith.addf %487, %498 : vector<4x64xf32>
    %500 = arith.negf %499 : vector<4x64xf32>
    %501 = math.exp %500 : vector<4x64xf32>
    %cst_151 = arith.constant 1.000000e+00 : f32
    %502 = vector.broadcast %cst_151 : f32 to vector<4x64xf32>
    %503 = arith.addf %502, %501 : vector<4x64xf32>
    %504 = arith.divf %502, %503 : vector<4x64xf32>
    %505 = vector.extract_strided_slice %504 {offsets = [0, 0], sizes = [4, 32], strides = [1, 1]} : vector<4x64xf32> to vector<4x32xf32>
    %506 = vector.extract_strided_slice %504 {offsets = [0, 32], sizes = [4, 32], strides = [1, 1]} : vector<4x64xf32> to vector<4x32xf32>
    %507 = vector.extract_strided_slice %476 {offsets = [0, 128], sizes = [4, 32], strides = [1, 1]} : vector<4x192xf32> to vector<4x32xf32>
    %508 = arith.mulf %507, %507 : vector<4x32xf32>
    %cst_152 = arith.constant dense<0.000000e+00> : vector<4xf32>
    %509 = vector.multi_reduction <add>, %508, %cst_152 [1] : vector<4x32xf32> to vector<4xf32>
    %510 = vector.shape_cast %509 : vector<4xf32> to vector<4x1xf32>
    %cst_153 = arith.constant 3.200000e+01 : f32
    %511 = vector.broadcast %cst_153 : f32 to vector<4x1xf32>
    %512 = arith.divf %510, %511 : vector<4x1xf32>
    %cst_154 = arith.constant 9.99999974E-6 : f32
    %513 = vector.broadcast %cst_154 : f32 to vector<4x1xf32>
    %514 = arith.addf %512, %513 : vector<4x1xf32>
    %515 = math.rsqrt %514 : vector<4x1xf32>
    %516 = vector.broadcast %515 : vector<4x1xf32> to vector<4x32xf32>
    %517 = arith.mulf %507, %516 : vector<4x32xf32>
    %518 = vector.extract_strided_slice %476 {offsets = [0, 160], sizes = [4, 32], strides = [1, 1]} : vector<4x192xf32> to vector<4x32xf32>
    %519 = arith.mulf %518, %518 : vector<4x32xf32>
    %cst_155 = arith.constant dense<0.000000e+00> : vector<4xf32>
    %520 = vector.multi_reduction <add>, %519, %cst_155 [1] : vector<4x32xf32> to vector<4xf32>
    %521 = vector.shape_cast %520 : vector<4xf32> to vector<4x1xf32>
    %cst_156 = arith.constant 3.200000e+01 : f32
    %522 = vector.broadcast %cst_156 : f32 to vector<4x1xf32>
    %523 = arith.divf %521, %522 : vector<4x1xf32>
    %cst_157 = arith.constant 9.99999974E-6 : f32
    %524 = vector.broadcast %cst_157 : f32 to vector<4x1xf32>
    %525 = arith.addf %523, %524 : vector<4x1xf32>
    %526 = math.rsqrt %525 : vector<4x1xf32>
    %527 = vector.broadcast %526 : vector<4x1xf32> to vector<4x32xf32>
    %528 = arith.mulf %518, %527 : vector<4x32xf32>
    %529 = arith.mulf %506, %528 : vector<4x32xf32>
    %530 = arith.addf %517, %529 : vector<4x32xf32>
    %531 = math.tanh %530 : vector<4x32xf32>
    %cst_158 = arith.constant 1.000000e+00 : f32
    %532 = vector.broadcast %cst_158 : f32 to vector<4x32xf32>
    %533 = arith.subf %532, %505 : vector<4x32xf32>
    %534 = arith.mulf %533, %404 : vector<4x32xf32>
    %535 = arith.mulf %505, %531 : vector<4x32xf32>
    %536 = arith.addf %534, %535 : vector<4x32xf32>
    %c4 = arith.constant 4 : index
    %c0_159 = arith.constant 0 : index
    %c0_160 = arith.constant 0 : index
    %537 = vector.load %arg1[%c4, %c0_159, %c0_160] : memref<8x4x32xf32, #tpu.memory_space<vmem>>, vector<1x4x32xf32>
    %538 = vector.shape_cast %537 : vector<1x4x32xf32> to vector<4x32xf32>
    %539 = tpu.concatenate %538, %471 in 1 : vector<4x32xf32>, vector<4x32xf32> -> vector<4x64xf32>
    %c0_161 = arith.constant 0 : index
    %c0_162 = arith.constant 0 : index
    %c0_163 = arith.constant 0 : index
    %540 = vector.load %arg3[%c0_161, %c0_162, %c0_163] : memref<2x64x192xf32, #tpu.memory_space<vmem>>, vector<1x64x192xf32>
    %541 = vector.shape_cast %540 : vector<1x64x192xf32> to vector<64x192xf32>
    %cst_164 = arith.constant dense<0.000000e+00> : vector<4x192xf32>
    %542 = tpu.matmul %539, %541, %cst_164 {dimension_numbers = #tpu.dot_dimension_numbers<[1], [0], [0], [1], [0, 0, 1, 1], [], []>} : vector<4x64xf32>, vector<64x192xf32>, vector<4x192xf32> -> vector<4x192xf32>
    %543 = arith.addf %542, %4 : vector<4x192xf32>
    %544 = vector.extract_strided_slice %543 {offsets = [0, 0], sizes = [4, 64], strides = [1, 1]} : vector<4x192xf32> to vector<4x64xf32>
    %545 = arith.mulf %544, %544 : vector<4x64xf32>
    %cst_165 = arith.constant dense<0.000000e+00> : vector<4xf32>
    %546 = vector.multi_reduction <add>, %545, %cst_165 [1] : vector<4x64xf32> to vector<4xf32>
    %547 = vector.shape_cast %546 : vector<4xf32> to vector<4x1xf32>
    %cst_166 = arith.constant 6.400000e+01 : f32
    %548 = vector.broadcast %cst_166 : f32 to vector<4x1xf32>
    %549 = arith.divf %547, %548 : vector<4x1xf32>
    %cst_167 = arith.constant 9.99999974E-6 : f32
    %550 = vector.broadcast %cst_167 : f32 to vector<4x1xf32>
    %551 = arith.addf %549, %550 : vector<4x1xf32>
    %552 = math.rsqrt %551 : vector<4x1xf32>
    %553 = vector.broadcast %552 : vector<4x1xf32> to vector<4x64xf32>
    %554 = arith.mulf %544, %553 : vector<4x64xf32>
    %555 = vector.extract_strided_slice %543 {offsets = [0, 64], sizes = [4, 64], strides = [1, 1]} : vector<4x192xf32> to vector<4x64xf32>
    %556 = arith.mulf %555, %555 : vector<4x64xf32>
    %cst_168 = arith.constant dense<0.000000e+00> : vector<4xf32>
    %557 = vector.multi_reduction <add>, %556, %cst_168 [1] : vector<4x64xf32> to vector<4xf32>
    %558 = vector.shape_cast %557 : vector<4xf32> to vector<4x1xf32>
    %cst_169 = arith.constant 6.400000e+01 : f32
    %559 = vector.broadcast %cst_169 : f32 to vector<4x1xf32>
    %560 = arith.divf %558, %559 : vector<4x1xf32>
    %cst_170 = arith.constant 9.99999974E-6 : f32
    %561 = vector.broadcast %cst_170 : f32 to vector<4x1xf32>
    %562 = arith.addf %560, %561 : vector<4x1xf32>
    %563 = math.rsqrt %562 : vector<4x1xf32>
    %564 = vector.broadcast %563 : vector<4x1xf32> to vector<4x64xf32>
    %565 = arith.mulf %555, %564 : vector<4x64xf32>
    %566 = arith.addf %554, %565 : vector<4x64xf32>
    %567 = arith.negf %566 : vector<4x64xf32>
    %568 = math.exp %567 : vector<4x64xf32>
    %cst_171 = arith.constant 1.000000e+00 : f32
    %569 = vector.broadcast %cst_171 : f32 to vector<4x64xf32>
    %570 = arith.addf %569, %568 : vector<4x64xf32>
    %571 = arith.divf %569, %570 : vector<4x64xf32>
    %572 = vector.extract_strided_slice %571 {offsets = [0, 0], sizes = [4, 32], strides = [1, 1]} : vector<4x64xf32> to vector<4x32xf32>
    %573 = vector.extract_strided_slice %571 {offsets = [0, 32], sizes = [4, 32], strides = [1, 1]} : vector<4x64xf32> to vector<4x32xf32>
    %574 = vector.extract_strided_slice %543 {offsets = [0, 128], sizes = [4, 32], strides = [1, 1]} : vector<4x192xf32> to vector<4x32xf32>
    %575 = arith.mulf %574, %574 : vector<4x32xf32>
    %cst_172 = arith.constant dense<0.000000e+00> : vector<4xf32>
    %576 = vector.multi_reduction <add>, %575, %cst_172 [1] : vector<4x32xf32> to vector<4xf32>
    %577 = vector.shape_cast %576 : vector<4xf32> to vector<4x1xf32>
    %cst_173 = arith.constant 3.200000e+01 : f32
    %578 = vector.broadcast %cst_173 : f32 to vector<4x1xf32>
    %579 = arith.divf %577, %578 : vector<4x1xf32>
    %cst_174 = arith.constant 9.99999974E-6 : f32
    %580 = vector.broadcast %cst_174 : f32 to vector<4x1xf32>
    %581 = arith.addf %579, %580 : vector<4x1xf32>
    %582 = math.rsqrt %581 : vector<4x1xf32>
    %583 = vector.broadcast %582 : vector<4x1xf32> to vector<4x32xf32>
    %584 = arith.mulf %574, %583 : vector<4x32xf32>
    %585 = vector.extract_strided_slice %543 {offsets = [0, 160], sizes = [4, 32], strides = [1, 1]} : vector<4x192xf32> to vector<4x32xf32>
    %586 = arith.mulf %585, %585 : vector<4x32xf32>
    %cst_175 = arith.constant dense<0.000000e+00> : vector<4xf32>
    %587 = vector.multi_reduction <add>, %586, %cst_175 [1] : vector<4x32xf32> to vector<4xf32>
    %588 = vector.shape_cast %587 : vector<4xf32> to vector<4x1xf32>
    %cst_176 = arith.constant 3.200000e+01 : f32
    %589 = vector.broadcast %cst_176 : f32 to vector<4x1xf32>
    %590 = arith.divf %588, %589 : vector<4x1xf32>
    %cst_177 = arith.constant 9.99999974E-6 : f32
    %591 = vector.broadcast %cst_177 : f32 to vector<4x1xf32>
    %592 = arith.addf %590, %591 : vector<4x1xf32>
    %593 = math.rsqrt %592 : vector<4x1xf32>
    %594 = vector.broadcast %593 : vector<4x1xf32> to vector<4x32xf32>
    %595 = arith.mulf %585, %594 : vector<4x32xf32>
    %596 = arith.mulf %573, %595 : vector<4x32xf32>
    %597 = arith.addf %584, %596 : vector<4x32xf32>
    %598 = math.tanh %597 : vector<4x32xf32>
    %cst_178 = arith.constant 1.000000e+00 : f32
    %599 = vector.broadcast %cst_178 : f32 to vector<4x32xf32>
    %600 = arith.subf %599, %572 : vector<4x32xf32>
    %601 = arith.mulf %600, %471 : vector<4x32xf32>
    %602 = arith.mulf %572, %598 : vector<4x32xf32>
    %603 = arith.addf %601, %602 : vector<4x32xf32>
    %604 = tpu.concatenate %603, %536 in 1 : vector<4x32xf32>, vector<4x32xf32> -> vector<4x64xf32>
    %c1_179 = arith.constant 1 : index
    %c0_180 = arith.constant 0 : index
    %c0_181 = arith.constant 0 : index
    %605 = vector.load %arg3[%c1_179, %c0_180, %c0_181] : memref<2x64x192xf32, #tpu.memory_space<vmem>>, vector<1x64x192xf32>
    %606 = vector.shape_cast %605 : vector<1x64x192xf32> to vector<64x192xf32>
    %cst_182 = arith.constant dense<0.000000e+00> : vector<4x192xf32>
    %607 = tpu.matmul %604, %606, %cst_182 {dimension_numbers = #tpu.dot_dimension_numbers<[1], [0], [0], [1], [0, 0, 1, 1], [], []>} : vector<4x64xf32>, vector<64x192xf32>, vector<4x192xf32> -> vector<4x192xf32>
    %608 = arith.addf %607, %8 : vector<4x192xf32>
    %609 = vector.extract_strided_slice %608 {offsets = [0, 0], sizes = [4, 64], strides = [1, 1]} : vector<4x192xf32> to vector<4x64xf32>
    %610 = arith.mulf %609, %609 : vector<4x64xf32>
    %cst_183 = arith.constant dense<0.000000e+00> : vector<4xf32>
    %611 = vector.multi_reduction <add>, %610, %cst_183 [1] : vector<4x64xf32> to vector<4xf32>
    %612 = vector.shape_cast %611 : vector<4xf32> to vector<4x1xf32>
    %cst_184 = arith.constant 6.400000e+01 : f32
    %613 = vector.broadcast %cst_184 : f32 to vector<4x1xf32>
    %614 = arith.divf %612, %613 : vector<4x1xf32>
    %cst_185 = arith.constant 9.99999974E-6 : f32
    %615 = vector.broadcast %cst_185 : f32 to vector<4x1xf32>
    %616 = arith.addf %614, %615 : vector<4x1xf32>
    %617 = math.rsqrt %616 : vector<4x1xf32>
    %618 = vector.broadcast %617 : vector<4x1xf32> to vector<4x64xf32>
    %619 = arith.mulf %609, %618 : vector<4x64xf32>
    %620 = vector.extract_strided_slice %608 {offsets = [0, 64], sizes = [4, 64], strides = [1, 1]} : vector<4x192xf32> to vector<4x64xf32>
    %621 = arith.mulf %620, %620 : vector<4x64xf32>
    %cst_186 = arith.constant dense<0.000000e+00> : vector<4xf32>
    %622 = vector.multi_reduction <add>, %621, %cst_186 [1] : vector<4x64xf32> to vector<4xf32>
    %623 = vector.shape_cast %622 : vector<4xf32> to vector<4x1xf32>
    %cst_187 = arith.constant 6.400000e+01 : f32
    %624 = vector.broadcast %cst_187 : f32 to vector<4x1xf32>
    %625 = arith.divf %623, %624 : vector<4x1xf32>
    %cst_188 = arith.constant 9.99999974E-6 : f32
    %626 = vector.broadcast %cst_188 : f32 to vector<4x1xf32>
    %627 = arith.addf %625, %626 : vector<4x1xf32>
    %628 = math.rsqrt %627 : vector<4x1xf32>
    %629 = vector.broadcast %628 : vector<4x1xf32> to vector<4x64xf32>
    %630 = arith.mulf %620, %629 : vector<4x64xf32>
    %631 = arith.addf %619, %630 : vector<4x64xf32>
    %632 = arith.negf %631 : vector<4x64xf32>
    %633 = math.exp %632 : vector<4x64xf32>
    %cst_189 = arith.constant 1.000000e+00 : f32
    %634 = vector.broadcast %cst_189 : f32 to vector<4x64xf32>
    %635 = arith.addf %634, %633 : vector<4x64xf32>
    %636 = arith.divf %634, %635 : vector<4x64xf32>
    %637 = vector.extract_strided_slice %636 {offsets = [0, 0], sizes = [4, 32], strides = [1, 1]} : vector<4x64xf32> to vector<4x32xf32>
    %638 = vector.extract_strided_slice %636 {offsets = [0, 32], sizes = [4, 32], strides = [1, 1]} : vector<4x64xf32> to vector<4x32xf32>
    %639 = vector.extract_strided_slice %608 {offsets = [0, 128], sizes = [4, 32], strides = [1, 1]} : vector<4x192xf32> to vector<4x32xf32>
    %640 = arith.mulf %639, %639 : vector<4x32xf32>
    %cst_190 = arith.constant dense<0.000000e+00> : vector<4xf32>
    %641 = vector.multi_reduction <add>, %640, %cst_190 [1] : vector<4x32xf32> to vector<4xf32>
    %642 = vector.shape_cast %641 : vector<4xf32> to vector<4x1xf32>
    %cst_191 = arith.constant 3.200000e+01 : f32
    %643 = vector.broadcast %cst_191 : f32 to vector<4x1xf32>
    %644 = arith.divf %642, %643 : vector<4x1xf32>
    %cst_192 = arith.constant 9.99999974E-6 : f32
    %645 = vector.broadcast %cst_192 : f32 to vector<4x1xf32>
    %646 = arith.addf %644, %645 : vector<4x1xf32>
    %647 = math.rsqrt %646 : vector<4x1xf32>
    %648 = vector.broadcast %647 : vector<4x1xf32> to vector<4x32xf32>
    %649 = arith.mulf %639, %648 : vector<4x32xf32>
    %650 = vector.extract_strided_slice %608 {offsets = [0, 160], sizes = [4, 32], strides = [1, 1]} : vector<4x192xf32> to vector<4x32xf32>
    %651 = arith.mulf %650, %650 : vector<4x32xf32>
    %cst_193 = arith.constant dense<0.000000e+00> : vector<4xf32>
    %652 = vector.multi_reduction <add>, %651, %cst_193 [1] : vector<4x32xf32> to vector<4xf32>
    %653 = vector.shape_cast %652 : vector<4xf32> to vector<4x1xf32>
    %cst_194 = arith.constant 3.200000e+01 : f32
    %654 = vector.broadcast %cst_194 : f32 to vector<4x1xf32>
    %655 = arith.divf %653, %654 : vector<4x1xf32>
    %cst_195 = arith.constant 9.99999974E-6 : f32
    %656 = vector.broadcast %cst_195 : f32 to vector<4x1xf32>
    %657 = arith.addf %655, %656 : vector<4x1xf32>
    %658 = math.rsqrt %657 : vector<4x1xf32>
    %659 = vector.broadcast %658 : vector<4x1xf32> to vector<4x32xf32>
    %660 = arith.mulf %650, %659 : vector<4x32xf32>
    %661 = arith.mulf %638, %660 : vector<4x32xf32>
    %662 = arith.addf %649, %661 : vector<4x32xf32>
    %663 = math.tanh %662 : vector<4x32xf32>
    %cst_196 = arith.constant 1.000000e+00 : f32
    %664 = vector.broadcast %cst_196 : f32 to vector<4x32xf32>
    %665 = arith.subf %664, %637 : vector<4x32xf32>
    %666 = arith.mulf %665, %536 : vector<4x32xf32>
    %667 = arith.mulf %637, %663 : vector<4x32xf32>
    %668 = arith.addf %666, %667 : vector<4x32xf32>
    %c5 = arith.constant 5 : index
    %c0_197 = arith.constant 0 : index
    %c0_198 = arith.constant 0 : index
    %669 = vector.load %arg1[%c5, %c0_197, %c0_198] : memref<8x4x32xf32, #tpu.memory_space<vmem>>, vector<1x4x32xf32>
    %670 = vector.shape_cast %669 : vector<1x4x32xf32> to vector<4x32xf32>
    %671 = tpu.concatenate %670, %603 in 1 : vector<4x32xf32>, vector<4x32xf32> -> vector<4x64xf32>
    %c0_199 = arith.constant 0 : index
    %c0_200 = arith.constant 0 : index
    %c0_201 = arith.constant 0 : index
    %672 = vector.load %arg3[%c0_199, %c0_200, %c0_201] : memref<2x64x192xf32, #tpu.memory_space<vmem>>, vector<1x64x192xf32>
    %673 = vector.shape_cast %672 : vector<1x64x192xf32> to vector<64x192xf32>
    %cst_202 = arith.constant dense<0.000000e+00> : vector<4x192xf32>
    %674 = tpu.matmul %671, %673, %cst_202 {dimension_numbers = #tpu.dot_dimension_numbers<[1], [0], [0], [1], [0, 0, 1, 1], [], []>} : vector<4x64xf32>, vector<64x192xf32>, vector<4x192xf32> -> vector<4x192xf32>
    %675 = arith.addf %674, %4 : vector<4x192xf32>
    %676 = vector.extract_strided_slice %675 {offsets = [0, 0], sizes = [4, 64], strides = [1, 1]} : vector<4x192xf32> to vector<4x64xf32>
    %677 = arith.mulf %676, %676 : vector<4x64xf32>
    %cst_203 = arith.constant dense<0.000000e+00> : vector<4xf32>
    %678 = vector.multi_reduction <add>, %677, %cst_203 [1] : vector<4x64xf32> to vector<4xf32>
    %679 = vector.shape_cast %678 : vector<4xf32> to vector<4x1xf32>
    %cst_204 = arith.constant 6.400000e+01 : f32
    %680 = vector.broadcast %cst_204 : f32 to vector<4x1xf32>
    %681 = arith.divf %679, %680 : vector<4x1xf32>
    %cst_205 = arith.constant 9.99999974E-6 : f32
    %682 = vector.broadcast %cst_205 : f32 to vector<4x1xf32>
    %683 = arith.addf %681, %682 : vector<4x1xf32>
    %684 = math.rsqrt %683 : vector<4x1xf32>
    %685 = vector.broadcast %684 : vector<4x1xf32> to vector<4x64xf32>
    %686 = arith.mulf %676, %685 : vector<4x64xf32>
    %687 = vector.extract_strided_slice %675 {offsets = [0, 64], sizes = [4, 64], strides = [1, 1]} : vector<4x192xf32> to vector<4x64xf32>
    %688 = arith.mulf %687, %687 : vector<4x64xf32>
    %cst_206 = arith.constant dense<0.000000e+00> : vector<4xf32>
    %689 = vector.multi_reduction <add>, %688, %cst_206 [1] : vector<4x64xf32> to vector<4xf32>
    %690 = vector.shape_cast %689 : vector<4xf32> to vector<4x1xf32>
    %cst_207 = arith.constant 6.400000e+01 : f32
    %691 = vector.broadcast %cst_207 : f32 to vector<4x1xf32>
    %692 = arith.divf %690, %691 : vector<4x1xf32>
    %cst_208 = arith.constant 9.99999974E-6 : f32
    %693 = vector.broadcast %cst_208 : f32 to vector<4x1xf32>
    %694 = arith.addf %692, %693 : vector<4x1xf32>
    %695 = math.rsqrt %694 : vector<4x1xf32>
    %696 = vector.broadcast %695 : vector<4x1xf32> to vector<4x64xf32>
    %697 = arith.mulf %687, %696 : vector<4x64xf32>
    %698 = arith.addf %686, %697 : vector<4x64xf32>
    %699 = arith.negf %698 : vector<4x64xf32>
    %700 = math.exp %699 : vector<4x64xf32>
    %cst_209 = arith.constant 1.000000e+00 : f32
    %701 = vector.broadcast %cst_209 : f32 to vector<4x64xf32>
    %702 = arith.addf %701, %700 : vector<4x64xf32>
    %703 = arith.divf %701, %702 : vector<4x64xf32>
    %704 = vector.extract_strided_slice %703 {offsets = [0, 0], sizes = [4, 32], strides = [1, 1]} : vector<4x64xf32> to vector<4x32xf32>
    %705 = vector.extract_strided_slice %703 {offsets = [0, 32], sizes = [4, 32], strides = [1, 1]} : vector<4x64xf32> to vector<4x32xf32>
    %706 = vector.extract_strided_slice %675 {offsets = [0, 128], sizes = [4, 32], strides = [1, 1]} : vector<4x192xf32> to vector<4x32xf32>
    %707 = arith.mulf %706, %706 : vector<4x32xf32>
    %cst_210 = arith.constant dense<0.000000e+00> : vector<4xf32>
    %708 = vector.multi_reduction <add>, %707, %cst_210 [1] : vector<4x32xf32> to vector<4xf32>
    %709 = vector.shape_cast %708 : vector<4xf32> to vector<4x1xf32>
    %cst_211 = arith.constant 3.200000e+01 : f32
    %710 = vector.broadcast %cst_211 : f32 to vector<4x1xf32>
    %711 = arith.divf %709, %710 : vector<4x1xf32>
    %cst_212 = arith.constant 9.99999974E-6 : f32
    %712 = vector.broadcast %cst_212 : f32 to vector<4x1xf32>
    %713 = arith.addf %711, %712 : vector<4x1xf32>
    %714 = math.rsqrt %713 : vector<4x1xf32>
    %715 = vector.broadcast %714 : vector<4x1xf32> to vector<4x32xf32>
    %716 = arith.mulf %706, %715 : vector<4x32xf32>
    %717 = vector.extract_strided_slice %675 {offsets = [0, 160], sizes = [4, 32], strides = [1, 1]} : vector<4x192xf32> to vector<4x32xf32>
    %718 = arith.mulf %717, %717 : vector<4x32xf32>
    %cst_213 = arith.constant dense<0.000000e+00> : vector<4xf32>
    %719 = vector.multi_reduction <add>, %718, %cst_213 [1] : vector<4x32xf32> to vector<4xf32>
    %720 = vector.shape_cast %719 : vector<4xf32> to vector<4x1xf32>
    %cst_214 = arith.constant 3.200000e+01 : f32
    %721 = vector.broadcast %cst_214 : f32 to vector<4x1xf32>
    %722 = arith.divf %720, %721 : vector<4x1xf32>
    %cst_215 = arith.constant 9.99999974E-6 : f32
    %723 = vector.broadcast %cst_215 : f32 to vector<4x1xf32>
    %724 = arith.addf %722, %723 : vector<4x1xf32>
    %725 = math.rsqrt %724 : vector<4x1xf32>
    %726 = vector.broadcast %725 : vector<4x1xf32> to vector<4x32xf32>
    %727 = arith.mulf %717, %726 : vector<4x32xf32>
    %728 = arith.mulf %705, %727 : vector<4x32xf32>
    %729 = arith.addf %716, %728 : vector<4x32xf32>
    %730 = math.tanh %729 : vector<4x32xf32>
    %cst_216 = arith.constant 1.000000e+00 : f32
    %731 = vector.broadcast %cst_216 : f32 to vector<4x32xf32>
    %732 = arith.subf %731, %704 : vector<4x32xf32>
    %733 = arith.mulf %732, %603 : vector<4x32xf32>
    %734 = arith.mulf %704, %730 : vector<4x32xf32>
    %735 = arith.addf %733, %734 : vector<4x32xf32>
    %736 = tpu.concatenate %735, %668 in 1 : vector<4x32xf32>, vector<4x32xf32> -> vector<4x64xf32>
    %c1_217 = arith.constant 1 : index
    %c0_218 = arith.constant 0 : index
    %c0_219 = arith.constant 0 : index
    %737 = vector.load %arg3[%c1_217, %c0_218, %c0_219] : memref<2x64x192xf32, #tpu.memory_space<vmem>>, vector<1x64x192xf32>
    %738 = vector.shape_cast %737 : vector<1x64x192xf32> to vector<64x192xf32>
    %cst_220 = arith.constant dense<0.000000e+00> : vector<4x192xf32>
    %739 = tpu.matmul %736, %738, %cst_220 {dimension_numbers = #tpu.dot_dimension_numbers<[1], [0], [0], [1], [0, 0, 1, 1], [], []>} : vector<4x64xf32>, vector<64x192xf32>, vector<4x192xf32> -> vector<4x192xf32>
    %740 = arith.addf %739, %8 : vector<4x192xf32>
    %741 = vector.extract_strided_slice %740 {offsets = [0, 0], sizes = [4, 64], strides = [1, 1]} : vector<4x192xf32> to vector<4x64xf32>
    %742 = arith.mulf %741, %741 : vector<4x64xf32>
    %cst_221 = arith.constant dense<0.000000e+00> : vector<4xf32>
    %743 = vector.multi_reduction <add>, %742, %cst_221 [1] : vector<4x64xf32> to vector<4xf32>
    %744 = vector.shape_cast %743 : vector<4xf32> to vector<4x1xf32>
    %cst_222 = arith.constant 6.400000e+01 : f32
    %745 = vector.broadcast %cst_222 : f32 to vector<4x1xf32>
    %746 = arith.divf %744, %745 : vector<4x1xf32>
    %cst_223 = arith.constant 9.99999974E-6 : f32
    %747 = vector.broadcast %cst_223 : f32 to vector<4x1xf32>
    %748 = arith.addf %746, %747 : vector<4x1xf32>
    %749 = math.rsqrt %748 : vector<4x1xf32>
    %750 = vector.broadcast %749 : vector<4x1xf32> to vector<4x64xf32>
    %751 = arith.mulf %741, %750 : vector<4x64xf32>
    %752 = vector.extract_strided_slice %740 {offsets = [0, 64], sizes = [4, 64], strides = [1, 1]} : vector<4x192xf32> to vector<4x64xf32>
    %753 = arith.mulf %752, %752 : vector<4x64xf32>
    %cst_224 = arith.constant dense<0.000000e+00> : vector<4xf32>
    %754 = vector.multi_reduction <add>, %753, %cst_224 [1] : vector<4x64xf32> to vector<4xf32>
    %755 = vector.shape_cast %754 : vector<4xf32> to vector<4x1xf32>
    %cst_225 = arith.constant 6.400000e+01 : f32
    %756 = vector.broadcast %cst_225 : f32 to vector<4x1xf32>
    %757 = arith.divf %755, %756 : vector<4x1xf32>
    %cst_226 = arith.constant 9.99999974E-6 : f32
    %758 = vector.broadcast %cst_226 : f32 to vector<4x1xf32>
    %759 = arith.addf %757, %758 : vector<4x1xf32>
    %760 = math.rsqrt %759 : vector<4x1xf32>
    %761 = vector.broadcast %760 : vector<4x1xf32> to vector<4x64xf32>
    %762 = arith.mulf %752, %761 : vector<4x64xf32>
    %763 = arith.addf %751, %762 : vector<4x64xf32>
    %764 = arith.negf %763 : vector<4x64xf32>
    %765 = math.exp %764 : vector<4x64xf32>
    %cst_227 = arith.constant 1.000000e+00 : f32
    %766 = vector.broadcast %cst_227 : f32 to vector<4x64xf32>
    %767 = arith.addf %766, %765 : vector<4x64xf32>
    %768 = arith.divf %766, %767 : vector<4x64xf32>
    %769 = vector.extract_strided_slice %768 {offsets = [0, 0], sizes = [4, 32], strides = [1, 1]} : vector<4x64xf32> to vector<4x32xf32>
    %770 = vector.extract_strided_slice %768 {offsets = [0, 32], sizes = [4, 32], strides = [1, 1]} : vector<4x64xf32> to vector<4x32xf32>
    %771 = vector.extract_strided_slice %740 {offsets = [0, 128], sizes = [4, 32], strides = [1, 1]} : vector<4x192xf32> to vector<4x32xf32>
    %772 = arith.mulf %771, %771 : vector<4x32xf32>
    %cst_228 = arith.constant dense<0.000000e+00> : vector<4xf32>
    %773 = vector.multi_reduction <add>, %772, %cst_228 [1] : vector<4x32xf32> to vector<4xf32>
    %774 = vector.shape_cast %773 : vector<4xf32> to vector<4x1xf32>
    %cst_229 = arith.constant 3.200000e+01 : f32
    %775 = vector.broadcast %cst_229 : f32 to vector<4x1xf32>
    %776 = arith.divf %774, %775 : vector<4x1xf32>
    %cst_230 = arith.constant 9.99999974E-6 : f32
    %777 = vector.broadcast %cst_230 : f32 to vector<4x1xf32>
    %778 = arith.addf %776, %777 : vector<4x1xf32>
    %779 = math.rsqrt %778 : vector<4x1xf32>
    %780 = vector.broadcast %779 : vector<4x1xf32> to vector<4x32xf32>
    %781 = arith.mulf %771, %780 : vector<4x32xf32>
    %782 = vector.extract_strided_slice %740 {offsets = [0, 160], sizes = [4, 32], strides = [1, 1]} : vector<4x192xf32> to vector<4x32xf32>
    %783 = arith.mulf %782, %782 : vector<4x32xf32>
    %cst_231 = arith.constant dense<0.000000e+00> : vector<4xf32>
    %784 = vector.multi_reduction <add>, %783, %cst_231 [1] : vector<4x32xf32> to vector<4xf32>
    %785 = vector.shape_cast %784 : vector<4xf32> to vector<4x1xf32>
    %cst_232 = arith.constant 3.200000e+01 : f32
    %786 = vector.broadcast %cst_232 : f32 to vector<4x1xf32>
    %787 = arith.divf %785, %786 : vector<4x1xf32>
    %cst_233 = arith.constant 9.99999974E-6 : f32
    %788 = vector.broadcast %cst_233 : f32 to vector<4x1xf32>
    %789 = arith.addf %787, %788 : vector<4x1xf32>
    %790 = math.rsqrt %789 : vector<4x1xf32>
    %791 = vector.broadcast %790 : vector<4x1xf32> to vector<4x32xf32>
    %792 = arith.mulf %782, %791 : vector<4x32xf32>
    %793 = arith.mulf %770, %792 : vector<4x32xf32>
    %794 = arith.addf %781, %793 : vector<4x32xf32>
    %795 = math.tanh %794 : vector<4x32xf32>
    %cst_234 = arith.constant 1.000000e+00 : f32
    %796 = vector.broadcast %cst_234 : f32 to vector<4x32xf32>
    %797 = arith.subf %796, %769 : vector<4x32xf32>
    %798 = arith.mulf %797, %668 : vector<4x32xf32>
    %799 = arith.mulf %769, %795 : vector<4x32xf32>
    %800 = arith.addf %798, %799 : vector<4x32xf32>
    %c6 = arith.constant 6 : index
    %c0_235 = arith.constant 0 : index
    %c0_236 = arith.constant 0 : index
    %801 = vector.load %arg1[%c6, %c0_235, %c0_236] : memref<8x4x32xf32, #tpu.memory_space<vmem>>, vector<1x4x32xf32>
    %802 = vector.shape_cast %801 : vector<1x4x32xf32> to vector<4x32xf32>
    %803 = tpu.concatenate %802, %735 in 1 : vector<4x32xf32>, vector<4x32xf32> -> vector<4x64xf32>
    %c0_237 = arith.constant 0 : index
    %c0_238 = arith.constant 0 : index
    %c0_239 = arith.constant 0 : index
    %804 = vector.load %arg3[%c0_237, %c0_238, %c0_239] : memref<2x64x192xf32, #tpu.memory_space<vmem>>, vector<1x64x192xf32>
    %805 = vector.shape_cast %804 : vector<1x64x192xf32> to vector<64x192xf32>
    %cst_240 = arith.constant dense<0.000000e+00> : vector<4x192xf32>
    %806 = tpu.matmul %803, %805, %cst_240 {dimension_numbers = #tpu.dot_dimension_numbers<[1], [0], [0], [1], [0, 0, 1, 1], [], []>} : vector<4x64xf32>, vector<64x192xf32>, vector<4x192xf32> -> vector<4x192xf32>
    %807 = arith.addf %806, %4 : vector<4x192xf32>
    %808 = vector.extract_strided_slice %807 {offsets = [0, 0], sizes = [4, 64], strides = [1, 1]} : vector<4x192xf32> to vector<4x64xf32>
    %809 = arith.mulf %808, %808 : vector<4x64xf32>
    %cst_241 = arith.constant dense<0.000000e+00> : vector<4xf32>
    %810 = vector.multi_reduction <add>, %809, %cst_241 [1] : vector<4x64xf32> to vector<4xf32>
    %811 = vector.shape_cast %810 : vector<4xf32> to vector<4x1xf32>
    %cst_242 = arith.constant 6.400000e+01 : f32
    %812 = vector.broadcast %cst_242 : f32 to vector<4x1xf32>
    %813 = arith.divf %811, %812 : vector<4x1xf32>
    %cst_243 = arith.constant 9.99999974E-6 : f32
    %814 = vector.broadcast %cst_243 : f32 to vector<4x1xf32>
    %815 = arith.addf %813, %814 : vector<4x1xf32>
    %816 = math.rsqrt %815 : vector<4x1xf32>
    %817 = vector.broadcast %816 : vector<4x1xf32> to vector<4x64xf32>
    %818 = arith.mulf %808, %817 : vector<4x64xf32>
    %819 = vector.extract_strided_slice %807 {offsets = [0, 64], sizes = [4, 64], strides = [1, 1]} : vector<4x192xf32> to vector<4x64xf32>
    %820 = arith.mulf %819, %819 : vector<4x64xf32>
    %cst_244 = arith.constant dense<0.000000e+00> : vector<4xf32>
    %821 = vector.multi_reduction <add>, %820, %cst_244 [1] : vector<4x64xf32> to vector<4xf32>
    %822 = vector.shape_cast %821 : vector<4xf32> to vector<4x1xf32>
    %cst_245 = arith.constant 6.400000e+01 : f32
    %823 = vector.broadcast %cst_245 : f32 to vector<4x1xf32>
    %824 = arith.divf %822, %823 : vector<4x1xf32>
    %cst_246 = arith.constant 9.99999974E-6 : f32
    %825 = vector.broadcast %cst_246 : f32 to vector<4x1xf32>
    %826 = arith.addf %824, %825 : vector<4x1xf32>
    %827 = math.rsqrt %826 : vector<4x1xf32>
    %828 = vector.broadcast %827 : vector<4x1xf32> to vector<4x64xf32>
    %829 = arith.mulf %819, %828 : vector<4x64xf32>
    %830 = arith.addf %818, %829 : vector<4x64xf32>
    %831 = arith.negf %830 : vector<4x64xf32>
    %832 = math.exp %831 : vector<4x64xf32>
    %cst_247 = arith.constant 1.000000e+00 : f32
    %833 = vector.broadcast %cst_247 : f32 to vector<4x64xf32>
    %834 = arith.addf %833, %832 : vector<4x64xf32>
    %835 = arith.divf %833, %834 : vector<4x64xf32>
    %836 = vector.extract_strided_slice %835 {offsets = [0, 0], sizes = [4, 32], strides = [1, 1]} : vector<4x64xf32> to vector<4x32xf32>
    %837 = vector.extract_strided_slice %835 {offsets = [0, 32], sizes = [4, 32], strides = [1, 1]} : vector<4x64xf32> to vector<4x32xf32>
    %838 = vector.extract_strided_slice %807 {offsets = [0, 128], sizes = [4, 32], strides = [1, 1]} : vector<4x192xf32> to vector<4x32xf32>
    %839 = arith.mulf %838, %838 : vector<4x32xf32>
    %cst_248 = arith.constant dense<0.000000e+00> : vector<4xf32>
    %840 = vector.multi_reduction <add>, %839, %cst_248 [1] : vector<4x32xf32> to vector<4xf32>
    %841 = vector.shape_cast %840 : vector<4xf32> to vector<4x1xf32>
    %cst_249 = arith.constant 3.200000e+01 : f32
    %842 = vector.broadcast %cst_249 : f32 to vector<4x1xf32>
    %843 = arith.divf %841, %842 : vector<4x1xf32>
    %cst_250 = arith.constant 9.99999974E-6 : f32
    %844 = vector.broadcast %cst_250 : f32 to vector<4x1xf32>
    %845 = arith.addf %843, %844 : vector<4x1xf32>
    %846 = math.rsqrt %845 : vector<4x1xf32>
    %847 = vector.broadcast %846 : vector<4x1xf32> to vector<4x32xf32>
    %848 = arith.mulf %838, %847 : vector<4x32xf32>
    %849 = vector.extract_strided_slice %807 {offsets = [0, 160], sizes = [4, 32], strides = [1, 1]} : vector<4x192xf32> to vector<4x32xf32>
    %850 = arith.mulf %849, %849 : vector<4x32xf32>
    %cst_251 = arith.constant dense<0.000000e+00> : vector<4xf32>
    %851 = vector.multi_reduction <add>, %850, %cst_251 [1] : vector<4x32xf32> to vector<4xf32>
    %852 = vector.shape_cast %851 : vector<4xf32> to vector<4x1xf32>
    %cst_252 = arith.constant 3.200000e+01 : f32
    %853 = vector.broadcast %cst_252 : f32 to vector<4x1xf32>
    %854 = arith.divf %852, %853 : vector<4x1xf32>
    %cst_253 = arith.constant 9.99999974E-6 : f32
    %855 = vector.broadcast %cst_253 : f32 to vector<4x1xf32>
    %856 = arith.addf %854, %855 : vector<4x1xf32>
    %857 = math.rsqrt %856 : vector<4x1xf32>
    %858 = vector.broadcast %857 : vector<4x1xf32> to vector<4x32xf32>
    %859 = arith.mulf %849, %858 : vector<4x32xf32>
    %860 = arith.mulf %837, %859 : vector<4x32xf32>
    %861 = arith.addf %848, %860 : vector<4x32xf32>
    %862 = math.tanh %861 : vector<4x32xf32>
    %cst_254 = arith.constant 1.000000e+00 : f32
    %863 = vector.broadcast %cst_254 : f32 to vector<4x32xf32>
    %864 = arith.subf %863, %836 : vector<4x32xf32>
    %865 = arith.mulf %864, %735 : vector<4x32xf32>
    %866 = arith.mulf %836, %862 : vector<4x32xf32>
    %867 = arith.addf %865, %866 : vector<4x32xf32>
    %868 = tpu.concatenate %867, %800 in 1 : vector<4x32xf32>, vector<4x32xf32> -> vector<4x64xf32>
    %c1_255 = arith.constant 1 : index
    %c0_256 = arith.constant 0 : index
    %c0_257 = arith.constant 0 : index
    %869 = vector.load %arg3[%c1_255, %c0_256, %c0_257] : memref<2x64x192xf32, #tpu.memory_space<vmem>>, vector<1x64x192xf32>
    %870 = vector.shape_cast %869 : vector<1x64x192xf32> to vector<64x192xf32>
    %cst_258 = arith.constant dense<0.000000e+00> : vector<4x192xf32>
    %871 = tpu.matmul %868, %870, %cst_258 {dimension_numbers = #tpu.dot_dimension_numbers<[1], [0], [0], [1], [0, 0, 1, 1], [], []>} : vector<4x64xf32>, vector<64x192xf32>, vector<4x192xf32> -> vector<4x192xf32>
    %872 = arith.addf %871, %8 : vector<4x192xf32>
    %873 = vector.extract_strided_slice %872 {offsets = [0, 0], sizes = [4, 64], strides = [1, 1]} : vector<4x192xf32> to vector<4x64xf32>
    %874 = arith.mulf %873, %873 : vector<4x64xf32>
    %cst_259 = arith.constant dense<0.000000e+00> : vector<4xf32>
    %875 = vector.multi_reduction <add>, %874, %cst_259 [1] : vector<4x64xf32> to vector<4xf32>
    %876 = vector.shape_cast %875 : vector<4xf32> to vector<4x1xf32>
    %cst_260 = arith.constant 6.400000e+01 : f32
    %877 = vector.broadcast %cst_260 : f32 to vector<4x1xf32>
    %878 = arith.divf %876, %877 : vector<4x1xf32>
    %cst_261 = arith.constant 9.99999974E-6 : f32
    %879 = vector.broadcast %cst_261 : f32 to vector<4x1xf32>
    %880 = arith.addf %878, %879 : vector<4x1xf32>
    %881 = math.rsqrt %880 : vector<4x1xf32>
    %882 = vector.broadcast %881 : vector<4x1xf32> to vector<4x64xf32>
    %883 = arith.mulf %873, %882 : vector<4x64xf32>
    %884 = vector.extract_strided_slice %872 {offsets = [0, 64], sizes = [4, 64], strides = [1, 1]} : vector<4x192xf32> to vector<4x64xf32>
    %885 = arith.mulf %884, %884 : vector<4x64xf32>
    %cst_262 = arith.constant dense<0.000000e+00> : vector<4xf32>
    %886 = vector.multi_reduction <add>, %885, %cst_262 [1] : vector<4x64xf32> to vector<4xf32>
    %887 = vector.shape_cast %886 : vector<4xf32> to vector<4x1xf32>
    %cst_263 = arith.constant 6.400000e+01 : f32
    %888 = vector.broadcast %cst_263 : f32 to vector<4x1xf32>
    %889 = arith.divf %887, %888 : vector<4x1xf32>
    %cst_264 = arith.constant 9.99999974E-6 : f32
    %890 = vector.broadcast %cst_264 : f32 to vector<4x1xf32>
    %891 = arith.addf %889, %890 : vector<4x1xf32>
    %892 = math.rsqrt %891 : vector<4x1xf32>
    %893 = vector.broadcast %892 : vector<4x1xf32> to vector<4x64xf32>
    %894 = arith.mulf %884, %893 : vector<4x64xf32>
    %895 = arith.addf %883, %894 : vector<4x64xf32>
    %896 = arith.negf %895 : vector<4x64xf32>
    %897 = math.exp %896 : vector<4x64xf32>
    %cst_265 = arith.constant 1.000000e+00 : f32
    %898 = vector.broadcast %cst_265 : f32 to vector<4x64xf32>
    %899 = arith.addf %898, %897 : vector<4x64xf32>
    %900 = arith.divf %898, %899 : vector<4x64xf32>
    %901 = vector.extract_strided_slice %900 {offsets = [0, 0], sizes = [4, 32], strides = [1, 1]} : vector<4x64xf32> to vector<4x32xf32>
    %902 = vector.extract_strided_slice %900 {offsets = [0, 32], sizes = [4, 32], strides = [1, 1]} : vector<4x64xf32> to vector<4x32xf32>
    %903 = vector.extract_strided_slice %872 {offsets = [0, 128], sizes = [4, 32], strides = [1, 1]} : vector<4x192xf32> to vector<4x32xf32>
    %904 = arith.mulf %903, %903 : vector<4x32xf32>
    %cst_266 = arith.constant dense<0.000000e+00> : vector<4xf32>
    %905 = vector.multi_reduction <add>, %904, %cst_266 [1] : vector<4x32xf32> to vector<4xf32>
    %906 = vector.shape_cast %905 : vector<4xf32> to vector<4x1xf32>
    %cst_267 = arith.constant 3.200000e+01 : f32
    %907 = vector.broadcast %cst_267 : f32 to vector<4x1xf32>
    %908 = arith.divf %906, %907 : vector<4x1xf32>
    %cst_268 = arith.constant 9.99999974E-6 : f32
    %909 = vector.broadcast %cst_268 : f32 to vector<4x1xf32>
    %910 = arith.addf %908, %909 : vector<4x1xf32>
    %911 = math.rsqrt %910 : vector<4x1xf32>
    %912 = vector.broadcast %911 : vector<4x1xf32> to vector<4x32xf32>
    %913 = arith.mulf %903, %912 : vector<4x32xf32>
    %914 = vector.extract_strided_slice %872 {offsets = [0, 160], sizes = [4, 32], strides = [1, 1]} : vector<4x192xf32> to vector<4x32xf32>
    %915 = arith.mulf %914, %914 : vector<4x32xf32>
    %cst_269 = arith.constant dense<0.000000e+00> : vector<4xf32>
    %916 = vector.multi_reduction <add>, %915, %cst_269 [1] : vector<4x32xf32> to vector<4xf32>
    %917 = vector.shape_cast %916 : vector<4xf32> to vector<4x1xf32>
    %cst_270 = arith.constant 3.200000e+01 : f32
    %918 = vector.broadcast %cst_270 : f32 to vector<4x1xf32>
    %919 = arith.divf %917, %918 : vector<4x1xf32>
    %cst_271 = arith.constant 9.99999974E-6 : f32
    %920 = vector.broadcast %cst_271 : f32 to vector<4x1xf32>
    %921 = arith.addf %919, %920 : vector<4x1xf32>
    %922 = math.rsqrt %921 : vector<4x1xf32>
    %923 = vector.broadcast %922 : vector<4x1xf32> to vector<4x32xf32>
    %924 = arith.mulf %914, %923 : vector<4x32xf32>
    %925 = arith.mulf %902, %924 : vector<4x32xf32>
    %926 = arith.addf %913, %925 : vector<4x32xf32>
    %927 = math.tanh %926 : vector<4x32xf32>
    %cst_272 = arith.constant 1.000000e+00 : f32
    %928 = vector.broadcast %cst_272 : f32 to vector<4x32xf32>
    %929 = arith.subf %928, %901 : vector<4x32xf32>
    %930 = arith.mulf %929, %800 : vector<4x32xf32>
    %931 = arith.mulf %901, %927 : vector<4x32xf32>
    %932 = arith.addf %930, %931 : vector<4x32xf32>
    %c7 = arith.constant 7 : index
    %c0_273 = arith.constant 0 : index
    %c0_274 = arith.constant 0 : index
    %933 = vector.load %arg1[%c7, %c0_273, %c0_274] : memref<8x4x32xf32, #tpu.memory_space<vmem>>, vector<1x4x32xf32>
    %934 = vector.shape_cast %933 : vector<1x4x32xf32> to vector<4x32xf32>
    %935 = tpu.concatenate %934, %867 in 1 : vector<4x32xf32>, vector<4x32xf32> -> vector<4x64xf32>
    %c0_275 = arith.constant 0 : index
    %c0_276 = arith.constant 0 : index
    %c0_277 = arith.constant 0 : index
    %936 = vector.load %arg3[%c0_275, %c0_276, %c0_277] : memref<2x64x192xf32, #tpu.memory_space<vmem>>, vector<1x64x192xf32>
    %937 = vector.shape_cast %936 : vector<1x64x192xf32> to vector<64x192xf32>
    %cst_278 = arith.constant dense<0.000000e+00> : vector<4x192xf32>
    %938 = tpu.matmul %935, %937, %cst_278 {dimension_numbers = #tpu.dot_dimension_numbers<[1], [0], [0], [1], [0, 0, 1, 1], [], []>} : vector<4x64xf32>, vector<64x192xf32>, vector<4x192xf32> -> vector<4x192xf32>
    %939 = arith.addf %938, %4 : vector<4x192xf32>
    %940 = vector.extract_strided_slice %939 {offsets = [0, 0], sizes = [4, 64], strides = [1, 1]} : vector<4x192xf32> to vector<4x64xf32>
    %941 = arith.mulf %940, %940 : vector<4x64xf32>
    %cst_279 = arith.constant dense<0.000000e+00> : vector<4xf32>
    %942 = vector.multi_reduction <add>, %941, %cst_279 [1] : vector<4x64xf32> to vector<4xf32>
    %943 = vector.shape_cast %942 : vector<4xf32> to vector<4x1xf32>
    %cst_280 = arith.constant 6.400000e+01 : f32
    %944 = vector.broadcast %cst_280 : f32 to vector<4x1xf32>
    %945 = arith.divf %943, %944 : vector<4x1xf32>
    %cst_281 = arith.constant 9.99999974E-6 : f32
    %946 = vector.broadcast %cst_281 : f32 to vector<4x1xf32>
    %947 = arith.addf %945, %946 : vector<4x1xf32>
    %948 = math.rsqrt %947 : vector<4x1xf32>
    %949 = vector.broadcast %948 : vector<4x1xf32> to vector<4x64xf32>
    %950 = arith.mulf %940, %949 : vector<4x64xf32>
    %951 = vector.extract_strided_slice %939 {offsets = [0, 64], sizes = [4, 64], strides = [1, 1]} : vector<4x192xf32> to vector<4x64xf32>
    %952 = arith.mulf %951, %951 : vector<4x64xf32>
    %cst_282 = arith.constant dense<0.000000e+00> : vector<4xf32>
    %953 = vector.multi_reduction <add>, %952, %cst_282 [1] : vector<4x64xf32> to vector<4xf32>
    %954 = vector.shape_cast %953 : vector<4xf32> to vector<4x1xf32>
    %cst_283 = arith.constant 6.400000e+01 : f32
    %955 = vector.broadcast %cst_283 : f32 to vector<4x1xf32>
    %956 = arith.divf %954, %955 : vector<4x1xf32>
    %cst_284 = arith.constant 9.99999974E-6 : f32
    %957 = vector.broadcast %cst_284 : f32 to vector<4x1xf32>
    %958 = arith.addf %956, %957 : vector<4x1xf32>
    %959 = math.rsqrt %958 : vector<4x1xf32>
    %960 = vector.broadcast %959 : vector<4x1xf32> to vector<4x64xf32>
    %961 = arith.mulf %951, %960 : vector<4x64xf32>
    %962 = arith.addf %950, %961 : vector<4x64xf32>
    %963 = arith.negf %962 : vector<4x64xf32>
    %964 = math.exp %963 : vector<4x64xf32>
    %cst_285 = arith.constant 1.000000e+00 : f32
    %965 = vector.broadcast %cst_285 : f32 to vector<4x64xf32>
    %966 = arith.addf %965, %964 : vector<4x64xf32>
    %967 = arith.divf %965, %966 : vector<4x64xf32>
    %968 = vector.extract_strided_slice %967 {offsets = [0, 0], sizes = [4, 32], strides = [1, 1]} : vector<4x64xf32> to vector<4x32xf32>
    %969 = vector.extract_strided_slice %967 {offsets = [0, 32], sizes = [4, 32], strides = [1, 1]} : vector<4x64xf32> to vector<4x32xf32>
    %970 = vector.extract_strided_slice %939 {offsets = [0, 128], sizes = [4, 32], strides = [1, 1]} : vector<4x192xf32> to vector<4x32xf32>
    %971 = arith.mulf %970, %970 : vector<4x32xf32>
    %cst_286 = arith.constant dense<0.000000e+00> : vector<4xf32>
    %972 = vector.multi_reduction <add>, %971, %cst_286 [1] : vector<4x32xf32> to vector<4xf32>
    %973 = vector.shape_cast %972 : vector<4xf32> to vector<4x1xf32>
    %cst_287 = arith.constant 3.200000e+01 : f32
    %974 = vector.broadcast %cst_287 : f32 to vector<4x1xf32>
    %975 = arith.divf %973, %974 : vector<4x1xf32>
    %cst_288 = arith.constant 9.99999974E-6 : f32
    %976 = vector.broadcast %cst_288 : f32 to vector<4x1xf32>
    %977 = arith.addf %975, %976 : vector<4x1xf32>
    %978 = math.rsqrt %977 : vector<4x1xf32>
    %979 = vector.broadcast %978 : vector<4x1xf32> to vector<4x32xf32>
    %980 = arith.mulf %970, %979 : vector<4x32xf32>
    %981 = vector.extract_strided_slice %939 {offsets = [0, 160], sizes = [4, 32], strides = [1, 1]} : vector<4x192xf32> to vector<4x32xf32>
    %982 = arith.mulf %981, %981 : vector<4x32xf32>
    %cst_289 = arith.constant dense<0.000000e+00> : vector<4xf32>
    %983 = vector.multi_reduction <add>, %982, %cst_289 [1] : vector<4x32xf32> to vector<4xf32>
    %984 = vector.shape_cast %983 : vector<4xf32> to vector<4x1xf32>
    %cst_290 = arith.constant 3.200000e+01 : f32
    %985 = vector.broadcast %cst_290 : f32 to vector<4x1xf32>
    %986 = arith.divf %984, %985 : vector<4x1xf32>
    %cst_291 = arith.constant 9.99999974E-6 : f32
    %987 = vector.broadcast %cst_291 : f32 to vector<4x1xf32>
    %988 = arith.addf %986, %987 : vector<4x1xf32>
    %989 = math.rsqrt %988 : vector<4x1xf32>
    %990 = vector.broadcast %989 : vector<4x1xf32> to vector<4x32xf32>
    %991 = arith.mulf %981, %990 : vector<4x32xf32>
    %992 = arith.mulf %969, %991 : vector<4x32xf32>
    %993 = arith.addf %980, %992 : vector<4x32xf32>
    %994 = math.tanh %993 : vector<4x32xf32>
    %cst_292 = arith.constant 1.000000e+00 : f32
    %995 = vector.broadcast %cst_292 : f32 to vector<4x32xf32>
    %996 = arith.subf %995, %968 : vector<4x32xf32>
    %997 = arith.mulf %996, %867 : vector<4x32xf32>
    %998 = arith.mulf %968, %994 : vector<4x32xf32>
    %999 = arith.addf %997, %998 : vector<4x32xf32>
    %1000 = tpu.concatenate %999, %932 in 1 : vector<4x32xf32>, vector<4x32xf32> -> vector<4x64xf32>
    %c1_293 = arith.constant 1 : index
    %c0_294 = arith.constant 0 : index
    %c0_295 = arith.constant 0 : index
    %1001 = vector.load %arg3[%c1_293, %c0_294, %c0_295] : memref<2x64x192xf32, #tpu.memory_space<vmem>>, vector<1x64x192xf32>
    %1002 = vector.shape_cast %1001 : vector<1x64x192xf32> to vector<64x192xf32>
    %cst_296 = arith.constant dense<0.000000e+00> : vector<4x192xf32>
    %1003 = tpu.matmul %1000, %1002, %cst_296 {dimension_numbers = #tpu.dot_dimension_numbers<[1], [0], [0], [1], [0, 0, 1, 1], [], []>} : vector<4x64xf32>, vector<64x192xf32>, vector<4x192xf32> -> vector<4x192xf32>
    %1004 = arith.addf %1003, %8 : vector<4x192xf32>
    %1005 = vector.extract_strided_slice %1004 {offsets = [0, 0], sizes = [4, 64], strides = [1, 1]} : vector<4x192xf32> to vector<4x64xf32>
    %1006 = arith.mulf %1005, %1005 : vector<4x64xf32>
    %cst_297 = arith.constant dense<0.000000e+00> : vector<4xf32>
    %1007 = vector.multi_reduction <add>, %1006, %cst_297 [1] : vector<4x64xf32> to vector<4xf32>
    %1008 = vector.shape_cast %1007 : vector<4xf32> to vector<4x1xf32>
    %cst_298 = arith.constant 6.400000e+01 : f32
    %1009 = vector.broadcast %cst_298 : f32 to vector<4x1xf32>
    %1010 = arith.divf %1008, %1009 : vector<4x1xf32>
    %cst_299 = arith.constant 9.99999974E-6 : f32
    %1011 = vector.broadcast %cst_299 : f32 to vector<4x1xf32>
    %1012 = arith.addf %1010, %1011 : vector<4x1xf32>
    %1013 = math.rsqrt %1012 : vector<4x1xf32>
    %1014 = vector.broadcast %1013 : vector<4x1xf32> to vector<4x64xf32>
    %1015 = arith.mulf %1005, %1014 : vector<4x64xf32>
    %1016 = vector.extract_strided_slice %1004 {offsets = [0, 64], sizes = [4, 64], strides = [1, 1]} : vector<4x192xf32> to vector<4x64xf32>
    %1017 = arith.mulf %1016, %1016 : vector<4x64xf32>
    %cst_300 = arith.constant dense<0.000000e+00> : vector<4xf32>
    %1018 = vector.multi_reduction <add>, %1017, %cst_300 [1] : vector<4x64xf32> to vector<4xf32>
    %1019 = vector.shape_cast %1018 : vector<4xf32> to vector<4x1xf32>
    %cst_301 = arith.constant 6.400000e+01 : f32
    %1020 = vector.broadcast %cst_301 : f32 to vector<4x1xf32>
    %1021 = arith.divf %1019, %1020 : vector<4x1xf32>
    %cst_302 = arith.constant 9.99999974E-6 : f32
    %1022 = vector.broadcast %cst_302 : f32 to vector<4x1xf32>
    %1023 = arith.addf %1021, %1022 : vector<4x1xf32>
    %1024 = math.rsqrt %1023 : vector<4x1xf32>
    %1025 = vector.broadcast %1024 : vector<4x1xf32> to vector<4x64xf32>
    %1026 = arith.mulf %1016, %1025 : vector<4x64xf32>
    %1027 = arith.addf %1015, %1026 : vector<4x64xf32>
    %1028 = arith.negf %1027 : vector<4x64xf32>
    %1029 = math.exp %1028 : vector<4x64xf32>
    %cst_303 = arith.constant 1.000000e+00 : f32
    %1030 = vector.broadcast %cst_303 : f32 to vector<4x64xf32>
    %1031 = arith.addf %1030, %1029 : vector<4x64xf32>
    %1032 = arith.divf %1030, %1031 : vector<4x64xf32>
    %1033 = vector.extract_strided_slice %1032 {offsets = [0, 0], sizes = [4, 32], strides = [1, 1]} : vector<4x64xf32> to vector<4x32xf32>
    %1034 = vector.extract_strided_slice %1032 {offsets = [0, 32], sizes = [4, 32], strides = [1, 1]} : vector<4x64xf32> to vector<4x32xf32>
    %1035 = vector.extract_strided_slice %1004 {offsets = [0, 128], sizes = [4, 32], strides = [1, 1]} : vector<4x192xf32> to vector<4x32xf32>
    %1036 = arith.mulf %1035, %1035 : vector<4x32xf32>
    %cst_304 = arith.constant dense<0.000000e+00> : vector<4xf32>
    %1037 = vector.multi_reduction <add>, %1036, %cst_304 [1] : vector<4x32xf32> to vector<4xf32>
    %1038 = vector.shape_cast %1037 : vector<4xf32> to vector<4x1xf32>
    %cst_305 = arith.constant 3.200000e+01 : f32
    %1039 = vector.broadcast %cst_305 : f32 to vector<4x1xf32>
    %1040 = arith.divf %1038, %1039 : vector<4x1xf32>
    %cst_306 = arith.constant 9.99999974E-6 : f32
    %1041 = vector.broadcast %cst_306 : f32 to vector<4x1xf32>
    %1042 = arith.addf %1040, %1041 : vector<4x1xf32>
    %1043 = math.rsqrt %1042 : vector<4x1xf32>
    %1044 = vector.broadcast %1043 : vector<4x1xf32> to vector<4x32xf32>
    %1045 = arith.mulf %1035, %1044 : vector<4x32xf32>
    %1046 = vector.extract_strided_slice %1004 {offsets = [0, 160], sizes = [4, 32], strides = [1, 1]} : vector<4x192xf32> to vector<4x32xf32>
    %1047 = arith.mulf %1046, %1046 : vector<4x32xf32>
    %cst_307 = arith.constant dense<0.000000e+00> : vector<4xf32>
    %1048 = vector.multi_reduction <add>, %1047, %cst_307 [1] : vector<4x32xf32> to vector<4xf32>
    %1049 = vector.shape_cast %1048 : vector<4xf32> to vector<4x1xf32>
    %cst_308 = arith.constant 3.200000e+01 : f32
    %1050 = vector.broadcast %cst_308 : f32 to vector<4x1xf32>
    %1051 = arith.divf %1049, %1050 : vector<4x1xf32>
    %cst_309 = arith.constant 9.99999974E-6 : f32
    %1052 = vector.broadcast %cst_309 : f32 to vector<4x1xf32>
    %1053 = arith.addf %1051, %1052 : vector<4x1xf32>
    %1054 = math.rsqrt %1053 : vector<4x1xf32>
    %1055 = vector.broadcast %1054 : vector<4x1xf32> to vector<4x32xf32>
    %1056 = arith.mulf %1046, %1055 : vector<4x32xf32>
    %1057 = arith.mulf %1034, %1056 : vector<4x32xf32>
    %1058 = arith.addf %1045, %1057 : vector<4x32xf32>
    %1059 = math.tanh %1058 : vector<4x32xf32>
    %cst_310 = arith.constant 1.000000e+00 : f32
    %1060 = vector.broadcast %cst_310 : f32 to vector<4x32xf32>
    %1061 = arith.subf %1060, %1033 : vector<4x32xf32>
    %1062 = arith.mulf %1061, %932 : vector<4x32xf32>
    %1063 = arith.mulf %1033, %1059 : vector<4x32xf32>
    %1064 = arith.addf %1062, %1063 : vector<4x32xf32>
    %1065 = tpu.concatenate %140, %272, %404, %536, %668, %800, %932, %1064 in 1 : vector<4x32xf32>, vector<4x32xf32>, vector<4x32xf32>, vector<4x32xf32>, vector<4x32xf32>, vector<4x32xf32>, vector<4x32xf32>, vector<4x32xf32> -> vector<4x256xf32>
    %c0_311 = arith.constant 0 : index
    %c0_312 = arith.constant 0 : index
    %1066 = vector.load %arg5[%c0_311, %c0_312] : memref<256x8xf32, #tpu.memory_space<vmem>>, vector<256x8xf32>
    %cst_313 = arith.constant dense<0.000000e+00> : vector<4x8xf32>
    %1067 = tpu.matmul %1065, %1066, %cst_313 {dimension_numbers = #tpu.dot_dimension_numbers<[1], [0], [0], [1], [0, 0, 1, 1], [], []>} : vector<4x256xf32>, vector<256x8xf32>, vector<4x8xf32> -> vector<4x8xf32>
    %c0_314 = arith.constant 0 : index
    %c0_315 = arith.constant 0 : index
    %1068 = vector.load %arg6[%c0_314, %c0_315] : memref<1x1xf32, #tpu.memory_space<vmem>>, vector<1x1xf32>
    %1069 = vector.broadcast %1068 : vector<1x1xf32> to vector<4x8xf32>
    %1070 = arith.addf %1067, %1069 : vector<4x8xf32>
    %c0_316 = arith.constant 0 : index
    %c0_317 = arith.constant 0 : index
    %1071 = vector.load %arg7[%c0_316, %c0_317] : memref<4x8xf32, #tpu.memory_space<vmem>>, vector<4x8xf32>
    tpu.vector_store %arg7[%c0_316, %c0_317], %1070 {strides = array<i32>} : memref<4x8xf32, #tpu.memory_space<vmem>>, vector<4x8xf32>,
    return
  }
  func.func @transform_0(%arg0: i32) -> (i32, i32, i32) {
    %c0_i32 = arith.constant 0 : i32
    %c0_i32_0 = arith.constant 0 : i32
    %c0_i32_1 = arith.constant 0 : i32
    %c0_i32_2 = arith.constant 0 : i32
    return %c0_i32, %c0_i32_0, %c0_i32_1 : i32, i32, i32
  }
  func.func @transform_1(%arg0: i32) -> (i32, i32) {
    %c0_i32 = arith.constant 0 : i32
    %c0_i32_0 = arith.constant 0 : i32
    %c0_i32_1 = arith.constant 0 : i32
    return %c0_i32, %c0_i32_0 : i32, i32
  }
  func.func @transform_2(%arg0: i32) -> (i32, i32, i32) {
    %c0_i32 = arith.constant 0 : i32
    %c0_i32_0 = arith.constant 0 : i32
    %c0_i32_1 = arith.constant 0 : i32
    %c0_i32_2 = arith.constant 0 : i32
    return %c0_i32, %c0_i32_0, %c0_i32_1 : i32, i32, i32
  }
  func.func @transform_3(%arg0: i32) -> (i32, i32, i32) {
    %c0_i32 = arith.constant 0 : i32
    %c0_i32_0 = arith.constant 0 : i32
    %c0_i32_1 = arith.constant 0 : i32
    %c0_i32_2 = arith.constant 0 : i32
    return %c0_i32, %c0_i32_0, %c0_i32_1 : i32, i32, i32
  }
  func.func @transform_4(%arg0: i32) -> (i32, i32) {
    %c0_i32 = arith.constant 0 : i32
    %c0_i32_0 = arith.constant 0 : i32
    %c0_i32_1 = arith.constant 0 : i32
    return %c0_i32, %c0_i32_0 : i32, i32
  }
  func.func @transform_5(%arg0: i32) -> (i32, i32) {
    %c0_i32 = arith.constant 0 : i32
    %c0_i32_0 = arith.constant 0 : i32
    %c0_i32_1 = arith.constant 0 : i32
    return %c0_i32, %c0_i32_0 : i32, i32
  }
  func.func @transform_6(%arg0: i32) -> (i32, i32) {
    %c0_i32 = arith.constant 0 : i32
    %c0_i32_0 = arith.constant 0 : i32
    %c0_i32_1 = arith.constant 0 : i32
    return %c0_i32, %c0_i32_0 : i32, i32
  }
}

</mosaic_0001>

<llo_original>
// kernel: tpu_custom_call.1
$region0: #{tpu_custom_call.1}
  #allocation0 [shape = 'u32[]', space=smem, size = 0x4, offset = 0x4, fixed_abs, tag = 'smem constant byte address 0x4 - core index']
  #allocation1 [shape = 'u32[144,128]{1,0:T(1,128)}', space=vmem, size = 0x12000, scoped, tag = 'internal scratch']
  #allocation2 [shape = 'f32[1,1]{1,0:T(1,128)S(1)}', space=vmem, size = 0x200, scoped, tag = 'scoped memory for tpu_custom_call.1']
  %s0 = inlined_call_operand.hbm [shape: f32[8,4,32], index: 0, kind: input, shape index: {}]
  %s1 = inlined_call_operand.vmem [shape: f32[4,32], index: 1, kind: input, shape index: {}]
  %s2 = inlined_call_operand.vmem [shape: f32[2,64,192], index: 2, kind: input, shape index: {}]
  %s3 = inlined_call_operand.vmem [shape: f32[2,1,192], index: 3, kind: input, shape index: {}]
  %s4 = inlined_call_operand.vmem [shape: f32[256,8], index: 4, kind: input, shape index: {}]
  %s5 = inlined_call_operand.<no memory space> [shape: f32[1,1], index: 5, kind: input, shape index: {}]
  %s6 = inlined_call_operand.hbm [shape: f32[4,8], index: 6, kind: output, shape index: {}]
  %s7 = sld [smem:[#allocation0]]
  $region38: #{tpu_custom_call.1} parent=0
    _
  %s9 = ssub.s32 1, %s7
  %s10 = scalar_select 0, %s9, %s7
  %v11 = vstv %s5
  %12 = vst [vmem:[#allocation2] sm:$0x1] %v11
  $region1: #{tpu_custom_call.1} parent=0
    #allocation3 [shape = 'u8[16384]{0}', space=vmem, size = 0x4000, scoped, tag = 'input window, operand 0, single buffered']
    #allocation4 [shape = 's32[1]{0}', space=sflag, size = 0x4, scoped, tag = 'scoped memory for tpu_custom_call.1']
    #allocation5 [shape = 's32[1]{0}', space=sflag, size = 0x4, scoped, tag = 'scoped memory for tpu_custom_call.1']
    #allocation6 [shape = 'u8[2048]{0}', space=vmem, size = 0x800, scoped, tag = 'output window, operand 0, single buffered']
    %13 = vsyncpa [#allocation4], 0
    %14 = vsyncpa [#allocation5], 0
    // Predicated region
    $region2: #{tpu_custom_call.1} parent=1 // pred_check
      _
    $region3: #{tpu_custom_call.1} parent=1 // pred_check_branch
      %16 = sbr.rel (0) target = $region5
    $region4: #{tpu_custom_call.1} parent=1 // pred_region
      %s18 = ssub.s32 512, 512
      %19 = vsyncadd [#allocation4], %s18
      %s20 = sshll.u32 [#allocation3], 4
      %s21 = int_to_ptr.vmem [resolvable:$true] %s20
      %26 = dma.hbm_to_vmem [thread:$0]  %s0, 512, %s21, [#allocation4], 64, 64, 4
    $region5: #{tpu_custom_call.1} parent=1 // pred_fallthru
      _
    // Predicated region
    $region6: #{tpu_custom_call.1} parent=1 // pred_check
      _
    $region7: #{tpu_custom_call.1} parent=1 // pred_check_branch
      %28 = sbr.rel (0) target = $region9
    $region8: #{tpu_custom_call.1} parent=1 // pred_region
      _
    $region9: #{tpu_custom_call.1} parent=1 // pred_fallthru
      _
    // Predicated region
    $region10: #{tpu_custom_call.1} parent=1 // pred_check
      _
    $region11: #{tpu_custom_call.1} parent=1 // pred_check_branch
      %30 = sbr.rel (0) target = $region13
    $region12: #{tpu_custom_call.1} parent=1 // pred_region
      _
    $region13: #{tpu_custom_call.1} parent=1 // pred_fallthru
      _
    // Predicated region
    $region14: #{tpu_custom_call.1} parent=1 // pred_check
      _
    $region15: #{tpu_custom_call.1} parent=1 // pred_check_branch
      %32 = sbr.rel (0) target = $region17
    $region16: #{tpu_custom_call.1} parent=1 // pred_region
      _
    $region17: #{tpu_custom_call.1} parent=1 // pred_fallthru
      _
    // Predicated region
    $region18: #{tpu_custom_call.1} parent=1 // pred_check
      _
    $region19: #{tpu_custom_call.1} parent=1 // pred_check_branch
      %34 = sbr.rel (0) target = $region21
    $region20: #{tpu_custom_call.1} parent=1 // pred_region
      _
    $region21: #{tpu_custom_call.1} parent=1 // pred_fallthru
      _
    // Predicated region
    $region22: #{tpu_custom_call.1} parent=1 // pred_check
      _
    $region23: #{tpu_custom_call.1} parent=1 // pred_check_branch
      %36 = sbr.rel (0) target = $region25
    $region24: #{tpu_custom_call.1} parent=1 // pred_region
      _
    $region25: #{tpu_custom_call.1} parent=1 // pred_fallthru
      _
    // Predicated region
    $region26: #{tpu_custom_call.1} parent=1 // pred_check
      _
    $region27: #{tpu_custom_call.1} parent=1 // pred_check_branch
      %38 = sbr.rel (0) target = $region29
    $region28: #{tpu_custom_call.1} parent=1 // pred_region
      %39 = dma.done [#allocation4], 512
    $region29: #{tpu_custom_call.1} parent=1 // pred_fallthru
      _
    %v40 = vld [vmem:[%s1] sm:$0xf]
    %v41 = vld [vmem:[%s3] sm:$0x3]
    %v43 = vlaneseq
    %v44 = vshrl.u32 %v43, 7
    %v45 = vsub.s32 0, %v44
    %v46 = vrot.slane %v41, %v45
    %v47 = vlaneseq
    %v48 = vshrl.u32 %v47, 7
    %v49 = vsub.s32 1, %v48
    %v50 = vrot.slane %v41, %v49
    %s53 = scalar_lea.vmem %s3, 2
    %v54 = vld [vmem:[%s53] sm:$0x3]
    %v56 = vlaneseq
    %v57 = vshrl.u32 %v56, 7
    %v58 = vsub.s32 0, %v57
    %v59 = vrot.slane %v54, %v58
    %v60 = vlaneseq
    %v61 = vshrl.u32 %v60, 7
    %v62 = vsub.s32 1, %v61
    %v63 = vrot.slane %v54, %v62
    %v66 = vld [vmem:[#allocation3] sm:$0xf]
    %68 = vrot.lane.b32.xlu0 %v40, 32
    %v69 = vpop.permute.xlu0 %68
    %vm71 = vcmask 261120
    %v72 = vsel %vm71, %v66, %v69
    %v73 = vld [vmem:[%s2] sm:$0xff]
    %v74 = vld [vmem:[%s2 + $0x8] sm:$0xff]
    %v75 = vld [vmem:[%s2 + $0x10] sm:$0xff]
    %v76 = vld [vmem:[%s2 + $0x18] sm:$0xff]
    %v77 = vld [vmem:[%s2 + $0x20] sm:$0xff]
    %v78 = vld [vmem:[%s2 + $0x28] sm:$0xff]
    %v79 = vld [vmem:[%s2 + $0x30] sm:$0xff]
    %v80 = vld [vmem:[%s2 + $0x38] sm:$0xff]
    %v81 = vld [vmem:[%s2 + $0x40] sm:$0xff]
    %v82 = vld [vmem:[%s2 + $0x48] sm:$0xff]
    %v83 = vld [vmem:[%s2 + $0x50] sm:$0xff]
    %v84 = vld [vmem:[%s2 + $0x58] sm:$0xff]
    %v85 = vld [vmem:[%s2 + $0x60] sm:$0xff]
    %v86 = vld [vmem:[%s2 + $0x68] sm:$0xff]
    %v87 = vld [vmem:[%s2 + $0x70] sm:$0xff]
    %v88 = vld [vmem:[%s2 + $0x78] sm:$0xff]
    %vm89 = vcmask 523264
    %v91 = vsel %vm89, %v72, 0
    %93 = vmatprep.subr.mxu0 %v74
    %94 = vmatpush1.msra.mxu0 %v73
    %95 = vmatprep.subr.mxu0 %v76
    %96 = vmatpush1.msra.mxu0 %v75
    %97 = vmatprep.subr.mxu0 %v78
    %98 = vmatpush1.msra.mxu0 %v77
    %99 = vmatprep.subr.mxu0 %v80
    %100 = vmatpush1.msra.mxu0 %v79
    %101 = vmatprep.subr.mxu0 %v82
    %102 = vmatpush1.msra.mxu0 %v81
    %103 = vmatprep.subr.mxu0 %v84
    %104 = vmatpush1.msra.mxu0 %v83
    %105 = vmatprep.subr.mxu0 %v86
    %106 = vmatpush1.msra.mxu0 %v85
    %107 = vmatprep.subr.mxu0 %v88
    %108 = vmatpush1.msra.mxu0 %v87
    %109 = vmatprep.subr.mxu0 0.0
    %110 = vmatpush1.msra.mxu0 0.0
    %111 = vmatprep.subr.mxu0 0.0
    %112 = vmatpush1.msra.mxu0 0.0
    %113 = vmatprep.subr.mxu0 0.0
    %114 = vmatpush1.msra.mxu0 0.0
    %115 = vmatprep.subr.mxu0 0.0
    %116 = vmatpush1.msra.mxu0 0.0
    %117 = vmatprep.subr.mxu0 0.0
    %118 = vmatpush1.msra.mxu0 0.0
    %119 = vmatprep.subr.mxu0 0.0
    %120 = vmatpush1.msra.mxu0 0.0
    %121 = vmatprep.subr.mxu0 0.0
    %122 = vmatpush1.msra.mxu0 0.0
    %123 = vmatprep.subr.mxu0 0.0
    %124 = vmatpush1.msra.mxu0 0.0
    %125 = vmatprep.subr.mxu0 0.0
    %126 = vmatpush1.msra.mxu0 0.0
    %127 = vmatprep.subr.mxu0 0.0
    %128 = vmatpush1.msra.mxu0 0.0
    %129 = vmatprep.subr.mxu0 0.0
    %130 = vmatpush1.msra.mxu0 0.0
    %131 = vmatprep.subr.mxu0 0.0
    %132 = vmatpush1.msra.mxu0 0.0
    %133 = vmatprep.subr.mxu0 0.0
    %134 = vmatpush1.msra.mxu0 0.0
    %135 = vmatprep.subr.mxu0 0.0
    %136 = vmatpush1.msra.mxu0 0.0
    %137 = vmatprep.subr.mxu0 0.0
    %138 = vmatpush1.msra.mxu0 0.0
    %139 = vmatprep.subr.mxu0 0.0
    %140 = vmatpush1.msra.mxu0 0.0
    %141 = vmatprep.subr.mxu0 0.0
    %142 = vmatpush1.msra.mxu0 0.0
    %143 = vmatprep.subr.mxu0 0.0
    %144 = vmatpush1.msra.mxu0 0.0
    %145 = vmatprep.subr.mxu0 0.0
    %146 = vmatpush1.msra.mxu0 0.0
    %147 = vmatprep.subr.mxu0 0.0
    %148 = vmatpush1.msra.mxu0 0.0
    %149 = vmatprep.subr.mxu0 0.0
    %150 = vmatpush1.msra.mxu0 0.0
    %151 = vmatprep.subr.mxu0 0.0
    %152 = vmatpush1.msra.mxu0 0.0
    %153 = vmatprep.subr.mxu0 0.0
    %154 = vmatpush1.msra.mxu0 0.0
    %155 = vmatprep.subr.mxu0 0.0
    %156 = vmatpush1.msra.mxu0 0.0
    %157 = vmatprep.mubr.f32.mxu0 0.0
    %158 = vmatmul.mubr.f32.gmra.mrb[0].mxu0 %v91
    %v159 = vpop.f32.mrb[0].mxu0
    %v160 = vadd.f32 %v46, %v159
    %v161 = vpop.f32.mrb[0].mxu0
    %v162 = vadd.f32 %v50, %v161
    %163 = vdwg.mxu0
    %v164 = vmul.f32 %v160, %v160
    %vm165 = vcmask 519168
    %v166 = vsel %vm165, %v164, 0.0
    %167 = vadd.xlane.f32.xlu0 %v166
    %v168 = vpop.xlane.xlu0 %167
    %v169 = vrcp.pop 64.0
    %v170 = vmul.f32 %v168, %v169
    %v171 = vadd.f32 %v170, 1e-05
    %v172 = vrsqrt.pop %v171
    %v173 = vmul.f32 %v160, %v172
    %175 = vrot.lane.b32.xlu0 %v164, 64
    %v176 = vpop.permute.xlu0 %175
    %v178 = vsel %vm165, %v176, 0.0
    %179 = vadd.xlane.f32.xlu0 %v178
    %v180 = vpop.xlane.xlu0 %179
    %v181 = vmul.f32 %v180, %v169
    %v182 = vadd.f32 %v181, 1e-05
    %v183 = vrsqrt.pop %v182
    %v184 = vmul.f32 %v160, %v183
    %186 = vrot.lane.b32.xlu0 %v184, 64
    %v187 = vpop.permute.xlu0 %186
    %v189 = vadd.f32 %v173, %v187
    %v190 = vxor.u32 %v189, 2147483648
    %v191 = vmul.f32 %v190, 1.442695
    %v192 = vpow.pop %v191
    %v193 = vadd.f32 %v192, 1.0
    %v194 = vrcp.pop %v193
    %v195 = vmul.f32 1.0, %v194
    %v196 = vmul.f32 %v162, %v162
    %vm197 = vcmask 257024
    %v198 = vsel %vm197, %v196, 0.0
    %199 = vadd.xlane.f32.xlu0 %v198
    %v200 = vpop.xlane.xlu0 %199
    %v201 = vrcp.pop 32.0
    %v202 = vmul.f32 %v200, %v201
    %v203 = vadd.f32 %v202, 1e-05
    %v204 = vrsqrt.pop %v203
    %v205 = vmul.f32 %v162, %v204
    %207 = vrot.lane.b32.xlu0 %v196, 96
    %v208 = vpop.permute.xlu0 %207
    %v210 = vsel %vm197, %v208, 0.0
    %211 = vadd.xlane.f32.xlu0 %v210
    %v212 = vpop.xlane.xlu0 %211
    %v213 = vmul.f32 %v212, %v201
    %v214 = vadd.f32 %v213, 1e-05
    %v215 = vrsqrt.pop %v214
    %v216 = vmul.f32 %v162, %v215
    %v217 = vmul.f32 %v195, %v216
    %219 = vrot.lane.b32.xlu0 %v217, 96
    %v220 = vpop.permute.xlu0 %219
    %v222 = vadd.f32 %v205, %v220
    %v223 = vtanh.pop %v222
    %v224 = vsub.f32 1.0, %v195
    %v225 = vmul.f32 %v224, %v40
    %v226 = vmul.f32 %v195, %v223
    %v227 = vadd.f32 %v225, %v226
    %v228 = vsel %vm71, %v227, %v69
    %s229 = scalar_lea.vmem %s2, 128
    %v230 = vld [vmem:[%s229] sm:$0xff]
    %v231 = vld [vmem:[%s229 + $0x8] sm:$0xff]
    %v232 = vld [vmem:[%s229 + $0x10] sm:$0xff]
    %v233 = vld [vmem:[%s229 + $0x18] sm:$0xff]
    %v234 = vld [vmem:[%s229 + $0x20] sm:$0xff]
    %v235 = vld [vmem:[%s229 + $0x28] sm:$0xff]
    %v236 = vld [vmem:[%s229 + $0x30] sm:$0xff]
    %v237 = vld [vmem:[%s229 + $0x38] sm:$0xff]
    %v238 = vld [vmem:[%s229 + $0x40] sm:$0xff]
    %v239 = vld [vmem:[%s229 + $0x48] sm:$0xff]
    %v240 = vld [vmem:[%s229 + $0x50] sm:$0xff]
    %v241 = vld [vmem:[%s229 + $0x58] sm:$0xff]
    %v242 = vld [vmem:[%s229 + $0x60] sm:$0xff]
    %v243 = vld [vmem:[%s229 + $0x68] sm:$0xff]
    %v244 = vld [vmem:[%s229 + $0x70] sm:$0xff]
    %v245 = vld [vmem:[%s229 + $0x78] sm:$0xff]
    %v247 = vsel %vm89, %v228, 0
    %249 = vmatprep.subr.mxu0 %v231
    %250 = vmatpush1.msra.mxu0 %v230
    %251 = vmatprep.subr.mxu0 %v233
    %252 = vmatpush1.msra.mxu0 %v232
    %253 = vmatprep.subr.mxu0 %v235
    %254 = vmatpush1.msra.mxu0 %v234
    %255 = vmatprep.subr.mxu0 %v237
    %256 = vmatpush1.msra.mxu0 %v236
    %257 = vmatprep.subr.mxu0 %v239
    %258 = vmatpush1.msra.mxu0 %v238
    %259 = vmatprep.subr.mxu0 %v241
    %260 = vmatpush1.msra.mxu0 %v240
    %261 = vmatprep.subr.mxu0 %v243
    %262 = vmatpush1.msra.mxu0 %v242
    %263 = vmatprep.subr.mxu0 %v245
    %264 = vmatpush1.msra.mxu0 %v244
    %265 = vmatprep.subr.mxu0 0.0
    %266 = vmatpush1.msra.mxu0 0.0
    %267 = vmatprep.subr.mxu0 0.0
    %268 = vmatpush1.msra.mxu0 0.0
    %269 = vmatprep.subr.mxu0 0.0
    %270 = vmatpush1.msra.mxu0 0.0
    %271 = vmatprep.subr.mxu0 0.0
    %272 = vmatpush1.msra.mxu0 0.0
    %273 = vmatprep.subr.mxu0 0.0
    %274 = vmatpush1.msra.mxu0 0.0
    %275 = vmatprep.subr.mxu0 0.0
    %276 = vmatpush1.msra.mxu0 0.0
    %277 = vmatprep.subr.mxu0 0.0
    %278 = vmatpush1.msra.mxu0 0.0
    %279 = vmatprep.subr.mxu0 0.0
    %280 = vmatpush1.msra.mxu0 0.0
    %281 = vmatprep.subr.mxu0 0.0
    %282 = vmatpush1.msra.mxu0 0.0
    %283 = vmatprep.subr.mxu0 0.0
    %284 = vmatpush1.msra.mxu0 0.0
    %285 = vmatprep.subr.mxu0 0.0
    %286 = vmatpush1.msra.mxu0 0.0
    %287 = vmatprep.subr.mxu0 0.0
    %288 = vmatpush1.msra.mxu0 0.0
    %289 = vmatprep.subr.mxu0 0.0
    %290 = vmatpush1.msra.mxu0 0.0
    %291 = vmatprep.subr.mxu0 0.0
    %292 = vmatpush1.msra.mxu0 0.0
    %293 = vmatprep.subr.mxu0 0.0
    %294 = vmatpush1.msra.mxu0 0.0
    %295 = vmatprep.subr.mxu0 0.0
    %296 = vmatpush1.msra.mxu0 0.0
    %297 = vmatprep.subr.mxu0 0.0
    %298 = vmatpush1.msra.mxu0 0.0
    %299 = vmatprep.subr.mxu0 0.0
    %300 = vmatpush1.msra.mxu0 0.0
    %301 = vmatprep.subr.mxu0 0.0
    %302 = vmatpush1.msra.mxu0 0.0
    %303 = vmatprep.subr.mxu0 0.0
    %304 = vmatpush1.msra.mxu0 0.0
    %305 = vmatprep.subr.mxu0 0.0
    %306 = vmatpush1.msra.mxu0 0.0
    %307 = vmatprep.subr.mxu0 0.0
    %308 = vmatpush1.msra.mxu0 0.0
    %309 = vmatprep.subr.mxu0 0.0
    %310 = vmatpush1.msra.mxu0 0.0
    %311 = vmatprep.subr.mxu0 0.0
    %312 = vmatpush1.msra.mxu0 0.0
    %313 = vmatprep.mubr.f32.mxu0 0.0
    %314 = vmatmul.mubr.f32.gmra.mrb[0].mxu0 %v247
    %v315 = vpop.f32.mrb[0].mxu0
    %v316 = vadd.f32 %v59, %v315
    %v317 = vpop.f32.mrb[0].mxu0
    %v318 = vadd.f32 %v63, %v317
    %319 = vdwg.mxu0
    %v320 = vmul.f32 %v316, %v316
    %v321 = vsel %vm165, %v320, 0.0
    %322 = vadd.xlane.f32.xlu0 %v321
    %v323 = vpop.xlane.xlu0 %322
    %v324 = vmul.f32 %v323, %v169
    %v325 = vadd.f32 %v324, 1e-05
    %v326 = vrsqrt.pop %v325
    %v327 = vmul.f32 %v316, %v326
    %329 = vrot.lane.b32.xlu0 %v320, 64
    %v330 = vpop.permute.xlu0 %329
    %v332 = vsel %vm165, %v330, 0.0
    %333 = vadd.xlane.f32.xlu0 %v332
    %v334 = vpop.xlane.xlu0 %333
    %v335 = vmul.f32 %v334, %v169
    %v336 = vadd.f32 %v335, 1e-05
    %v337 = vrsqrt.pop %v336
    %v338 = vmul.f32 %v316, %v337
    %340 = vrot.lane.b32.xlu0 %v338, 64
    %v341 = vpop.permute.xlu0 %340
    %v343 = vadd.f32 %v327, %v341
    %v344 = vxor.u32 %v343, 2147483648
    %v345 = vmul.f32 %v344, 1.442695
    %v346 = vpow.pop %v345
    %v347 = vadd.f32 %v346, 1.0
    %v348 = vrcp.pop %v347
    %v349 = vmul.f32 1.0, %v348
    %v350 = vmul.f32 %v318, %v318
    %v351 = vsel %vm197, %v350, 0.0
    %352 = vadd.xlane.f32.xlu0 %v351
    %v353 = vpop.xlane.xlu0 %352
    %v354 = vmul.f32 %v353, %v201
    %v355 = vadd.f32 %v354, 1e-05
    %v356 = vrsqrt.pop %v355
    %v357 = vmul.f32 %v318, %v356
    %359 = vrot.lane.b32.xlu0 %v350, 96
    %v360 = vpop.permute.xlu0 %359
    %v362 = vsel %vm197, %v360, 0.0
    %363 = vadd.xlane.f32.xlu0 %v362
    %v364 = vpop.xlane.xlu0 %363
    %v365 = vmul.f32 %v364, %v201
    %v366 = vadd.f32 %v365, 1e-05
    %v367 = vrsqrt.pop %v366
    %v368 = vmul.f32 %v318, %v367
    %v369 = vmul.f32 %v349, %v368
    %371 = vrot.lane.b32.xlu0 %v369, 96
    %v372 = vpop.permute.xlu0 %371
    %v374 = vadd.f32 %v357, %v372
    %v375 = vtanh.pop %v374
    %v376 = vsub.f32 1.0, %v349
    %v377 = vmul.f32 %v376, %v40
    %v378 = vmul.f32 %v349, %v375
    %v379 = vadd.f32 %v377, %v378
    %s380 = scalar_lea.vmem [#allocation3], 4
    %v381 = vld [vmem:[%s380] sm:$0xf]
    %383 = vrot.lane.b32.xlu0 %v227, 32
    %v384 = vpop.permute.xlu0 %383
    %v386 = vsel %vm71, %v381, %v384
    %v388 = vsel %vm89, %v386, 0
    %390 = vmatprep.subr.mxu0 %v74
    %391 = vmatpush1.msra.mxu0 %v73
    %392 = vmatprep.subr.mxu0 %v76
    %393 = vmatpush1.msra.mxu0 %v75
    %394 = vmatprep.subr.mxu0 %v78
    %395 = vmatpush1.msra.mxu0 %v77
    %396 = vmatprep.subr.mxu0 %v80
    %397 = vmatpush1.msra.mxu0 %v79
    %398 = vmatprep.subr.mxu0 %v82
    %399 = vmatpush1.msra.mxu0 %v81
    %400 = vmatprep.subr.mxu0 %v84
    %401 = vmatpush1.msra.mxu0 %v83
    %402 = vmatprep.subr.mxu0 %v86
    %403 = vmatpush1.msra.mxu0 %v85
    %404 = vmatprep.subr.mxu0 %v88
    %405 = vmatpush1.msra.mxu0 %v87
    %406 = vmatprep.subr.mxu0 0.0
    %407 = vmatpush1.msra.mxu0 0.0
    %408 = vmatprep.subr.mxu0 0.0
    %409 = vmatpush1.msra.mxu0 0.0
    %410 = vmatprep.subr.mxu0 0.0
    %411 = vmatpush1.msra.mxu0 0.0
    %412 = vmatprep.subr.mxu0 0.0
    %413 = vmatpush1.msra.mxu0 0.0
    %414 = vmatprep.subr.mxu0 0.0
    %415 = vmatpush1.msra.mxu0 0.0
    %416 = vmatprep.subr.mxu0 0.0
    %417 = vmatpush1.msra.mxu0 0.0
    %418 = vmatprep.subr.mxu0 0.0
    %419 = vmatpush1.msra.mxu0 0.0
    %420 = vmatprep.subr.mxu0 0.0
    %421 = vmatpush1.msra.mxu0 0.0
    %422 = vmatprep.subr.mxu0 0.0
    %423 = vmatpush1.msra.mxu0 0.0
    %424 = vmatprep.subr.mxu0 0.0
    %425 = vmatpush1.msra.mxu0 0.0
    %426 = vmatprep.subr.mxu0 0.0
    %427 = vmatpush1.msra.mxu0 0.0
    %428 = vmatprep.subr.mxu0 0.0
    %429 = vmatpush1.msra.mxu0 0.0
    %430 = vmatprep.subr.mxu0 0.0
    %431 = vmatpush1.msra.mxu0 0.0
    %432 = vmatprep.subr.mxu0 0.0
    %433 = vmatpush1.msra.mxu0 0.0
    %434 = vmatprep.subr.mxu0 0.0
    %435 = vmatpush1.msra.mxu0 0.0
    %436 = vmatprep.subr.mxu0 0.0
    %437 = vmatpush1.msra.mxu0 0.0
    %438 = vmatprep.subr.mxu0 0.0
    %439 = vmatpush1.msra.mxu0 0.0
    %440 = vmatprep.subr.mxu0 0.0
    %441 = vmatpush1.msra.mxu0 0.0
    %442 = vmatprep.subr.mxu0 0.0
    %443 = vmatpush1.msra.mxu0 0.0
    %444 = vmatprep.subr.mxu0 0.0
    %445 = vmatpush1.msra.mxu0 0.0
    %446 = vmatprep.subr.mxu0 0.0
    %447 = vmatpush1.msra.mxu0 0.0
    %448 = vmatprep.subr.mxu0 0.0
    %449 = vmatpush1.msra.mxu0 0.0
    %450 = vmatprep.subr.mxu0 0.0
    %451 = vmatpush1.msra.mxu0 0.0
    %452 = vmatprep.subr.mxu0 0.0
    %453 = vmatpush1.msra.mxu0 0.0
    %454 = vmatprep.mubr.f32.mxu0 0.0
    %455 = vmatmul.mubr.f32.gmra.mrb[0].mxu0 %v388
    %v456 = vpop.f32.mrb[0].mxu0
    %v457 = vadd.f32 %v46, %v456
    %v458 = vpop.f32.mrb[0].mxu0
    %v459 = vadd.f32 %v50, %v458
    %460 = vdwg.mxu0
    %v461 = vmul.f32 %v457, %v457
    %v462 = vsel %vm165, %v461, 0.0
    %463 = vadd.xlane.f32.xlu0 %v462
    %v464 = vpop.xlane.xlu0 %463
    %v465 = vmul.f32 %v464, %v169
    %v466 = vadd.f32 %v465, 1e-05
    %v467 = vrsqrt.pop %v466
    %v468 = vmul.f32 %v457, %v467
    %470 = vrot.lane.b32.xlu0 %v461, 64
    %v471 = vpop.permute.xlu0 %470
    %v473 = vsel %vm165, %v471, 0.0
    %474 = vadd.xlane.f32.xlu0 %v473
    %v475 = vpop.xlane.xlu0 %474
    %v476 = vmul.f32 %v475, %v169
    %v477 = vadd.f32 %v476, 1e-05
    %v478 = vrsqrt.pop %v477
    %v479 = vmul.f32 %v457, %v478
    %481 = vrot.lane.b32.xlu0 %v479, 64
    %v482 = vpop.permute.xlu0 %481
    %v484 = vadd.f32 %v468, %v482
    %v485 = vxor.u32 %v484, 2147483648
    %v486 = vmul.f32 %v485, 1.442695
    %v487 = vpow.pop %v486
    %v488 = vadd.f32 %v487, 1.0
    %v489 = vrcp.pop %v488
    %v490 = vmul.f32 1.0, %v489
    %v491 = vmul.f32 %v459, %v459
    %v492 = vsel %vm197, %v491, 0.0
    %493 = vadd.xlane.f32.xlu0 %v492
    %v494 = vpop.xlane.xlu0 %493
    %v495 = vmul.f32 %v494, %v201
    %v496 = vadd.f32 %v495, 1e-05
    %v497 = vrsqrt.pop %v496
    %v498 = vmul.f32 %v459, %v497
    %500 = vrot.lane.b32.xlu0 %v491, 96
    %v501 = vpop.permute.xlu0 %500
    %v503 = vsel %vm197, %v501, 0.0
    %504 = vadd.xlane.f32.xlu0 %v503
    %v505 = vpop.xlane.xlu0 %504
    %v506 = vmul.f32 %v505, %v201
    %v507 = vadd.f32 %v506, 1e-05
    %v508 = vrsqrt.pop %v507
    %v509 = vmul.f32 %v459, %v508
    %v510 = vmul.f32 %v490, %v509
    %512 = vrot.lane.b32.xlu0 %v510, 96
    %v513 = vpop.permute.xlu0 %512
    %v515 = vadd.f32 %v498, %v513
    %v516 = vtanh.pop %v515
    %v517 = vsub.f32 1.0, %v490
    %v518 = vmul.f32 %v517, %v227
    %v519 = vmul.f32 %v490, %v516
    %v520 = vadd.f32 %v518, %v519
    %522 = vrot.lane.b32.xlu0 %v379, 32
    %v523 = vpop.permute.xlu0 %522
    %v525 = vsel %vm71, %v520, %v523
    %v527 = vsel %vm89, %v525, 0
    %529 = vmatprep.subr.mxu0 %v231
    %530 = vmatpush1.msra.mxu0 %v230
    %531 = vmatprep.subr.mxu0 %v233
    %532 = vmatpush1.msra.mxu0 %v232
    %533 = vmatprep.subr.mxu0 %v235
    %534 = vmatpush1.msra.mxu0 %v234
    %535 = vmatprep.subr.mxu0 %v237
    %536 = vmatpush1.msra.mxu0 %v236
    %537 = vmatprep.subr.mxu0 %v239
    %538 = vmatpush1.msra.mxu0 %v238
    %539 = vmatprep.subr.mxu0 %v241
    %540 = vmatpush1.msra.mxu0 %v240
    %541 = vmatprep.subr.mxu0 %v243
    %542 = vmatpush1.msra.mxu0 %v242
    %543 = vmatprep.subr.mxu0 %v245
    %544 = vmatpush1.msra.mxu0 %v244
    %545 = vmatprep.subr.mxu0 0.0
    %546 = vmatpush1.msra.mxu0 0.0
    %547 = vmatprep.subr.mxu0 0.0
    %548 = vmatpush1.msra.mxu0 0.0
    %549 = vmatprep.subr.mxu0 0.0
    %550 = vmatpush1.msra.mxu0 0.0
    %551 = vmatprep.subr.mxu0 0.0
    %552 = vmatpush1.msra.mxu0 0.0
    %553 = vmatprep.subr.mxu0 0.0
    %554 = vmatpush1.msra.mxu0 0.0
    %555 = vmatprep.subr.mxu0 0.0
    %556 = vmatpush1.msra.mxu0 0.0
    %557 = vmatprep.subr.mxu0 0.0
    %558 = vmatpush1.msra.mxu0 0.0
    %559 = vmatprep.subr.mxu0 0.0
    %560 = vmatpush1.msra.mxu0 0.0
    %561 = vmatprep.subr.mxu0 0.0
    %562 = vmatpush1.msra.mxu0 0.0
    %563 = vmatprep.subr.mxu0 0.0
    %564 = vmatpush1.msra.mxu0 0.0
    %565 = vmatprep.subr.mxu0 0.0
    %566 = vmatpush1.msra.mxu0 0.0
    %567 = vmatprep.subr.mxu0 0.0
    %568 = vmatpush1.msra.mxu0 0.0
    %569 = vmatprep.subr.mxu0 0.0
    %570 = vmatpush1.msra.mxu0 0.0
    %571 = vmatprep.subr.mxu0 0.0
    %572 = vmatpush1.msra.mxu0 0.0
    %573 = vmatprep.subr.mxu0 0.0
    %574 = vmatpush1.msra.mxu0 0.0
    %575 = vmatprep.subr.mxu0 0.0
    %576 = vmatpush1.msra.mxu0 0.0
    %577 = vmatprep.subr.mxu0 0.0
    %578 = vmatpush1.msra.mxu0 0.0
    %579 = vmatprep.subr.mxu0 0.0
    %580 = vmatpush1.msra.mxu0 0.0
    %581 = vmatprep.subr.mxu0 0.0
    %582 = vmatpush1.msra.mxu0 0.0
    %583 = vmatprep.subr.mxu0 0.0
    %584 = vmatpush1.msra.mxu0 0.0
    %585 = vmatprep.subr.mxu0 0.0
    %586 = vmatpush1.msra.mxu0 0.0
    %587 = vmatprep.subr.mxu0 0.0
    %588 = vmatpush1.msra.mxu0 0.0
    %589 = vmatprep.subr.mxu0 0.0
    %590 = vmatpush1.msra.mxu0 0.0
    %591 = vmatprep.subr.mxu0 0.0
    %592 = vmatpush1.msra.mxu0 0.0
    %593 = vmatprep.mubr.f32.mxu0 0.0
    %594 = vmatmul.mubr.f32.gmra.mrb[0].mxu0 %v527
    %v595 = vpop.f32.mrb[0].mxu0
    %v596 = vadd.f32 %v59, %v595
    %v597 = vpop.f32.mrb[0].mxu0
    %v598 = vadd.f32 %v63, %v597
    %599 = vdwg.mxu0
    %v600 = vmul.f32 %v596, %v596
    %v601 = vsel %vm165, %v600, 0.0
    %602 = vadd.xlane.f32.xlu0 %v601
    %v603 = vpop.xlane.xlu0 %602
    %v604 = vmul.f32 %v603, %v169
    %v605 = vadd.f32 %v604, 1e-05
    %v606 = vrsqrt.pop %v605
    %v607 = vmul.f32 %v596, %v606
    %609 = vrot.lane.b32.xlu0 %v600, 64
    %v610 = vpop.permute.xlu0 %609
    %v612 = vsel %vm165, %v610, 0.0
    %613 = vadd.xlane.f32.xlu0 %v612
    %v614 = vpop.xlane.xlu0 %613
    %v615 = vmul.f32 %v614, %v169
    %v616 = vadd.f32 %v615, 1e-05
    %v617 = vrsqrt.pop %v616
    %v618 = vmul.f32 %v596, %v617
    %620 = vrot.lane.b32.xlu0 %v618, 64
    %v621 = vpop.permute.xlu0 %620
    %v623 = vadd.f32 %v607, %v621
    %v624 = vxor.u32 %v623, 2147483648
    %v625 = vmul.f32 %v624, 1.442695
    %v626 = vpow.pop %v625
    %v627 = vadd.f32 %v626, 1.0
    %v628 = vrcp.pop %v627
    %v629 = vmul.f32 1.0, %v628
    %v630 = vmul.f32 %v598, %v598
    %v631 = vsel %vm197, %v630, 0.0
    %632 = vadd.xlane.f32.xlu0 %v631
    %v633 = vpop.xlane.xlu0 %632
    %v634 = vmul.f32 %v633, %v201
    %v635 = vadd.f32 %v634, 1e-05
    %v636 = vrsqrt.pop %v635
    %v637 = vmul.f32 %v598, %v636
    %639 = vrot.lane.b32.xlu0 %v630, 96
    %v640 = vpop.permute.xlu0 %639
    %v642 = vsel %vm197, %v640, 0.0
    %643 = vadd.xlane.f32.xlu0 %v642
    %v644 = vpop.xlane.xlu0 %643
    %v645 = vmul.f32 %v644, %v201
    %v646 = vadd.f32 %v645, 1e-05
    %v647 = vrsqrt.pop %v646
    %v648 = vmul.f32 %v598, %v647
    %v649 = vmul.f32 %v629, %v648
    %651 = vrot.lane.b32.xlu0 %v649, 96
    %v652 = vpop.permute.xlu0 %651
    %v654 = vadd.f32 %v637, %v652
    %v655 = vtanh.pop %v654
    %v656 = vsub.f32 1.0, %v629
    %v657 = vmul.f32 %v656, %v379
    %v658 = vmul.f32 %v629, %v655
    %v659 = vadd.f32 %v657, %v658
    %s660 = scalar_lea.vmem [#allocation3], 8
    %v661 = vld [vmem:[%s660] sm:$0xf]
    %663 = vrot.lane.b32.xlu0 %v520, 32
    %v664 = vpop.permute.xlu0 %663
    %v666 = vsel %vm71, %v661, %v664
    %v668 = vsel %vm89, %v666, 0
    %670 = vmatprep.subr.mxu0 %v74
    %671 = vmatpush1.msra.mxu0 %v73
    %672 = vmatprep.subr.mxu0 %v76
    %673 = vmatpush1.msra.mxu0 %v75
    %674 = vmatprep.subr.mxu0 %v78
    %675 = vmatpush1.msra.mxu0 %v77
    %676 = vmatprep.subr.mxu0 %v80
    %677 = vmatpush1.msra.mxu0 %v79
    %678 = vmatprep.subr.mxu0 %v82
    %679 = vmatpush1.msra.mxu0 %v81
    %680 = vmatprep.subr.mxu0 %v84
    %681 = vmatpush1.msra.mxu0 %v83
    %682 = vmatprep.subr.mxu0 %v86
    %683 = vmatpush1.msra.mxu0 %v85
    %684 = vmatprep.subr.mxu0 %v88
    %685 = vmatpush1.msra.mxu0 %v87
    %686 = vmatprep.subr.mxu0 0.0
    %687 = vmatpush1.msra.mxu0 0.0
    %688 = vmatprep.subr.mxu0 0.0
    %689 = vmatpush1.msra.mxu0 0.0
    %690 = vmatprep.subr.mxu0 0.0
    %691 = vmatpush1.msra.mxu0 0.0
    %692 = vmatprep.subr.mxu0 0.0
    %693 = vmatpush1.msra.mxu0 0.0
    %694 = vmatprep.subr.mxu0 0.0
    %695 = vmatpush1.msra.mxu0 0.0
    %696 = vmatprep.subr.mxu0 0.0
    %697 = vmatpush1.msra.mxu0 0.0
    %698 = vmatprep.subr.mxu0 0.0
    %699 = vmatpush1.msra.mxu0 0.0
    %700 = vmatprep.subr.mxu0 0.0
    %701 = vmatpush1.msra.mxu0 0.0
    %702 = vmatprep.subr.mxu0 0.0
    %703 = vmatpush1.msra.mxu0 0.0
    %704 = vmatprep.subr.mxu0 0.0
    %705 = vmatpush1.msra.mxu0 0.0
    %706 = vmatprep.subr.mxu0 0.0
    %707 = vmatpush1.msra.mxu0 0.0
    %708 = vmatprep.subr.mxu0 0.0
    %709 = vmatpush1.msra.mxu0 0.0
    %710 = vmatprep.subr.mxu0 0.0
    %711 = vmatpush1.msra.mxu0 0.0
    %712 = vmatprep.subr.mxu0 0.0
    %713 = vmatpush1.msra.mxu0 0.0
    %714 = vmatprep.subr.mxu0 0.0
    %715 = vmatpush1.msra.mxu0 0.0
    %716 = vmatprep.subr.mxu0 0.0
    %717 = vmatpush1.msra.mxu0 0.0
    %718 = vmatprep.subr.mxu0 0.0
    %719 = vmatpush1.msra.mxu0 0.0
    %720 = vmatprep.subr.mxu0 0.0
    %721 = vmatpush1.msra.mxu0 0.0
    %722 = vmatprep.subr.mxu0 0.0
    %723 = vmatpush1.msra.mxu0 0.0
    %724 = vmatprep.subr.mxu0 0.0
    %725 = vmatpush1.msra.mxu0 0.0
    %726 = vmatprep.subr.mxu0 0.0
    %727 = vmatpush1.msra.mxu0 0.0
    %728 = vmatprep.subr.mxu0 0.0
    %729 = vmatpush1.msra.mxu0 0.0
    %730 = vmatprep.subr.mxu0 0.0
    %731 = vmatpush1.msra.mxu0 0.0
    %732 = vmatprep.subr.mxu0 0.0
    %733 = vmatpush1.msra.mxu0 0.0
    %734 = vmatprep.mubr.f32.mxu0 0.0
    %735 = vmatmul.mubr.f32.gmra.mrb[0].mxu0 %v668
    %v736 = vpop.f32.mrb[0].mxu0
    %v737 = vadd.f32 %v46, %v736
    %v738 = vpop.f32.mrb[0].mxu0
    %v739 = vadd.f32 %v50, %v738
    %740 = vdwg.mxu0
    %v741 = vmul.f32 %v737, %v737
    %v742 = vsel %vm165, %v741, 0.0
    %743 = vadd.xlane.f32.xlu0 %v742
    %v744 = vpop.xlane.xlu0 %743
    %v745 = vmul.f32 %v744, %v169
    %v746 = vadd.f32 %v745, 1e-05
    %v747 = vrsqrt.pop %v746
    %v748 = vmul.f32 %v737, %v747
    %750 = vrot.lane.b32.xlu0 %v741, 64
    %v751 = vpop.permute.xlu0 %750
    %v753 = vsel %vm165, %v751, 0.0
    %754 = vadd.xlane.f32.xlu0 %v753
    %v755 = vpop.xlane.xlu0 %754
    %v756 = vmul.f32 %v755, %v169
    %v757 = vadd.f32 %v756, 1e-05
    %v758 = vrsqrt.pop %v757
    %v759 = vmul.f32 %v737, %v758
    %761 = vrot.lane.b32.xlu0 %v759, 64
    %v762 = vpop.permute.xlu0 %761
    %v764 = vadd.f32 %v748, %v762
    %v765 = vxor.u32 %v764, 2147483648
    %v766 = vmul.f32 %v765, 1.442695
    %v767 = vpow.pop %v766
    %v768 = vadd.f32 %v767, 1.0
    %v769 = vrcp.pop %v768
    %v770 = vmul.f32 1.0, %v769
    %v771 = vmul.f32 %v739, %v739
    %v772 = vsel %vm197, %v771, 0.0
    %773 = vadd.xlane.f32.xlu0 %v772
    %v774 = vpop.xlane.xlu0 %773
    %v775 = vmul.f32 %v774, %v201
    %v776 = vadd.f32 %v775, 1e-05
    %v777 = vrsqrt.pop %v776
    %v778 = vmul.f32 %v739, %v777
    %780 = vrot.lane.b32.xlu0 %v771, 96
    %v781 = vpop.permute.xlu0 %780
    %v783 = vsel %vm197, %v781, 0.0
    %784 = vadd.xlane.f32.xlu0 %v783
    %v785 = vpop.xlane.xlu0 %784
    %v786 = vmul.f32 %v785, %v201
    %v787 = vadd.f32 %v786, 1e-05
    %v788 = vrsqrt.pop %v787
    %v789 = vmul.f32 %v739, %v788
    %v790 = vmul.f32 %v770, %v789
    %792 = vrot.lane.b32.xlu0 %v790, 96
    %v793 = vpop.permute.xlu0 %792
    %v795 = vadd.f32 %v778, %v793
    %v796 = vtanh.pop %v795
    %v797 = vsub.f32 1.0, %v770
    %v798 = vmul.f32 %v797, %v520
    %v799 = vmul.f32 %v770, %v796
    %v800 = vadd.f32 %v798, %v799
    %802 = vrot.lane.b32.xlu0 %v659, 32
    %v803 = vpop.permute.xlu0 %802
    %v805 = vsel %vm71, %v800, %v803
    %v807 = vsel %vm89, %v805, 0
    %809 = vmatprep.subr.mxu0 %v231
    %810 = vmatpush1.msra.mxu0 %v230
    %811 = vmatprep.subr.mxu0 %v233
    %812 = vmatpush1.msra.mxu0 %v232
    %813 = vmatprep.subr.mxu0 %v235
    %814 = vmatpush1.msra.mxu0 %v234
    %815 = vmatprep.subr.mxu0 %v237
    %816 = vmatpush1.msra.mxu0 %v236
    %817 = vmatprep.subr.mxu0 %v239
    %818 = vmatpush1.msra.mxu0 %v238
    %819 = vmatprep.subr.mxu0 %v241
    %820 = vmatpush1.msra.mxu0 %v240
    %821 = vmatprep.subr.mxu0 %v243
    %822 = vmatpush1.msra.mxu0 %v242
    %823 = vmatprep.subr.mxu0 %v245
    %824 = vmatpush1.msra.mxu0 %v244
    %825 = vmatprep.subr.mxu0 0.0
    %826 = vmatpush1.msra.mxu0 0.0
    %827 = vmatprep.subr.mxu0 0.0
    %828 = vmatpush1.msra.mxu0 0.0
    %829 = vmatprep.subr.mxu0 0.0
    %830 = vmatpush1.msra.mxu0 0.0
    %831 = vmatprep.subr.mxu0 0.0
    %832 = vmatpush1.msra.mxu0 0.0
    %833 = vmatprep.subr.mxu0 0.0
    %834 = vmatpush1.msra.mxu0 0.0
    %835 = vmatprep.subr.mxu0 0.0
    %836 = vmatpush1.msra.mxu0 0.0
    %837 = vmatprep.subr.mxu0 0.0
    %838 = vmatpush1.msra.mxu0 0.0
    %839 = vmatprep.subr.mxu0 0.0
    %840 = vmatpush1.msra.mxu0 0.0
    %841 = vmatprep.subr.mxu0 0.0
    %842 = vmatpush1.msra.mxu0 0.0
    %843 = vmatprep.subr.mxu0 0.0
    %844 = vmatpush1.msra.mxu0 0.0
    %845 = vmatprep.subr.mxu0 0.0
    %846 = vmatpush1.msra.mxu0 0.0
    %847 = vmatprep.subr.mxu0 0.0
    %848 = vmatpush1.msra.mxu0 0.0
    %849 = vmatprep.subr.mxu0 0.0
    %850 = vmatpush1.msra.mxu0 0.0
    %851 = vmatprep.subr.mxu0 0.0
    %852 = vmatpush1.msra.mxu0 0.0
    %853 = vmatprep.subr.mxu0 0.0
    %854 = vmatpush1.msra.mxu0 0.0
    %855 = vmatprep.subr.mxu0 0.0
    %856 = vmatpush1.msra.mxu0 0.0
    %857 = vmatprep.subr.mxu0 0.0
    %858 = vmatpush1.msra.mxu0 0.0
    %859 = vmatprep.subr.mxu0 0.0
    %860 = vmatpush1.msra.mxu0 0.0
    %861 = vmatprep.subr.mxu0 0.0
    %862 = vmatpush1.msra.mxu0 0.0
    %863 = vmatprep.subr.mxu0 0.0
    %864 = vmatpush1.msra.mxu0 0.0
    %865 = vmatprep.subr.mxu0 0.0
    %866 = vmatpush1.msra.mxu0 0.0
    %867 = vmatprep.subr.mxu0 0.0
    %868 = vmatpush1.msra.mxu0 0.0
    %869 = vmatprep.subr.mxu0 0.0
    %870 = vmatpush1.msra.mxu0 0.0
    %871 = vmatprep.subr.mxu0 0.0
    %872 = vmatpush1.msra.mxu0 0.0
    %873 = vmatprep.mubr.f32.mxu0 0.0
    %874 = vmatmul.mubr.f32.gmra.mrb[0].mxu0 %v807
    %v875 = vpop.f32.mrb[0].mxu0
    %v876 = vadd.f32 %v59, %v875
    %v877 = vpop.f32.mrb[0].mxu0
    %v878 = vadd.f32 %v63, %v877
    %879 = vdwg.mxu0
    %v880 = vmul.f32 %v876, %v876
    %v881 = vsel %vm165, %v880, 0.0
    %882 = vadd.xlane.f32.xlu0 %v881
    %v883 = vpop.xlane.xlu0 %882
    %v884 = vmul.f32 %v883, %v169
    %v885 = vadd.f32 %v884, 1e-05
    %v886 = vrsqrt.pop %v885
    %v887 = vmul.f32 %v876, %v886
    %889 = vrot.lane.b32.xlu0 %v880, 64
    %v890 = vpop.permute.xlu0 %889
    %v892 = vsel %vm165, %v890, 0.0
    %893 = vadd.xlane.f32.xlu0 %v892
    %v894 = vpop.xlane.xlu0 %893
    %v895 = vmul.f32 %v894, %v169
    %v896 = vadd.f32 %v895, 1e-05
    %v897 = vrsqrt.pop %v896
    %v898 = vmul.f32 %v876, %v897
    %900 = vrot.lane.b32.xlu0 %v898, 64
    %v901 = vpop.permute.xlu0 %900
    %v903 = vadd.f32 %v887, %v901
    %v904 = vxor.u32 %v903, 2147483648
    %v905 = vmul.f32 %v904, 1.442695
    %v906 = vpow.pop %v905
    %v907 = vadd.f32 %v906, 1.0
    %v908 = vrcp.pop %v907
    %v909 = vmul.f32 1.0, %v908
    %v910 = vmul.f32 %v878, %v878
    %v911 = vsel %vm197, %v910, 0.0
    %912 = vadd.xlane.f32.xlu0 %v911
    %v913 = vpop.xlane.xlu0 %912
    %v914 = vmul.f32 %v913, %v201
    %v915 = vadd.f32 %v914, 1e-05
    %v916 = vrsqrt.pop %v915
    %v917 = vmul.f32 %v878, %v916
    %919 = vrot.lane.b32.xlu0 %v910, 96
    %v920 = vpop.permute.xlu0 %919
    %v922 = vsel %vm197, %v920, 0.0
    %923 = vadd.xlane.f32.xlu0 %v922
    %v924 = vpop.xlane.xlu0 %923
    %v925 = vmul.f32 %v924, %v201
    %v926 = vadd.f32 %v925, 1e-05
    %v927 = vrsqrt.pop %v926
    %v928 = vmul.f32 %v878, %v927
    %v929 = vmul.f32 %v909, %v928
    %931 = vrot.lane.b32.xlu0 %v929, 96
    %v932 = vpop.permute.xlu0 %931
    %v934 = vadd.f32 %v917, %v932
    %v935 = vtanh.pop %v934
    %v936 = vsub.f32 1.0, %v909
    %v937 = vmul.f32 %v936, %v659
    %v938 = vmul.f32 %v909, %v935
    %v939 = vadd.f32 %v937, %v938
    %s940 = scalar_lea.vmem [#allocation3], 12
    %v941 = vld [vmem:[%s940] sm:$0xf]
    %943 = vrot.lane.b32.xlu0 %v800, 32
    %v944 = vpop.permute.xlu0 %943
    %v946 = vsel %vm71, %v941, %v944
    %v948 = vsel %vm89, %v946, 0
    %950 = vmatprep.subr.mxu0 %v74
    %951 = vmatpush1.msra.mxu0 %v73
    %952 = vmatprep.subr.mxu0 %v76
    %953 = vmatpush1.msra.mxu0 %v75
    %954 = vmatprep.subr.mxu0 %v78
    %955 = vmatpush1.msra.mxu0 %v77
    %956 = vmatprep.subr.mxu0 %v80
    %957 = vmatpush1.msra.mxu0 %v79
    %958 = vmatprep.subr.mxu0 %v82
    %959 = vmatpush1.msra.mxu0 %v81
    %960 = vmatprep.subr.mxu0 %v84
    %961 = vmatpush1.msra.mxu0 %v83
    %962 = vmatprep.subr.mxu0 %v86
    %963 = vmatpush1.msra.mxu0 %v85
    %964 = vmatprep.subr.mxu0 %v88
    %965 = vmatpush1.msra.mxu0 %v87
    %966 = vmatprep.subr.mxu0 0.0
    %967 = vmatpush1.msra.mxu0 0.0
    %968 = vmatprep.subr.mxu0 0.0
    %969 = vmatpush1.msra.mxu0 0.0
    %970 = vmatprep.subr.mxu0 0.0
    %971 = vmatpush1.msra.mxu0 0.0
    %972 = vmatprep.subr.mxu0 0.0
    %973 = vmatpush1.msra.mxu0 0.0
    %974 = vmatprep.subr.mxu0 0.0
    %975 = vmatpush1.msra.mxu0 0.0
    %976 = vmatprep.subr.mxu0 0.0
    %977 = vmatpush1.msra.mxu0 0.0
    %978 = vmatprep.subr.mxu0 0.0
    %979 = vmatpush1.msra.mxu0 0.0
    %980 = vmatprep.subr.mxu0 0.0
    %981 = vmatpush1.msra.mxu0 0.0
    %982 = vmatprep.subr.mxu0 0.0
    %983 = vmatpush1.msra.mxu0 0.0
    %984 = vmatprep.subr.mxu0 0.0
    %985 = vmatpush1.msra.mxu0 0.0
    %986 = vmatprep.subr.mxu0 0.0
    %987 = vmatpush1.msra.mxu0 0.0
    %988 = vmatprep.subr.mxu0 0.0
    %989 = vmatpush1.msra.mxu0 0.0
    %990 = vmatprep.subr.mxu0 0.0
    %991 = vmatpush1.msra.mxu0 0.0
    %992 = vmatprep.subr.mxu0 0.0
    %993 = vmatpush1.msra.mxu0 0.0
    %994 = vmatprep.subr.mxu0 0.0
    %995 = vmatpush1.msra.mxu0 0.0
    %996 = vmatprep.subr.mxu0 0.0
    %997 = vmatpush1.msra.mxu0 0.0
    %998 = vmatprep.subr.mxu0 0.0
    %999 = vmatpush1.msra.mxu0 0.0
    %1000 = vmatprep.subr.mxu0 0.0
    %1001 = vmatpush1.msra.mxu0 0.0
    %1002 = vmatprep.subr.mxu0 0.0
    %1003 = vmatpush1.msra.mxu0 0.0
    %1004 = vmatprep.subr.mxu0 0.0
    %1005 = vmatpush1.msra.mxu0 0.0
    %1006 = vmatprep.subr.mxu0 0.0
    %1007 = vmatpush1.msra.mxu0 0.0
    %1008 = vmatprep.subr.mxu0 0.0
    %1009 = vmatpush1.msra.mxu0 0.0
    %1010 = vmatprep.subr.mxu0 0.0
    %1011 = vmatpush1.msra.mxu0 0.0
    %1012 = vmatprep.subr.mxu0 0.0
    %1013 = vmatpush1.msra.mxu0 0.0
    %1014 = vmatprep.mubr.f32.mxu0 0.0
    %1015 = vmatmul.mubr.f32.gmra.mrb[0].mxu0 %v948
    %v1016 = vpop.f32.mrb[0].mxu0
    %v1017 = vadd.f32 %v46, %v1016
    %v1018 = vpop.f32.mrb[0].mxu0
    %v1019 = vadd.f32 %v50, %v1018
    %1020 = vdwg.mxu0
    %v1021 = vmul.f32 %v1017, %v1017
    %v1022 = vsel %vm165, %v1021, 0.0
    %1023 = vadd.xlane.f32.xlu0 %v1022
    %v1024 = vpop.xlane.xlu0 %1023
    %v1025 = vmul.f32 %v1024, %v169
    %v1026 = vadd.f32 %v1025, 1e-05
    %v1027 = vrsqrt.pop %v1026
    %v1028 = vmul.f32 %v1017, %v1027
    %1030 = vrot.lane.b32.xlu0 %v1021, 64
    %v1031 = vpop.permute.xlu0 %1030
    %v1033 = vsel %vm165, %v1031, 0.0
    %1034 = vadd.xlane.f32.xlu0 %v1033
    %v1035 = vpop.xlane.xlu0 %1034
    %v1036 = vmul.f32 %v1035, %v169
    %v1037 = vadd.f32 %v1036, 1e-05
    %v1038 = vrsqrt.pop %v1037
    %v1039 = vmul.f32 %v1017, %v1038
    %1041 = vrot.lane.b32.xlu0 %v1039, 64
    %v1042 = vpop.permute.xlu0 %1041
    %v1044 = vadd.f32 %v1028, %v1042
    %v1045 = vxor.u32 %v1044, 2147483648
    %v1046 = vmul.f32 %v1045, 1.442695
    %v1047 = vpow.pop %v1046
    %v1048 = vadd.f32 %v1047, 1.0
    %v1049 = vrcp.pop %v1048
    %v1050 = vmul.f32 1.0, %v1049
    %v1051 = vmul.f32 %v1019, %v1019
    %v1052 = vsel %vm197, %v1051, 0.0
    %1053 = vadd.xlane.f32.xlu0 %v1052
    %v1054 = vpop.xlane.xlu0 %1053
    %v1055 = vmul.f32 %v1054, %v201
    %v1056 = vadd.f32 %v1055, 1e-05
    %v1057 = vrsqrt.pop %v1056
    %v1058 = vmul.f32 %v1019, %v1057
    %1060 = vrot.lane.b32.xlu0 %v1051, 96
    %v1061 = vpop.permute.xlu0 %1060
    %v1063 = vsel %vm197, %v1061, 0.0
    %1064 = vadd.xlane.f32.xlu0 %v1063
    %v1065 = vpop.xlane.xlu0 %1064
    %v1066 = vmul.f32 %v1065, %v201
    %v1067 = vadd.f32 %v1066, 1e-05
    %v1068 = vrsqrt.pop %v1067
    %v1069 = vmul.f32 %v1019, %v1068
    %v1070 = vmul.f32 %v1050, %v1069
    %1072 = vrot.lane.b32.xlu0 %v1070, 96
    %v1073 = vpop.permute.xlu0 %1072
    %v1075 = vadd.f32 %v1058, %v1073
    %v1076 = vtanh.pop %v1075
    %v1077 = vsub.f32 1.0, %v1050
    %v1078 = vmul.f32 %v1077, %v800
    %v1079 = vmul.f32 %v1050, %v1076
    %v1080 = vadd.f32 %v1078, %v1079
    %1082 = vrot.lane.b32.xlu0 %v939, 32
    %v1083 = vpop.permute.xlu0 %1082
    %v1085 = vsel %vm71, %v1080, %v1083
    %v1087 = vsel %vm89, %v1085, 0
    %1089 = vmatprep.subr.mxu0 %v231
    %1090 = vmatpush1.msra.mxu0 %v230
    %1091 = vmatprep.subr.mxu0 %v233
    %1092 = vmatpush1.msra.mxu0 %v232
    %1093 = vmatprep.subr.mxu0 %v235
    %1094 = vmatpush1.msra.mxu0 %v234
    %1095 = vmatprep.subr.mxu0 %v237
    %1096 = vmatpush1.msra.mxu0 %v236
    %1097 = vmatprep.subr.mxu0 %v239
    %1098 = vmatpush1.msra.mxu0 %v238
    %1099 = vmatprep.subr.mxu0 %v241
    %1100 = vmatpush1.msra.mxu0 %v240
    %1101 = vmatprep.subr.mxu0 %v243
    %1102 = vmatpush1.msra.mxu0 %v242
    %1103 = vmatprep.subr.mxu0 %v245
    %1104 = vmatpush1.msra.mxu0 %v244
    %1105 = vmatprep.subr.mxu0 0.0
    %1106 = vmatpush1.msra.mxu0 0.0
    %1107 = vmatprep.subr.mxu0 0.0
    %1108 = vmatpush1.msra.mxu0 0.0
    %1109 = vmatprep.subr.mxu0 0.0
    %1110 = vmatpush1.msra.mxu0 0.0
    %1111 = vmatprep.subr.mxu0 0.0
    %1112 = vmatpush1.msra.mxu0 0.0
    %1113 = vmatprep.subr.mxu0 0.0
    %1114 = vmatpush1.msra.mxu0 0.0
    %1115 = vmatprep.subr.mxu0 0.0
    %1116 = vmatpush1.msra.mxu0 0.0
    %1117 = vmatprep.subr.mxu0 0.0
    %1118 = vmatpush1.msra.mxu0 0.0
    %1119 = vmatprep.subr.mxu0 0.0
    %1120 = vmatpush1.msra.mxu0 0.0
    %1121 = vmatprep.subr.mxu0 0.0
    %1122 = vmatpush1.msra.mxu0 0.0
    %1123 = vmatprep.subr.mxu0 0.0
    %1124 = vmatpush1.msra.mxu0 0.0
    %1125 = vmatprep.subr.mxu0 0.0
    %1126 = vmatpush1.msra.mxu0 0.0
    %1127 = vmatprep.subr.mxu0 0.0
    %1128 = vmatpush1.msra.mxu0 0.0
    %1129 = vmatprep.subr.mxu0 0.0
    %1130 = vmatpush1.msra.mxu0 0.0
    %1131 = vmatprep.subr.mxu0 0.0
    %1132 = vmatpush1.msra.mxu0 0.0
    %1133 = vmatprep.subr.mxu0 0.0
    %1134 = vmatpush1.msra.mxu0 0.0
    %1135 = vmatprep.subr.mxu0 0.0
    %1136 = vmatpush1.msra.mxu0 0.0
    %1137 = vmatprep.subr.mxu0 0.0
    %1138 = vmatpush1.msra.mxu0 0.0
    %1139 = vmatprep.subr.mxu0 0.0
    %1140 = vmatpush1.msra.mxu0 0.0
    %1141 = vmatprep.subr.mxu0 0.0
    %1142 = vmatpush1.msra.mxu0 0.0
    %1143 = vmatprep.subr.mxu0 0.0
    %1144 = vmatpush1.msra.mxu0 0.0
    %1145 = vmatprep.subr.mxu0 0.0
    %1146 = vmatpush1.msra.mxu0 0.0
    %1147 = vmatprep.subr.mxu0 0.0
    %1148 = vmatpush1.msra.mxu0 0.0
    %1149 = vmatprep.subr.mxu0 0.0
    %1150 = vmatpush1.msra.mxu0 0.0
    %1151 = vmatprep.subr.mxu0 0.0
    %1152 = vmatpush1.msra.mxu0 0.0
    %1153 = vmatprep.mubr.f32.mxu0 0.0
    %1154 = vmatmul.mubr.f32.gmra.mrb[0].mxu0 %v1087
    %v1155 = vpop.f32.mrb[0].mxu0
    %v1156 = vadd.f32 %v59, %v1155
    %v1157 = vpop.f32.mrb[0].mxu0
    %v1158 = vadd.f32 %v63, %v1157
    %1159 = vdwg.mxu0
    %v1160 = vmul.f32 %v1156, %v1156
    %v1161 = vsel %vm165, %v1160, 0.0
    %1162 = vadd.xlane.f32.xlu0 %v1161
    %v1163 = vpop.xlane.xlu0 %1162
    %v1164 = vmul.f32 %v1163, %v169
    %v1165 = vadd.f32 %v1164, 1e-05
    %v1166 = vrsqrt.pop %v1165
    %v1167 = vmul.f32 %v1156, %v1166
    %1169 = vrot.lane.b32.xlu0 %v1160, 64
    %v1170 = vpop.permute.xlu0 %1169
    %v1172 = vsel %vm165, %v1170, 0.0
    %1173 = vadd.xlane.f32.xlu0 %v1172
    %v1174 = vpop.xlane.xlu0 %1173
    %v1175 = vmul.f32 %v1174, %v169
    %v1176 = vadd.f32 %v1175, 1e-05
    %v1177 = vrsqrt.pop %v1176
    %v1178 = vmul.f32 %v1156, %v1177
    %1180 = vrot.lane.b32.xlu0 %v1178, 64
    %v1181 = vpop.permute.xlu0 %1180
    %v1183 = vadd.f32 %v1167, %v1181
    %v1184 = vxor.u32 %v1183, 2147483648
    %v1185 = vmul.f32 %v1184, 1.442695
    %v1186 = vpow.pop %v1185
    %v1187 = vadd.f32 %v1186, 1.0
    %v1188 = vrcp.pop %v1187
    %v1189 = vmul.f32 1.0, %v1188
    %v1190 = vmul.f32 %v1158, %v1158
    %v1191 = vsel %vm197, %v1190, 0.0
    %1192 = vadd.xlane.f32.xlu0 %v1191
    %v1193 = vpop.xlane.xlu0 %1192
    %v1194 = vmul.f32 %v1193, %v201
    %v1195 = vadd.f32 %v1194, 1e-05
    %v1196 = vrsqrt.pop %v1195
    %v1197 = vmul.f32 %v1158, %v1196
    %1199 = vrot.lane.b32.xlu0 %v1190, 96
    %v1200 = vpop.permute.xlu0 %1199
    %v1202 = vsel %vm197, %v1200, 0.0
    %1203 = vadd.xlane.f32.xlu0 %v1202
    %v1204 = vpop.xlane.xlu0 %1203
    %v1205 = vmul.f32 %v1204, %v201
    %v1206 = vadd.f32 %v1205, 1e-05
    %v1207 = vrsqrt.pop %v1206
    %v1208 = vmul.f32 %v1158, %v1207
    %v1209 = vmul.f32 %v1189, %v1208
    %1211 = vrot.lane.b32.xlu0 %v1209, 96
    %v1212 = vpop.permute.xlu0 %1211
    %v1214 = vadd.f32 %v1197, %v1212
    %v1215 = vtanh.pop %v1214
    %v1216 = vsub.f32 1.0, %v1189
    %v1217 = vmul.f32 %v1216, %v939
    %v1218 = vmul.f32 %v1189, %v1215
    %v1219 = vadd.f32 %v1217, %v1218
    %s1220 = scalar_lea.vmem [#allocation3], 16
    %v1221 = vld [vmem:[%s1220] sm:$0xf]
    %1223 = vrot.lane.b32.xlu0 %v1080, 32
    %v1224 = vpop.permute.xlu0 %1223
    %v1226 = vsel %vm71, %v1221, %v1224
    %v1228 = vsel %vm89, %v1226, 0
    %1230 = vmatprep.subr.mxu0 %v74
    %1231 = vmatpush1.msra.mxu0 %v73
    %1232 = vmatprep.subr.mxu0 %v76
    %1233 = vmatpush1.msra.mxu0 %v75
    %1234 = vmatprep.subr.mxu0 %v78
    %1235 = vmatpush1.msra.mxu0 %v77
    %1236 = vmatprep.subr.mxu0 %v80
    %1237 = vmatpush1.msra.mxu0 %v79
    %1238 = vmatprep.subr.mxu0 %v82
    %1239 = vmatpush1.msra.mxu0 %v81
    %1240 = vmatprep.subr.mxu0 %v84
    %1241 = vmatpush1.msra.mxu0 %v83
    %1242 = vmatprep.subr.mxu0 %v86
    %1243 = vmatpush1.msra.mxu0 %v85
    %1244 = vmatprep.subr.mxu0 %v88
    %1245 = vmatpush1.msra.mxu0 %v87
    %1246 = vmatprep.subr.mxu0 0.0
    %1247 = vmatpush1.msra.mxu0 0.0
    %1248 = vmatprep.subr.mxu0 0.0
    %1249 = vmatpush1.msra.mxu0 0.0
    %1250 = vmatprep.subr.mxu0 0.0
    %1251 = vmatpush1.msra.mxu0 0.0
    %1252 = vmatprep.subr.mxu0 0.0
    %1253 = vmatpush1.msra.mxu0 0.0
    %1254 = vmatprep.subr.mxu0 0.0
    %1255 = vmatpush1.msra.mxu0 0.0
    %1256 = vmatprep.subr.mxu0 0.0
    %1257 = vmatpush1.msra.mxu0 0.0
    %1258 = vmatprep.subr.mxu0 0.0
    %1259 = vmatpush1.msra.mxu0 0.0
    %1260 = vmatprep.subr.mxu0 0.0
    %1261 = vmatpush1.msra.mxu0 0.0
    %1262 = vmatprep.subr.mxu0 0.0
    %1263 = vmatpush1.msra.mxu0 0.0
    %1264 = vmatprep.subr.mxu0 0.0
    %1265 = vmatpush1.msra.mxu0 0.0
    %1266 = vmatprep.subr.mxu0 0.0
    %1267 = vmatpush1.msra.mxu0 0.0
    %1268 = vmatprep.subr.mxu0 0.0
    %1269 = vmatpush1.msra.mxu0 0.0
    %1270 = vmatprep.subr.mxu0 0.0
    %1271 = vmatpush1.msra.mxu0 0.0
    %1272 = vmatprep.subr.mxu0 0.0
    %1273 = vmatpush1.msra.mxu0 0.0
    %1274 = vmatprep.subr.mxu0 0.0
    %1275 = vmatpush1.msra.mxu0 0.0
    %1276 = vmatprep.subr.mxu0 0.0
    %1277 = vmatpush1.msra.mxu0 0.0
    %1278 = vmatprep.subr.mxu0 0.0
    %1279 = vmatpush1.msra.mxu0 0.0
    %1280 = vmatprep.subr.mxu0 0.0
    %1281 = vmatpush1.msra.mxu0 0.0
    %1282 = vmatprep.subr.mxu0 0.0
    %1283 = vmatpush1.msra.mxu0 0.0
    %1284 = vmatprep.subr.mxu0 0.0
    %1285 = vmatpush1.msra.mxu0 0.0
    %1286 = vmatprep.subr.mxu0 0.0
    %1287 = vmatpush1.msra.mxu0 0.0
    %1288 = vmatprep.subr.mxu0 0.0
    %1289 = vmatpush1.msra.mxu0 0.0
    %1290 = vmatprep.subr.mxu0 0.0
    %1291 = vmatpush1.msra.mxu0 0.0
    %1292 = vmatprep.subr.mxu0 0.0
    %1293 = vmatpush1.msra.mxu0 0.0
    %1294 = vmatprep.mubr.f32.mxu0 0.0
    %1295 = vmatmul.mubr.f32.gmra.mrb[0].mxu0 %v1228
    %v1296 = vpop.f32.mrb[0].mxu0
    %v1297 = vadd.f32 %v46, %v1296
    %v1298 = vpop.f32.mrb[0].mxu0
    %v1299 = vadd.f32 %v50, %v1298
    %1300 = vdwg.mxu0
    %v1301 = vmul.f32 %v1297, %v1297
    %v1302 = vsel %vm165, %v1301, 0.0
    %1303 = vadd.xlane.f32.xlu0 %v1302
    %v1304 = vpop.xlane.xlu0 %1303
    %v1305 = vmul.f32 %v1304, %v169
    %v1306 = vadd.f32 %v1305, 1e-05
    %v1307 = vrsqrt.pop %v1306
    %v1308 = vmul.f32 %v1297, %v1307
    %1310 = vrot.lane.b32.xlu0 %v1301, 64
    %v1311 = vpop.permute.xlu0 %1310
    %v1313 = vsel %vm165, %v1311, 0.0
    %1314 = vadd.xlane.f32.xlu0 %v1313
    %v1315 = vpop.xlane.xlu0 %1314
    %v1316 = vmul.f32 %v1315, %v169
    %v1317 = vadd.f32 %v1316, 1e-05
    %v1318 = vrsqrt.pop %v1317
    %v1319 = vmul.f32 %v1297, %v1318
    %1321 = vrot.lane.b32.xlu0 %v1319, 64
    %v1322 = vpop.permute.xlu0 %1321
    %v1324 = vadd.f32 %v1308, %v1322
    %v1325 = vxor.u32 %v1324, 2147483648
    %v1326 = vmul.f32 %v1325, 1.442695
    %v1327 = vpow.pop %v1326
    %v1328 = vadd.f32 %v1327, 1.0
    %v1329 = vrcp.pop %v1328
    %v1330 = vmul.f32 1.0, %v1329
    %v1331 = vmul.f32 %v1299, %v1299
    %v1332 = vsel %vm197, %v1331, 0.0
    %1333 = vadd.xlane.f32.xlu0 %v1332
    %v1334 = vpop.xlane.xlu0 %1333
    %v1335 = vmul.f32 %v1334, %v201
    %v1336 = vadd.f32 %v1335, 1e-05
    %v1337 = vrsqrt.pop %v1336
    %v1338 = vmul.f32 %v1299, %v1337
    %1340 = vrot.lane.b32.xlu0 %v1331, 96
    %v1341 = vpop.permute.xlu0 %1340
    %v1343 = vsel %vm197, %v1341, 0.0
    %1344 = vadd.xlane.f32.xlu0 %v1343
    %v1345 = vpop.xlane.xlu0 %1344
    %v1346 = vmul.f32 %v1345, %v201
    %v1347 = vadd.f32 %v1346, 1e-05
    %v1348 = vrsqrt.pop %v1347
    %v1349 = vmul.f32 %v1299, %v1348
    %v1350 = vmul.f32 %v1330, %v1349
    %1352 = vrot.lane.b32.xlu0 %v1350, 96
    %v1353 = vpop.permute.xlu0 %1352
    %v1355 = vadd.f32 %v1338, %v1353
    %v1356 = vtanh.pop %v1355
    %v1357 = vsub.f32 1.0, %v1330
    %v1358 = vmul.f32 %v1357, %v1080
    %v1359 = vmul.f32 %v1330, %v1356
    %v1360 = vadd.f32 %v1358, %v1359
    %1362 = vrot.lane.b32.xlu0 %v1219, 32
    %v1363 = vpop.permute.xlu0 %1362
    %v1365 = vsel %vm71, %v1360, %v1363
    %v1367 = vsel %vm89, %v1365, 0
    %1369 = vmatprep.subr.mxu0 %v231
    %1370 = vmatpush1.msra.mxu0 %v230
    %1371 = vmatprep.subr.mxu0 %v233
    %1372 = vmatpush1.msra.mxu0 %v232
    %1373 = vmatprep.subr.mxu0 %v235
    %1374 = vmatpush1.msra.mxu0 %v234
    %1375 = vmatprep.subr.mxu0 %v237
    %1376 = vmatpush1.msra.mxu0 %v236
    %1377 = vmatprep.subr.mxu0 %v239
    %1378 = vmatpush1.msra.mxu0 %v238
    %1379 = vmatprep.subr.mxu0 %v241
    %1380 = vmatpush1.msra.mxu0 %v240
    %1381 = vmatprep.subr.mxu0 %v243
    %1382 = vmatpush1.msra.mxu0 %v242
    %1383 = vmatprep.subr.mxu0 %v245
    %1384 = vmatpush1.msra.mxu0 %v244
    %1385 = vmatprep.subr.mxu0 0.0
    %1386 = vmatpush1.msra.mxu0 0.0
    %1387 = vmatprep.subr.mxu0 0.0
    %1388 = vmatpush1.msra.mxu0 0.0
    %1389 = vmatprep.subr.mxu0 0.0
    %1390 = vmatpush1.msra.mxu0 0.0
    %1391 = vmatprep.subr.mxu0 0.0
    %1392 = vmatpush1.msra.mxu0 0.0
    %1393 = vmatprep.subr.mxu0 0.0
    %1394 = vmatpush1.msra.mxu0 0.0
    %1395 = vmatprep.subr.mxu0 0.0
    %1396 = vmatpush1.msra.mxu0 0.0
    %1397 = vmatprep.subr.mxu0 0.0
    %1398 = vmatpush1.msra.mxu0 0.0
    %1399 = vmatprep.subr.mxu0 0.0
    %1400 = vmatpush1.msra.mxu0 0.0
    %1401 = vmatprep.subr.mxu0 0.0
    %1402 = vmatpush1.msra.mxu0 0.0
    %1403 = vmatprep.subr.mxu0 0.0
    %1404 = vmatpush1.msra.mxu0 0.0
    %1405 = vmatprep.subr.mxu0 0.0
    %1406 = vmatpush1.msra.mxu0 0.0
    %1407 = vmatprep.subr.mxu0 0.0
    %1408 = vmatpush1.msra.mxu0 0.0
    %1409 = vmatprep.subr.mxu0 0.0
    %1410 = vmatpush1.msra.mxu0 0.0
    %1411 = vmatprep.subr.mxu0 0.0
    %1412 = vmatpush1.msra.mxu0 0.0
    %1413 = vmatprep.subr.mxu0 0.0
    %1414 = vmatpush1.msra.mxu0 0.0
    %1415 = vmatprep.subr.mxu0 0.0
    %1416 = vmatpush1.msra.mxu0 0.0
    %1417 = vmatprep.subr.mxu0 0.0
    %1418 = vmatpush1.msra.mxu0 0.0
    %1419 = vmatprep.subr.mxu0 0.0
    %1420 = vmatpush1.msra.mxu0 0.0
    %1421 = vmatprep.subr.mxu0 0.0
    %1422 = vmatpush1.msra.mxu0 0.0
    %1423 = vmatprep.subr.mxu0 0.0
    %1424 = vmatpush1.msra.mxu0 0.0
    %1425 = vmatprep.subr.mxu0 0.0
    %1426 = vmatpush1.msra.mxu0 0.0
    %1427 = vmatprep.subr.mxu0 0.0
    %1428 = vmatpush1.msra.mxu0 0.0
    %1429 = vmatprep.subr.mxu0 0.0
    %1430 = vmatpush1.msra.mxu0 0.0
    %1431 = vmatprep.subr.mxu0 0.0
    %1432 = vmatpush1.msra.mxu0 0.0
    %1433 = vmatprep.mubr.f32.mxu0 0.0
    %1434 = vmatmul.mubr.f32.gmra.mrb[0].mxu0 %v1367
    %v1435 = vpop.f32.mrb[0].mxu0
    %v1436 = vadd.f32 %v59, %v1435
    %v1437 = vpop.f32.mrb[0].mxu0
    %v1438 = vadd.f32 %v63, %v1437
    %1439 = vdwg.mxu0
    %v1440 = vmul.f32 %v1436, %v1436
    %v1441 = vsel %vm165, %v1440, 0.0
    %1442 = vadd.xlane.f32.xlu0 %v1441
    %v1443 = vpop.xlane.xlu0 %1442
    %v1444 = vmul.f32 %v1443, %v169
    %v1445 = vadd.f32 %v1444, 1e-05
    %v1446 = vrsqrt.pop %v1445
    %v1447 = vmul.f32 %v1436, %v1446
    %1449 = vrot.lane.b32.xlu0 %v1440, 64
    %v1450 = vpop.permute.xlu0 %1449
    %v1452 = vsel %vm165, %v1450, 0.0
    %1453 = vadd.xlane.f32.xlu0 %v1452
    %v1454 = vpop.xlane.xlu0 %1453
    %v1455 = vmul.f32 %v1454, %v169
    %v1456 = vadd.f32 %v1455, 1e-05
    %v1457 = vrsqrt.pop %v1456
    %v1458 = vmul.f32 %v1436, %v1457
    %1460 = vrot.lane.b32.xlu0 %v1458, 64
    %v1461 = vpop.permute.xlu0 %1460
    %v1463 = vadd.f32 %v1447, %v1461
    %v1464 = vxor.u32 %v1463, 2147483648
    %v1465 = vmul.f32 %v1464, 1.442695
    %v1466 = vpow.pop %v1465
    %v1467 = vadd.f32 %v1466, 1.0
    %v1468 = vrcp.pop %v1467
    %v1469 = vmul.f32 1.0, %v1468
    %v1470 = vmul.f32 %v1438, %v1438
    %v1471 = vsel %vm197, %v1470, 0.0
    %1472 = vadd.xlane.f32.xlu0 %v1471
    %v1473 = vpop.xlane.xlu0 %1472
    %v1474 = vmul.f32 %v1473, %v201
    %v1475 = vadd.f32 %v1474, 1e-05
    %v1476 = vrsqrt.pop %v1475
    %v1477 = vmul.f32 %v1438, %v1476
    %1479 = vrot.lane.b32.xlu0 %v1470, 96
    %v1480 = vpop.permute.xlu0 %1479
    %v1482 = vsel %vm197, %v1480, 0.0
    %1483 = vadd.xlane.f32.xlu0 %v1482
    %v1484 = vpop.xlane.xlu0 %1483
    %v1485 = vmul.f32 %v1484, %v201
    %v1486 = vadd.f32 %v1485, 1e-05
    %v1487 = vrsqrt.pop %v1486
    %v1488 = vmul.f32 %v1438, %v1487
    %v1489 = vmul.f32 %v1469, %v1488
    %1491 = vrot.lane.b32.xlu0 %v1489, 96
    %v1492 = vpop.permute.xlu0 %1491
    %v1494 = vadd.f32 %v1477, %v1492
    %v1495 = vtanh.pop %v1494
    %v1496 = vsub.f32 1.0, %v1469
    %v1497 = vmul.f32 %v1496, %v1219
    %v1498 = vmul.f32 %v1469, %v1495
    %v1499 = vadd.f32 %v1497, %v1498
    %s1500 = scalar_lea.vmem [#allocation3], 20
    %v1501 = vld [vmem:[%s1500] sm:$0xf]
    %1503 = vrot.lane.b32.xlu0 %v1360, 32
    %v1504 = vpop.permute.xlu0 %1503
    %v1506 = vsel %vm71, %v1501, %v1504
    %v1508 = vsel %vm89, %v1506, 0
    %1510 = vmatprep.subr.mxu0 %v74
    %1511 = vmatpush1.msra.mxu0 %v73
    %1512 = vmatprep.subr.mxu0 %v76
    %1513 = vmatpush1.msra.mxu0 %v75
    %1514 = vmatprep.subr.mxu0 %v78
    %1515 = vmatpush1.msra.mxu0 %v77
    %1516 = vmatprep.subr.mxu0 %v80
    %1517 = vmatpush1.msra.mxu0 %v79
    %1518 = vmatprep.subr.mxu0 %v82
    %1519 = vmatpush1.msra.mxu0 %v81
    %1520 = vmatprep.subr.mxu0 %v84
    %1521 = vmatpush1.msra.mxu0 %v83
    %1522 = vmatprep.subr.mxu0 %v86
    %1523 = vmatpush1.msra.mxu0 %v85
    %1524 = vmatprep.subr.mxu0 %v88
    %1525 = vmatpush1.msra.mxu0 %v87
    %1526 = vmatprep.subr.mxu0 0.0
    %1527 = vmatpush1.msra.mxu0 0.0
    %1528 = vmatprep.subr.mxu0 0.0
    %1529 = vmatpush1.msra.mxu0 0.0
    %1530 = vmatprep.subr.mxu0 0.0
    %1531 = vmatpush1.msra.mxu0 0.0
    %1532 = vmatprep.subr.mxu0 0.0
    %1533 = vmatpush1.msra.mxu0 0.0
    %1534 = vmatprep.subr.mxu0 0.0
    %1535 = vmatpush1.msra.mxu0 0.0
    %1536 = vmatprep.subr.mxu0 0.0
    %1537 = vmatpush1.msra.mxu0 0.0
    %1538 = vmatprep.subr.mxu0 0.0
    %1539 = vmatpush1.msra.mxu0 0.0
    %1540 = vmatprep.subr.mxu0 0.0
    %1541 = vmatpush1.msra.mxu0 0.0
    %1542 = vmatprep.subr.mxu0 0.0
    %1543 = vmatpush1.msra.mxu0 0.0
    %1544 = vmatprep.subr.mxu0 0.0
    %1545 = vmatpush1.msra.mxu0 0.0
    %1546 = vmatprep.subr.mxu0 0.0
    %1547 = vmatpush1.msra.mxu0 0.0
    %1548 = vmatprep.subr.mxu0 0.0
    %1549 = vmatpush1.msra.mxu0 0.0
    %1550 = vmatprep.subr.mxu0 0.0
    %1551 = vmatpush1.msra.mxu0 0.0
    %1552 = vmatprep.subr.mxu0 0.0
    %1553 = vmatpush1.msra.mxu0 0.0
    %1554 = vmatprep.subr.mxu0 0.0
    %1555 = vmatpush1.msra.mxu0 0.0
    %1556 = vmatprep.subr.mxu0 0.0
    %1557 = vmatpush1.msra.mxu0 0.0
    %1558 = vmatprep.subr.mxu0 0.0
    %1559 = vmatpush1.msra.mxu0 0.0
    %1560 = vmatprep.subr.mxu0 0.0
    %1561 = vmatpush1.msra.mxu0 0.0
    %1562 = vmatprep.subr.mxu0 0.0
    %1563 = vmatpush1.msra.mxu0 0.0
    %1564 = vmatprep.subr.mxu0 0.0
    %1565 = vmatpush1.msra.mxu0 0.0
    %1566 = vmatprep.subr.mxu0 0.0
    %1567 = vmatpush1.msra.mxu0 0.0
    %1568 = vmatprep.subr.mxu0 0.0
    %1569 = vmatpush1.msra.mxu0 0.0
    %1570 = vmatprep.subr.mxu0 0.0
    %1571 = vmatpush1.msra.mxu0 0.0
    %1572 = vmatprep.subr.mxu0 0.0
    %1573 = vmatpush1.msra.mxu0 0.0
    %1574 = vmatprep.mubr.f32.mxu0 0.0
    %1575 = vmatmul.mubr.f32.gmra.mrb[0].mxu0 %v1508
    %v1576 = vpop.f32.mrb[0].mxu0
    %v1577 = vadd.f32 %v46, %v1576
    %v1578 = vpop.f32.mrb[0].mxu0
    %v1579 = vadd.f32 %v50, %v1578
    %1580 = vdwg.mxu0
    %v1581 = vmul.f32 %v1577, %v1577
    %v1582 = vsel %vm165, %v1581, 0.0
    %1583 = vadd.xlane.f32.xlu0 %v1582
    %v1584 = vpop.xlane.xlu0 %1583
    %v1585 = vmul.f32 %v1584, %v169
    %v1586 = vadd.f32 %v1585, 1e-05
    %v1587 = vrsqrt.pop %v1586
    %v1588 = vmul.f32 %v1577, %v1587
    %1590 = vrot.lane.b32.xlu0 %v1581, 64
    %v1591 = vpop.permute.xlu0 %1590
    %v1593 = vsel %vm165, %v1591, 0.0
    %1594 = vadd.xlane.f32.xlu0 %v1593
    %v1595 = vpop.xlane.xlu0 %1594
    %v1596 = vmul.f32 %v1595, %v169
    %v1597 = vadd.f32 %v1596, 1e-05
    %v1598 = vrsqrt.pop %v1597
    %v1599 = vmul.f32 %v1577, %v1598
    %1601 = vrot.lane.b32.xlu0 %v1599, 64
    %v1602 = vpop.permute.xlu0 %1601
    %v1604 = vadd.f32 %v1588, %v1602
    %v1605 = vxor.u32 %v1604, 2147483648
    %v1606 = vmul.f32 %v1605, 1.442695
    %v1607 = vpow.pop %v1606
    %v1608 = vadd.f32 %v1607, 1.0
    %v1609 = vrcp.pop %v1608
    %v1610 = vmul.f32 1.0, %v1609
    %v1611 = vmul.f32 %v1579, %v1579
    %v1612 = vsel %vm197, %v1611, 0.0
    %1613 = vadd.xlane.f32.xlu0 %v1612
    %v1614 = vpop.xlane.xlu0 %1613
    %v1615 = vmul.f32 %v1614, %v201
    %v1616 = vadd.f32 %v1615, 1e-05
    %v1617 = vrsqrt.pop %v1616
    %v1618 = vmul.f32 %v1579, %v1617
    %1620 = vrot.lane.b32.xlu0 %v1611, 96
    %v1621 = vpop.permute.xlu0 %1620
    %v1623 = vsel %vm197, %v1621, 0.0
    %1624 = vadd.xlane.f32.xlu0 %v1623
    %v1625 = vpop.xlane.xlu0 %1624
    %v1626 = vmul.f32 %v1625, %v201
    %v1627 = vadd.f32 %v1626, 1e-05
    %v1628 = vrsqrt.pop %v1627
    %v1629 = vmul.f32 %v1579, %v1628
    %v1630 = vmul.f32 %v1610, %v1629
    %1632 = vrot.lane.b32.xlu0 %v1630, 96
    %v1633 = vpop.permute.xlu0 %1632
    %v1635 = vadd.f32 %v1618, %v1633
    %v1636 = vtanh.pop %v1635
    %v1637 = vsub.f32 1.0, %v1610
    %v1638 = vmul.f32 %v1637, %v1360
    %v1639 = vmul.f32 %v1610, %v1636
    %v1640 = vadd.f32 %v1638, %v1639
    %1642 = vrot.lane.b32.xlu0 %v1499, 32
    %v1643 = vpop.permute.xlu0 %1642
    %v1645 = vsel %vm71, %v1640, %v1643
    %v1647 = vsel %vm89, %v1645, 0
    %1649 = vmatprep.subr.mxu0 %v231
    %1650 = vmatpush1.msra.mxu0 %v230
    %1651 = vmatprep.subr.mxu0 %v233
    %1652 = vmatpush1.msra.mxu0 %v232
    %1653 = vmatprep.subr.mxu0 %v235
    %1654 = vmatpush1.msra.mxu0 %v234
    %1655 = vmatprep.subr.mxu0 %v237
    %1656 = vmatpush1.msra.mxu0 %v236
    %1657 = vmatprep.subr.mxu0 %v239
    %1658 = vmatpush1.msra.mxu0 %v238
    %1659 = vmatprep.subr.mxu0 %v241
    %1660 = vmatpush1.msra.mxu0 %v240
    %1661 = vmatprep.subr.mxu0 %v243
    %1662 = vmatpush1.msra.mxu0 %v242
    %1663 = vmatprep.subr.mxu0 %v245
    %1664 = vmatpush1.msra.mxu0 %v244
    %1665 = vmatprep.subr.mxu0 0.0
    %1666 = vmatpush1.msra.mxu0 0.0
    %1667 = vmatprep.subr.mxu0 0.0
    %1668 = vmatpush1.msra.mxu0 0.0
    %1669 = vmatprep.subr.mxu0 0.0
    %1670 = vmatpush1.msra.mxu0 0.0
    %1671 = vmatprep.subr.mxu0 0.0
    %1672 = vmatpush1.msra.mxu0 0.0
    %1673 = vmatprep.subr.mxu0 0.0
    %1674 = vmatpush1.msra.mxu0 0.0
    %1675 = vmatprep.subr.mxu0 0.0
    %1676 = vmatpush1.msra.mxu0 0.0
    %1677 = vmatprep.subr.mxu0 0.0
    %1678 = vmatpush1.msra.mxu0 0.0
    %1679 = vmatprep.subr.mxu0 0.0
    %1680 = vmatpush1.msra.mxu0 0.0
    %1681 = vmatprep.subr.mxu0 0.0
    %1682 = vmatpush1.msra.mxu0 0.0
    %1683 = vmatprep.subr.mxu0 0.0
    %1684 = vmatpush1.msra.mxu0 0.0
    %1685 = vmatprep.subr.mxu0 0.0
    %1686 = vmatpush1.msra.mxu0 0.0
    %1687 = vmatprep.subr.mxu0 0.0
    %1688 = vmatpush1.msra.mxu0 0.0
    %1689 = vmatprep.subr.mxu0 0.0
    %1690 = vmatpush1.msra.mxu0 0.0
    %1691 = vmatprep.subr.mxu0 0.0
    %1692 = vmatpush1.msra.mxu0 0.0
    %1693 = vmatprep.subr.mxu0 0.0
    %1694 = vmatpush1.msra.mxu0 0.0
    %1695 = vmatprep.subr.mxu0 0.0
    %1696 = vmatpush1.msra.mxu0 0.0
    %1697 = vmatprep.subr.mxu0 0.0
    %1698 = vmatpush1.msra.mxu0 0.0
    %1699 = vmatprep.subr.mxu0 0.0
    %1700 = vmatpush1.msra.mxu0 0.0
    %1701 = vmatprep.subr.mxu0 0.0
    %1702 = vmatpush1.msra.mxu0 0.0
    %1703 = vmatprep.subr.mxu0 0.0
    %1704 = vmatpush1.msra.mxu0 0.0
    %1705 = vmatprep.subr.mxu0 0.0
    %1706 = vmatpush1.msra.mxu0 0.0
    %1707 = vmatprep.subr.mxu0 0.0
    %1708 = vmatpush1.msra.mxu0 0.0
    %1709 = vmatprep.subr.mxu0 0.0
    %1710 = vmatpush1.msra.mxu0 0.0
    %1711 = vmatprep.subr.mxu0 0.0
    %1712 = vmatpush1.msra.mxu0 0.0
    %1713 = vmatprep.mubr.f32.mxu0 0.0
    %1714 = vmatmul.mubr.f32.gmra.mrb[0].mxu0 %v1647
    %v1715 = vpop.f32.mrb[0].mxu0
    %v1716 = vadd.f32 %v59, %v1715
    %v1717 = vpop.f32.mrb[0].mxu0
    %v1718 = vadd.f32 %v63, %v1717
    %1719 = vdwg.mxu0
    %v1720 = vmul.f32 %v1716, %v1716
    %v1721 = vsel %vm165, %v1720, 0.0
    %1722 = vadd.xlane.f32.xlu0 %v1721
    %v1723 = vpop.xlane.xlu0 %1722
    %v1724 = vmul.f32 %v1723, %v169
    %v1725 = vadd.f32 %v1724, 1e-05
    %v1726 = vrsqrt.pop %v1725
    %v1727 = vmul.f32 %v1716, %v1726
    %1729 = vrot.lane.b32.xlu0 %v1720, 64
    %v1730 = vpop.permute.xlu0 %1729
    %v1732 = vsel %vm165, %v1730, 0.0
    %1733 = vadd.xlane.f32.xlu0 %v1732
    %v1734 = vpop.xlane.xlu0 %1733
    %v1735 = vmul.f32 %v1734, %v169
    %v1736 = vadd.f32 %v1735, 1e-05
    %v1737 = vrsqrt.pop %v1736
    %v1738 = vmul.f32 %v1716, %v1737
    %1740 = vrot.lane.b32.xlu0 %v1738, 64
    %v1741 = vpop.permute.xlu0 %1740
    %v1743 = vadd.f32 %v1727, %v1741
    %v1744 = vxor.u32 %v1743, 2147483648
    %v1745 = vmul.f32 %v1744, 1.442695
    %v1746 = vpow.pop %v1745
    %v1747 = vadd.f32 %v1746, 1.0
    %v1748 = vrcp.pop %v1747
    %v1749 = vmul.f32 1.0, %v1748
    %v1750 = vmul.f32 %v1718, %v1718
    %v1751 = vsel %vm197, %v1750, 0.0
    %1752 = vadd.xlane.f32.xlu0 %v1751
    %v1753 = vpop.xlane.xlu0 %1752
    %v1754 = vmul.f32 %v1753, %v201
    %v1755 = vadd.f32 %v1754, 1e-05
    %v1756 = vrsqrt.pop %v1755
    %v1757 = vmul.f32 %v1718, %v1756
    %1759 = vrot.lane.b32.xlu0 %v1750, 96
    %v1760 = vpop.permute.xlu0 %1759
    %v1762 = vsel %vm197, %v1760, 0.0
    %1763 = vadd.xlane.f32.xlu0 %v1762
    %v1764 = vpop.xlane.xlu0 %1763
    %v1765 = vmul.f32 %v1764, %v201
    %v1766 = vadd.f32 %v1765, 1e-05
    %v1767 = vrsqrt.pop %v1766
    %v1768 = vmul.f32 %v1718, %v1767
    %v1769 = vmul.f32 %v1749, %v1768
    %1771 = vrot.lane.b32.xlu0 %v1769, 96
    %v1772 = vpop.permute.xlu0 %1771
    %v1774 = vadd.f32 %v1757, %v1772
    %v1775 = vtanh.pop %v1774
    %v1776 = vsub.f32 1.0, %v1749
    %v1777 = vmul.f32 %v1776, %v1499
    %v1778 = vmul.f32 %v1749, %v1775
    %v1779 = vadd.f32 %v1777, %v1778
    %s1780 = scalar_lea.vmem [#allocation3], 24
    %v1781 = vld [vmem:[%s1780] sm:$0xf]
    %1783 = vrot.lane.b32.xlu0 %v1640, 32
    %v1784 = vpop.permute.xlu0 %1783
    %v1786 = vsel %vm71, %v1781, %v1784
    %v1788 = vsel %vm89, %v1786, 0
    %1790 = vmatprep.subr.mxu0 %v74
    %1791 = vmatpush1.msra.mxu0 %v73
    %1792 = vmatprep.subr.mxu0 %v76
    %1793 = vmatpush1.msra.mxu0 %v75
    %1794 = vmatprep.subr.mxu0 %v78
    %1795 = vmatpush1.msra.mxu0 %v77
    %1796 = vmatprep.subr.mxu0 %v80
    %1797 = vmatpush1.msra.mxu0 %v79
    %1798 = vmatprep.subr.mxu0 %v82
    %1799 = vmatpush1.msra.mxu0 %v81
    %1800 = vmatprep.subr.mxu0 %v84
    %1801 = vmatpush1.msra.mxu0 %v83
    %1802 = vmatprep.subr.mxu0 %v86
    %1803 = vmatpush1.msra.mxu0 %v85
    %1804 = vmatprep.subr.mxu0 %v88
    %1805 = vmatpush1.msra.mxu0 %v87
    %1806 = vmatprep.subr.mxu0 0.0
    %1807 = vmatpush1.msra.mxu0 0.0
    %1808 = vmatprep.subr.mxu0 0.0
    %1809 = vmatpush1.msra.mxu0 0.0
    %1810 = vmatprep.subr.mxu0 0.0
    %1811 = vmatpush1.msra.mxu0 0.0
    %1812 = vmatprep.subr.mxu0 0.0
    %1813 = vmatpush1.msra.mxu0 0.0
    %1814 = vmatprep.subr.mxu0 0.0
    %1815 = vmatpush1.msra.mxu0 0.0
    %1816 = vmatprep.subr.mxu0 0.0
    %1817 = vmatpush1.msra.mxu0 0.0
    %1818 = vmatprep.subr.mxu0 0.0
    %1819 = vmatpush1.msra.mxu0 0.0
    %1820 = vmatprep.subr.mxu0 0.0
    %1821 = vmatpush1.msra.mxu0 0.0
    %1822 = vmatprep.subr.mxu0 0.0
    %1823 = vmatpush1.msra.mxu0 0.0
    %1824 = vmatprep.subr.mxu0 0.0
    %1825 = vmatpush1.msra.mxu0 0.0
    %1826 = vmatprep.subr.mxu0 0.0
    %1827 = vmatpush1.msra.mxu0 0.0
    %1828 = vmatprep.subr.mxu0 0.0
    %1829 = vmatpush1.msra.mxu0 0.0
    %1830 = vmatprep.subr.mxu0 0.0
    %1831 = vmatpush1.msra.mxu0 0.0
    %1832 = vmatprep.subr.mxu0 0.0
    %1833 = vmatpush1.msra.mxu0 0.0
    %1834 = vmatprep.subr.mxu0 0.0
    %1835 = vmatpush1.msra.mxu0 0.0
    %1836 = vmatprep.subr.mxu0 0.0
    %1837 = vmatpush1.msra.mxu0 0.0
    %1838 = vmatprep.subr.mxu0 0.0
    %1839 = vmatpush1.msra.mxu0 0.0
    %1840 = vmatprep.subr.mxu0 0.0
    %1841 = vmatpush1.msra.mxu0 0.0
    %1842 = vmatprep.subr.mxu0 0.0
    %1843 = vmatpush1.msra.mxu0 0.0
    %1844 = vmatprep.subr.mxu0 0.0
    %1845 = vmatpush1.msra.mxu0 0.0
    %1846 = vmatprep.subr.mxu0 0.0
    %1847 = vmatpush1.msra.mxu0 0.0
    %1848 = vmatprep.subr.mxu0 0.0
    %1849 = vmatpush1.msra.mxu0 0.0
    %1850 = vmatprep.subr.mxu0 0.0
    %1851 = vmatpush1.msra.mxu0 0.0
    %1852 = vmatprep.subr.mxu0 0.0
    %1853 = vmatpush1.msra.mxu0 0.0
    %1854 = vmatprep.mubr.f32.mxu0 0.0
    %1855 = vmatmul.mubr.f32.gmra.mrb[0].mxu0 %v1788
    %v1856 = vpop.f32.mrb[0].mxu0
    %v1857 = vadd.f32 %v46, %v1856
    %v1858 = vpop.f32.mrb[0].mxu0
    %v1859 = vadd.f32 %v50, %v1858
    %1860 = vdwg.mxu0
    %v1861 = vmul.f32 %v1857, %v1857
    %v1862 = vsel %vm165, %v1861, 0.0
    %1863 = vadd.xlane.f32.xlu0 %v1862
    %v1864 = vpop.xlane.xlu0 %1863
    %v1865 = vmul.f32 %v1864, %v169
    %v1866 = vadd.f32 %v1865, 1e-05
    %v1867 = vrsqrt.pop %v1866
    %v1868 = vmul.f32 %v1857, %v1867
    %1870 = vrot.lane.b32.xlu0 %v1861, 64
    %v1871 = vpop.permute.xlu0 %1870
    %v1873 = vsel %vm165, %v1871, 0.0
    %1874 = vadd.xlane.f32.xlu0 %v1873
    %v1875 = vpop.xlane.xlu0 %1874
    %v1876 = vmul.f32 %v1875, %v169
    %v1877 = vadd.f32 %v1876, 1e-05
    %v1878 = vrsqrt.pop %v1877
    %v1879 = vmul.f32 %v1857, %v1878
    %1881 = vrot.lane.b32.xlu0 %v1879, 64
    %v1882 = vpop.permute.xlu0 %1881
    %v1884 = vadd.f32 %v1868, %v1882
    %v1885 = vxor.u32 %v1884, 2147483648
    %v1886 = vmul.f32 %v1885, 1.442695
    %v1887 = vpow.pop %v1886
    %v1888 = vadd.f32 %v1887, 1.0
    %v1889 = vrcp.pop %v1888
    %v1890 = vmul.f32 1.0, %v1889
    %v1891 = vmul.f32 %v1859, %v1859
    %v1892 = vsel %vm197, %v1891, 0.0
    %1893 = vadd.xlane.f32.xlu0 %v1892
    %v1894 = vpop.xlane.xlu0 %1893
    %v1895 = vmul.f32 %v1894, %v201
    %v1896 = vadd.f32 %v1895, 1e-05
    %v1897 = vrsqrt.pop %v1896
    %v1898 = vmul.f32 %v1859, %v1897
    %1900 = vrot.lane.b32.xlu0 %v1891, 96
    %v1901 = vpop.permute.xlu0 %1900
    %v1903 = vsel %vm197, %v1901, 0.0
    %1904 = vadd.xlane.f32.xlu0 %v1903
    %v1905 = vpop.xlane.xlu0 %1904
    %v1906 = vmul.f32 %v1905, %v201
    %v1907 = vadd.f32 %v1906, 1e-05
    %v1908 = vrsqrt.pop %v1907
    %v1909 = vmul.f32 %v1859, %v1908
    %v1910 = vmul.f32 %v1890, %v1909
    %1912 = vrot.lane.b32.xlu0 %v1910, 96
    %v1913 = vpop.permute.xlu0 %1912
    %v1915 = vadd.f32 %v1898, %v1913
    %v1916 = vtanh.pop %v1915
    %v1917 = vsub.f32 1.0, %v1890
    %v1918 = vmul.f32 %v1917, %v1640
    %v1919 = vmul.f32 %v1890, %v1916
    %v1920 = vadd.f32 %v1918, %v1919
    %1922 = vrot.lane.b32.xlu0 %v1779, 32
    %v1923 = vpop.permute.xlu0 %1922
    %v1925 = vsel %vm71, %v1920, %v1923
    %v1927 = vsel %vm89, %v1925, 0
    %1929 = vmatprep.subr.mxu0 %v231
    %1930 = vmatpush1.msra.mxu0 %v230
    %1931 = vmatprep.subr.mxu0 %v233
    %1932 = vmatpush1.msra.mxu0 %v232
    %1933 = vmatprep.subr.mxu0 %v235
    %1934 = vmatpush1.msra.mxu0 %v234
    %1935 = vmatprep.subr.mxu0 %v237
    %1936 = vmatpush1.msra.mxu0 %v236
    %1937 = vmatprep.subr.mxu0 %v239
    %1938 = vmatpush1.msra.mxu0 %v238
    %1939 = vmatprep.subr.mxu0 %v241
    %1940 = vmatpush1.msra.mxu0 %v240
    %1941 = vmatprep.subr.mxu0 %v243
    %1942 = vmatpush1.msra.mxu0 %v242
    %1943 = vmatprep.subr.mxu0 %v245
    %1944 = vmatpush1.msra.mxu0 %v244
    %1945 = vmatprep.subr.mxu0 0.0
    %1946 = vmatpush1.msra.mxu0 0.0
    %1947 = vmatprep.subr.mxu0 0.0
    %1948 = vmatpush1.msra.mxu0 0.0
    %1949 = vmatprep.subr.mxu0 0.0
    %1950 = vmatpush1.msra.mxu0 0.0
    %1951 = vmatprep.subr.mxu0 0.0
    %1952 = vmatpush1.msra.mxu0 0.0
    %1953 = vmatprep.subr.mxu0 0.0
    %1954 = vmatpush1.msra.mxu0 0.0
    %1955 = vmatprep.subr.mxu0 0.0
    %1956 = vmatpush1.msra.mxu0 0.0
    %1957 = vmatprep.subr.mxu0 0.0
    %1958 = vmatpush1.msra.mxu0 0.0
    %1959 = vmatprep.subr.mxu0 0.0
    %1960 = vmatpush1.msra.mxu0 0.0
    %1961 = vmatprep.subr.mxu0 0.0
    %1962 = vmatpush1.msra.mxu0 0.0
    %1963 = vmatprep.subr.mxu0 0.0
    %1964 = vmatpush1.msra.mxu0 0.0
    %1965 = vmatprep.subr.mxu0 0.0
    %1966 = vmatpush1.msra.mxu0 0.0
    %1967 = vmatprep.subr.mxu0 0.0
    %1968 = vmatpush1.msra.mxu0 0.0
    %1969 = vmatprep.subr.mxu0 0.0
    %1970 = vmatpush1.msra.mxu0 0.0
    %1971 = vmatprep.subr.mxu0 0.0
    %1972 = vmatpush1.msra.mxu0 0.0
    %1973 = vmatprep.subr.mxu0 0.0
    %1974 = vmatpush1.msra.mxu0 0.0
    %1975 = vmatprep.subr.mxu0 0.0
    %1976 = vmatpush1.msra.mxu0 0.0
    %1977 = vmatprep.subr.mxu0 0.0
    %1978 = vmatpush1.msra.mxu0 0.0
    %1979 = vmatprep.subr.mxu0 0.0
    %1980 = vmatpush1.msra.mxu0 0.0
    %1981 = vmatprep.subr.mxu0 0.0
    %1982 = vmatpush1.msra.mxu0 0.0
    %1983 = vmatprep.subr.mxu0 0.0
    %1984 = vmatpush1.msra.mxu0 0.0
    %1985 = vmatprep.subr.mxu0 0.0
    %1986 = vmatpush1.msra.mxu0 0.0
    %1987 = vmatprep.subr.mxu0 0.0
    %1988 = vmatpush1.msra.mxu0 0.0
    %1989 = vmatprep.subr.mxu0 0.0
    %1990 = vmatpush1.msra.mxu0 0.0
    %1991 = vmatprep.subr.mxu0 0.0
    %1992 = vmatpush1.msra.mxu0 0.0
    %1993 = vmatprep.mubr.f32.mxu0 0.0
    %1994 = vmatmul.mubr.f32.gmra.mrb[0].mxu0 %v1927
    %v1995 = vpop.f32.mrb[0].mxu0
    %v1996 = vadd.f32 %v59, %v1995
    %v1997 = vpop.f32.mrb[0].mxu0
    %v1998 = vadd.f32 %v63, %v1997
    %1999 = vdwg.mxu0
    %v2000 = vmul.f32 %v1996, %v1996
    %v2001 = vsel %vm165, %v2000, 0.0
    %2002 = vadd.xlane.f32.xlu0 %v2001
    %v2003 = vpop.xlane.xlu0 %2002
    %v2004 = vmul.f32 %v2003, %v169
    %v2005 = vadd.f32 %v2004, 1e-05
    %v2006 = vrsqrt.pop %v2005
    %v2007 = vmul.f32 %v1996, %v2006
    %2009 = vrot.lane.b32.xlu0 %v2000, 64
    %v2010 = vpop.permute.xlu0 %2009
    %v2012 = vsel %vm165, %v2010, 0.0
    %2013 = vadd.xlane.f32.xlu0 %v2012
    %v2014 = vpop.xlane.xlu0 %2013
    %v2015 = vmul.f32 %v2014, %v169
    %v2016 = vadd.f32 %v2015, 1e-05
    %v2017 = vrsqrt.pop %v2016
    %v2018 = vmul.f32 %v1996, %v2017
    %2020 = vrot.lane.b32.xlu0 %v2018, 64
    %v2021 = vpop.permute.xlu0 %2020
    %v2023 = vadd.f32 %v2007, %v2021
    %v2024 = vxor.u32 %v2023, 2147483648
    %v2025 = vmul.f32 %v2024, 1.442695
    %v2026 = vpow.pop %v2025
    %v2027 = vadd.f32 %v2026, 1.0
    %v2028 = vrcp.pop %v2027
    %v2029 = vmul.f32 1.0, %v2028
    %v2030 = vmul.f32 %v1998, %v1998
    %v2031 = vsel %vm197, %v2030, 0.0
    %2032 = vadd.xlane.f32.xlu0 %v2031
    %v2033 = vpop.xlane.xlu0 %2032
    %v2034 = vmul.f32 %v2033, %v201
    %v2035 = vadd.f32 %v2034, 1e-05
    %v2036 = vrsqrt.pop %v2035
    %v2037 = vmul.f32 %v1998, %v2036
    %2039 = vrot.lane.b32.xlu0 %v2030, 96
    %v2040 = vpop.permute.xlu0 %2039
    %v2042 = vsel %vm197, %v2040, 0.0
    %2043 = vadd.xlane.f32.xlu0 %v2042
    %v2044 = vpop.xlane.xlu0 %2043
    %v2045 = vmul.f32 %v2044, %v201
    %v2046 = vadd.f32 %v2045, 1e-05
    %v2047 = vrsqrt.pop %v2046
    %v2048 = vmul.f32 %v1998, %v2047
    %v2049 = vmul.f32 %v2029, %v2048
    %2051 = vrot.lane.b32.xlu0 %v2049, 96
    %v2052 = vpop.permute.xlu0 %2051
    %v2054 = vadd.f32 %v2037, %v2052
    %v2055 = vtanh.pop %v2054
    %v2056 = vsub.f32 1.0, %v2029
    %v2057 = vmul.f32 %v2056, %v1779
    %v2058 = vmul.f32 %v2029, %v2055
    %v2059 = vadd.f32 %v2057, %v2058
    %s2060 = scalar_lea.vmem [#allocation3], 28
    %v2061 = vld [vmem:[%s2060] sm:$0xf]
    %2063 = vrot.lane.b32.xlu0 %v1920, 32
    %v2064 = vpop.permute.xlu0 %2063
    %v2066 = vsel %vm71, %v2061, %v2064
    %v2068 = vsel %vm89, %v2066, 0
    %2070 = vmatprep.subr.mxu0 %v74
    %2071 = vmatpush1.msra.mxu0 %v73
    %2072 = vmatprep.subr.mxu0 %v76
    %2073 = vmatpush1.msra.mxu0 %v75
    %2074 = vmatprep.subr.mxu0 %v78
    %2075 = vmatpush1.msra.mxu0 %v77
    %2076 = vmatprep.subr.mxu0 %v80
    %2077 = vmatpush1.msra.mxu0 %v79
    %2078 = vmatprep.subr.mxu0 %v82
    %2079 = vmatpush1.msra.mxu0 %v81
    %2080 = vmatprep.subr.mxu0 %v84
    %2081 = vmatpush1.msra.mxu0 %v83
    %2082 = vmatprep.subr.mxu0 %v86
    %2083 = vmatpush1.msra.mxu0 %v85
    %2084 = vmatprep.subr.mxu0 %v88
    %2085 = vmatpush1.msra.mxu0 %v87
    %2086 = vmatprep.subr.mxu0 0.0
    %2087 = vmatpush1.msra.mxu0 0.0
    %2088 = vmatprep.subr.mxu0 0.0
    %2089 = vmatpush1.msra.mxu0 0.0
    %2090 = vmatprep.subr.mxu0 0.0
    %2091 = vmatpush1.msra.mxu0 0.0
    %2092 = vmatprep.subr.mxu0 0.0
    %2093 = vmatpush1.msra.mxu0 0.0
    %2094 = vmatprep.subr.mxu0 0.0
    %2095 = vmatpush1.msra.mxu0 0.0
    %2096 = vmatprep.subr.mxu0 0.0
    %2097 = vmatpush1.msra.mxu0 0.0
    %2098 = vmatprep.subr.mxu0 0.0
    %2099 = vmatpush1.msra.mxu0 0.0
    %2100 = vmatprep.subr.mxu0 0.0
    %2101 = vmatpush1.msra.mxu0 0.0
    %2102 = vmatprep.subr.mxu0 0.0
    %2103 = vmatpush1.msra.mxu0 0.0
    %2104 = vmatprep.subr.mxu0 0.0
    %2105 = vmatpush1.msra.mxu0 0.0
    %2106 = vmatprep.subr.mxu0 0.0
    %2107 = vmatpush1.msra.mxu0 0.0
    %2108 = vmatprep.subr.mxu0 0.0
    %2109 = vmatpush1.msra.mxu0 0.0
    %2110 = vmatprep.subr.mxu0 0.0
    %2111 = vmatpush1.msra.mxu0 0.0
    %2112 = vmatprep.subr.mxu0 0.0
    %2113 = vmatpush1.msra.mxu0 0.0
    %2114 = vmatprep.subr.mxu0 0.0
    %2115 = vmatpush1.msra.mxu0 0.0
    %2116 = vmatprep.subr.mxu0 0.0
    %2117 = vmatpush1.msra.mxu0 0.0
    %2118 = vmatprep.subr.mxu0 0.0
    %2119 = vmatpush1.msra.mxu0 0.0
    %2120 = vmatprep.subr.mxu0 0.0
    %2121 = vmatpush1.msra.mxu0 0.0
    %2122 = vmatprep.subr.mxu0 0.0
    %2123 = vmatpush1.msra.mxu0 0.0
    %2124 = vmatprep.subr.mxu0 0.0
    %2125 = vmatpush1.msra.mxu0 0.0
    %2126 = vmatprep.subr.mxu0 0.0
    %2127 = vmatpush1.msra.mxu0 0.0
    %2128 = vmatprep.subr.mxu0 0.0
    %2129 = vmatpush1.msra.mxu0 0.0
    %2130 = vmatprep.subr.mxu0 0.0
    %2131 = vmatpush1.msra.mxu0 0.0
    %2132 = vmatprep.subr.mxu0 0.0
    %2133 = vmatpush1.msra.mxu0 0.0
    %2134 = vmatprep.mubr.f32.mxu0 0.0
    %2135 = vmatmul.mubr.f32.gmra.mrb[0].mxu0 %v2068
    %v2136 = vpop.f32.mrb[0].mxu0
    %v2137 = vadd.f32 %v46, %v2136
    %v2138 = vpop.f32.mrb[0].mxu0
    %v2139 = vadd.f32 %v50, %v2138
    %2140 = vdwg.mxu0
    %v2141 = vmul.f32 %v2137, %v2137
    %v2142 = vsel %vm165, %v2141, 0.0
    %2143 = vadd.xlane.f32.xlu0 %v2142
    %v2144 = vpop.xlane.xlu0 %2143
    %v2145 = vmul.f32 %v2144, %v169
    %v2146 = vadd.f32 %v2145, 1e-05
    %v2147 = vrsqrt.pop %v2146
    %v2148 = vmul.f32 %v2137, %v2147
    %2150 = vrot.lane.b32.xlu0 %v2141, 64
    %v2151 = vpop.permute.xlu0 %2150
    %v2153 = vsel %vm165, %v2151, 0.0
    %2154 = vadd.xlane.f32.xlu0 %v2153
    %v2155 = vpop.xlane.xlu0 %2154
    %v2156 = vmul.f32 %v2155, %v169
    %v2157 = vadd.f32 %v2156, 1e-05
    %v2158 = vrsqrt.pop %v2157
    %v2159 = vmul.f32 %v2137, %v2158
    %2161 = vrot.lane.b32.xlu0 %v2159, 64
    %v2162 = vpop.permute.xlu0 %2161
    %v2164 = vadd.f32 %v2148, %v2162
    %v2165 = vxor.u32 %v2164, 2147483648
    %v2166 = vmul.f32 %v2165, 1.442695
    %v2167 = vpow.pop %v2166
    %v2168 = vadd.f32 %v2167, 1.0
    %v2169 = vrcp.pop %v2168
    %v2170 = vmul.f32 1.0, %v2169
    %v2171 = vmul.f32 %v2139, %v2139
    %v2172 = vsel %vm197, %v2171, 0.0
    %2173 = vadd.xlane.f32.xlu0 %v2172
    %v2174 = vpop.xlane.xlu0 %2173
    %v2175 = vmul.f32 %v2174, %v201
    %v2176 = vadd.f32 %v2175, 1e-05
    %v2177 = vrsqrt.pop %v2176
    %v2178 = vmul.f32 %v2139, %v2177
    %2180 = vrot.lane.b32.xlu0 %v2171, 96
    %v2181 = vpop.permute.xlu0 %2180
    %v2183 = vsel %vm197, %v2181, 0.0
    %2184 = vadd.xlane.f32.xlu0 %v2183
    %v2185 = vpop.xlane.xlu0 %2184
    %v2186 = vmul.f32 %v2185, %v201
    %v2187 = vadd.f32 %v2186, 1e-05
    %v2188 = vrsqrt.pop %v2187
    %v2189 = vmul.f32 %v2139, %v2188
    %v2190 = vmul.f32 %v2170, %v2189
    %2192 = vrot.lane.b32.xlu0 %v2190, 96
    %v2193 = vpop.permute.xlu0 %2192
    %v2195 = vadd.f32 %v2178, %v2193
    %v2196 = vtanh.pop %v2195
    %v2197 = vsub.f32 1.0, %v2170
    %v2198 = vmul.f32 %v2197, %v1920
    %v2199 = vmul.f32 %v2170, %v2196
    %v2200 = vadd.f32 %v2198, %v2199
    %2202 = vrot.lane.b32.xlu0 %v2059, 32
    %v2203 = vpop.permute.xlu0 %2202
    %v2205 = vsel %vm71, %v2200, %v2203
    %v2207 = vsel %vm89, %v2205, 0
    %2209 = vmatprep.subr.mxu0 %v231
    %2210 = vmatpush1.msra.mxu0 %v230
    %2211 = vmatprep.subr.mxu0 %v233
    %2212 = vmatpush1.msra.mxu0 %v232
    %2213 = vmatprep.subr.mxu0 %v235
    %2214 = vmatpush1.msra.mxu0 %v234
    %2215 = vmatprep.subr.mxu0 %v237
    %2216 = vmatpush1.msra.mxu0 %v236
    %2217 = vmatprep.subr.mxu0 %v239
    %2218 = vmatpush1.msra.mxu0 %v238
    %2219 = vmatprep.subr.mxu0 %v241
    %2220 = vmatpush1.msra.mxu0 %v240
    %2221 = vmatprep.subr.mxu0 %v243
    %2222 = vmatpush1.msra.mxu0 %v242
    %2223 = vmatprep.subr.mxu0 %v245
    %2224 = vmatpush1.msra.mxu0 %v244
    %2225 = vmatprep.subr.mxu0 0.0
    %2226 = vmatpush1.msra.mxu0 0.0
    %2227 = vmatprep.subr.mxu0 0.0
    %2228 = vmatpush1.msra.mxu0 0.0
    %2229 = vmatprep.subr.mxu0 0.0
    %2230 = vmatpush1.msra.mxu0 0.0
    %2231 = vmatprep.subr.mxu0 0.0
    %2232 = vmatpush1.msra.mxu0 0.0
    %2233 = vmatprep.subr.mxu0 0.0
    %2234 = vmatpush1.msra.mxu0 0.0
    %2235 = vmatprep.subr.mxu0 0.0
    %2236 = vmatpush1.msra.mxu0 0.0
    %2237 = vmatprep.subr.mxu0 0.0
    %2238 = vmatpush1.msra.mxu0 0.0
    %2239 = vmatprep.subr.mxu0 0.0
    %2240 = vmatpush1.msra.mxu0 0.0
    %2241 = vmatprep.subr.mxu0 0.0
    %2242 = vmatpush1.msra.mxu0 0.0
    %2243 = vmatprep.subr.mxu0 0.0
    %2244 = vmatpush1.msra.mxu0 0.0
    %2245 = vmatprep.subr.mxu0 0.0
    %2246 = vmatpush1.msra.mxu0 0.0
    %2247 = vmatprep.subr.mxu0 0.0
    %2248 = vmatpush1.msra.mxu0 0.0
    %2249 = vmatprep.subr.mxu0 0.0
    %2250 = vmatpush1.msra.mxu0 0.0
    %2251 = vmatprep.subr.mxu0 0.0
    %2252 = vmatpush1.msra.mxu0 0.0
    %2253 = vmatprep.subr.mxu0 0.0
    %2254 = vmatpush1.msra.mxu0 0.0
    %2255 = vmatprep.subr.mxu0 0.0
    %2256 = vmatpush1.msra.mxu0 0.0
    %2257 = vmatprep.subr.mxu0 0.0
    %2258 = vmatpush1.msra.mxu0 0.0
    %2259 = vmatprep.subr.mxu0 0.0
    %2260 = vmatpush1.msra.mxu0 0.0
    %2261 = vmatprep.subr.mxu0 0.0
    %2262 = vmatpush1.msra.mxu0 0.0
    %2263 = vmatprep.subr.mxu0 0.0
    %2264 = vmatpush1.msra.mxu0 0.0
    %2265 = vmatprep.subr.mxu0 0.0
    %2266 = vmatpush1.msra.mxu0 0.0
    %2267 = vmatprep.subr.mxu0 0.0
    %2268 = vmatpush1.msra.mxu0 0.0
    %2269 = vmatprep.subr.mxu0 0.0
    %2270 = vmatpush1.msra.mxu0 0.0
    %2271 = vmatprep.subr.mxu0 0.0
    %2272 = vmatpush1.msra.mxu0 0.0
    %2273 = vmatprep.mubr.f32.mxu0 0.0
    %2274 = vmatmul.mubr.f32.gmra.mrb[0].mxu0 %v2207
    %v2275 = vpop.f32.mrb[0].mxu0
    %v2276 = vadd.f32 %v59, %v2275
    %v2277 = vpop.f32.mrb[0].mxu0
    %v2278 = vadd.f32 %v63, %v2277
    %2279 = vdwg.mxu0
    %v2280 = vmul.f32 %v2276, %v2276
    %v2281 = vsel %vm165, %v2280, 0.0
    %2282 = vadd.xlane.f32.xlu0 %v2281
    %v2283 = vpop.xlane.xlu0 %2282
    %v2284 = vmul.f32 %v2283, %v169
    %v2285 = vadd.f32 %v2284, 1e-05
    %v2286 = vrsqrt.pop %v2285
    %v2287 = vmul.f32 %v2276, %v2286
    %2289 = vrot.lane.b32.xlu0 %v2280, 64
    %v2290 = vpop.permute.xlu0 %2289
    %v2292 = vsel %vm165, %v2290, 0.0
    %2293 = vadd.xlane.f32.xlu0 %v2292
    %v2294 = vpop.xlane.xlu0 %2293
    %v2295 = vmul.f32 %v2294, %v169
    %v2296 = vadd.f32 %v2295, 1e-05
    %v2297 = vrsqrt.pop %v2296
    %v2298 = vmul.f32 %v2276, %v2297
    %2300 = vrot.lane.b32.xlu0 %v2298, 64
    %v2301 = vpop.permute.xlu0 %2300
    %v2303 = vadd.f32 %v2287, %v2301
    %v2304 = vxor.u32 %v2303, 2147483648
    %v2305 = vmul.f32 %v2304, 1.442695
    %v2306 = vpow.pop %v2305
    %v2307 = vadd.f32 %v2306, 1.0
    %v2308 = vrcp.pop %v2307
    %v2309 = vmul.f32 1.0, %v2308
    %v2310 = vmul.f32 %v2278, %v2278
    %v2311 = vsel %vm197, %v2310, 0.0
    %2312 = vadd.xlane.f32.xlu0 %v2311
    %v2313 = vpop.xlane.xlu0 %2312
    %v2314 = vmul.f32 %v2313, %v201
    %v2315 = vadd.f32 %v2314, 1e-05
    %v2316 = vrsqrt.pop %v2315
    %v2317 = vmul.f32 %v2278, %v2316
    %2319 = vrot.lane.b32.xlu0 %v2310, 96
    %v2320 = vpop.permute.xlu0 %2319
    %v2322 = vsel %vm197, %v2320, 0.0
    %2323 = vadd.xlane.f32.xlu0 %v2322
    %v2324 = vpop.xlane.xlu0 %2323
    %v2325 = vmul.f32 %v2324, %v201
    %v2326 = vadd.f32 %v2325, 1e-05
    %v2327 = vrsqrt.pop %v2326
    %v2328 = vmul.f32 %v2278, %v2327
    %v2329 = vmul.f32 %v2309, %v2328
    %2331 = vrot.lane.b32.xlu0 %v2329, 96
    %v2332 = vpop.permute.xlu0 %2331
    %v2334 = vadd.f32 %v2317, %v2332
    %v2335 = vtanh.pop %v2334
    %v2336 = vsub.f32 1.0, %v2309
    %v2337 = vmul.f32 %v2336, %v2059
    %v2338 = vmul.f32 %v2309, %v2335
    %v2339 = vadd.f32 %v2337, %v2338
    %2340 = vrot.lane.b32.xlu0 %v939, 64
    %v2341 = vpop.permute.xlu0 %2340
    %2343 = vrot.lane.b32.xlu0 %v1219, 96
    %v2344 = vpop.permute.xlu0 %2343
    %2346 = vrot.lane.b32.xlu0 %v2059, 64
    %v2347 = vpop.permute.xlu0 %2346
    %2350 = vrot.lane.b32.xlu0 %v2339, 96
    %v2351 = vpop.permute.xlu0 %2350
    %v2353 = vsel %vm71, %v379, %v803
    %v2354 = vsel %vm89, %v2353, %v2341
    %vm2355 = vcmask 785408
    %v2356 = vsel %vm2355, %v2354, %v2344
    %v2357 = vsel %vm71, %v1499, %v1923
    %v2358 = vsel %vm89, %v2357, %v2347
    %v2359 = vsel %vm2355, %v2358, %v2351
    %v2360 = vld [vmem:[%s4] sm:$0xff]
    %v2361 = vld [vmem:[%s4 + $0x8] sm:$0xff]
    %v2362 = vld [vmem:[%s4 + $0x10] sm:$0xff]
    %v2363 = vld [vmem:[%s4 + $0x18] sm:$0xff]
    %v2364 = vld [vmem:[%s4 + $0x20] sm:$0xff]
    %v2365 = vld [vmem:[%s4 + $0x28] sm:$0xff]
    %v2366 = vld [vmem:[%s4 + $0x30] sm:$0xff]
    %v2367 = vld [vmem:[%s4 + $0x38] sm:$0xff]
    %v2368 = vld [vmem:[%s4 + $0x40] sm:$0xff]
    %v2369 = vld [vmem:[%s4 + $0x48] sm:$0xff]
    %v2370 = vld [vmem:[%s4 + $0x50] sm:$0xff]
    %v2371 = vld [vmem:[%s4 + $0x58] sm:$0xff]
    %v2372 = vld [vmem:[%s4 + $0x60] sm:$0xff]
    %v2373 = vld [vmem:[%s4 + $0x68] sm:$0xff]
    %v2374 = vld [vmem:[%s4 + $0x70] sm:$0xff]
    %v2375 = vld [vmem:[%s4 + $0x78] sm:$0xff]
    %v2376 = vld [vmem:[%s4 + $0x80] sm:$0xff]
    %v2377 = vld [vmem:[%s4 + $0x88] sm:$0xff]
    %v2378 = vld [vmem:[%s4 + $0x90] sm:$0xff]
    %v2379 = vld [vmem:[%s4 + $0x98] sm:$0xff]
    %v2380 = vld [vmem:[%s4 + $0xa0] sm:$0xff]
    %v2381 = vld [vmem:[%s4 + $0xa8] sm:$0xff]
    %v2382 = vld [vmem:[%s4 + $0xb0] sm:$0xff]
    %v2383 = vld [vmem:[%s4 + $0xb8] sm:$0xff]
    %v2384 = vld [vmem:[%s4 + $0xc0] sm:$0xff]
    %v2385 = vld [vmem:[%s4 + $0xc8] sm:$0xff]
    %v2386 = vld [vmem:[%s4 + $0xd0] sm:$0xff]
    %v2387 = vld [vmem:[%s4 + $0xd8] sm:$0xff]
    %v2388 = vld [vmem:[%s4 + $0xe0] sm:$0xff]
    %v2389 = vld [vmem:[%s4 + $0xe8] sm:$0xff]
    %v2390 = vld [vmem:[%s4 + $0xf0] sm:$0xff]
    %v2391 = vld [vmem:[%s4 + $0xf8] sm:$0xff]
    %v2392 = vld [vmem:[#allocation2] sm:$0x1]
    %v2394 = vlaneseq
    %v2395 = vshrl.u32 %v2394, 7
    %v2396 = vsub.s32 0, %v2395
    %v2397 = vrot.slane %v2392, %v2396
    %2398 = vset.pattern.permute.xlu0 0
    %2399 = vperm.xlu0 %2398, %v2397
    %v2400 = vpop.permute.xlu0 %2399
    %2402 = vmatprep.subr.mxu0 0.0
    %2403 = vmatpush1.msra.mxu0 %v2360
    %2404 = vmatprep.subr.mxu0 0.0
    %2405 = vmatpush1.msra.mxu0 %v2361
    %2406 = vmatprep.subr.mxu0 0.0
    %2407 = vmatpush1.msra.mxu0 %v2362
    %2408 = vmatprep.subr.mxu0 0.0
    %2409 = vmatpush1.msra.mxu0 %v2363
    %2410 = vmatprep.subr.mxu0 0.0
    %2411 = vmatpush1.msra.mxu0 %v2364
    %2412 = vmatprep.subr.mxu0 0.0
    %2413 = vmatpush1.msra.mxu0 %v2365
    %2414 = vmatprep.subr.mxu0 0.0
    %2415 = vmatpush1.msra.mxu0 %v2366
    %2416 = vmatprep.subr.mxu0 0.0
    %2417 = vmatpush1.msra.mxu0 %v2367
    %2418 = vmatprep.subr.mxu0 0.0
    %2419 = vmatpush1.msra.mxu0 %v2368
    %2420 = vmatprep.subr.mxu0 0.0
    %2421 = vmatpush1.msra.mxu0 %v2369
    %2422 = vmatprep.subr.mxu0 0.0
    %2423 = vmatpush1.msra.mxu0 %v2370
    %2424 = vmatprep.subr.mxu0 0.0
    %2425 = vmatpush1.msra.mxu0 %v2371
    %2426 = vmatprep.subr.mxu0 0.0
    %2427 = vmatpush1.msra.mxu0 %v2372
    %2428 = vmatprep.subr.mxu0 0.0
    %2429 = vmatpush1.msra.mxu0 %v2373
    %2430 = vmatprep.subr.mxu0 0.0
    %2431 = vmatpush1.msra.mxu0 %v2374
    %2432 = vmatprep.subr.mxu0 0.0
    %2433 = vmatpush1.msra.mxu0 %v2375
    %2434 = vmatprep.subr.mxu0 0.0
    %2435 = vmatpush1.msra.mxu0 %v2376
    %2436 = vmatprep.subr.mxu0 0.0
    %2437 = vmatpush1.msra.mxu0 %v2377
    %2438 = vmatprep.subr.mxu0 0.0
    %2439 = vmatpush1.msra.mxu0 %v2378
    %2440 = vmatprep.subr.mxu0 0.0
    %2441 = vmatpush1.msra.mxu0 %v2379
    %2442 = vmatprep.subr.mxu0 0.0
    %2443 = vmatpush1.msra.mxu0 %v2380
    %2444 = vmatprep.subr.mxu0 0.0
    %2445 = vmatpush1.msra.mxu0 %v2381
    %2446 = vmatprep.subr.mxu0 0.0
    %2447 = vmatpush1.msra.mxu0 %v2382
    %2448 = vmatprep.subr.mxu0 0.0
    %2449 = vmatpush1.msra.mxu0 %v2383
    %2450 = vmatprep.subr.mxu0 0.0
    %2451 = vmatpush1.msra.mxu0 %v2384
    %2452 = vmatprep.subr.mxu0 0.0
    %2453 = vmatpush1.msra.mxu0 %v2385
    %2454 = vmatprep.subr.mxu0 0.0
    %2455 = vmatpush1.msra.mxu0 %v2386
    %2456 = vmatprep.subr.mxu0 0.0
    %2457 = vmatpush1.msra.mxu0 %v2387
    %2458 = vmatprep.subr.mxu0 0.0
    %2459 = vmatpush1.msra.mxu0 %v2388
    %2460 = vmatprep.subr.mxu0 0.0
    %2461 = vmatpush1.msra.mxu0 %v2389
    %2462 = vmatprep.subr.mxu0 0.0
    %2463 = vmatpush1.msra.mxu0 %v2390
    %2464 = vmatprep.subr.mxu0 0.0
    %2465 = vmatpush1.msra.mxu0 %v2391
    %2466 = vmatprep.mubr.f32.mxu0 %v2359
    %2467 = vmatmul.mubr.f32.gmra.mrb[0].mxu0 %v2356
    %v2468 = vpop.f32.mrb[0].mxu0
    %v2469 = vadd.f32 %v2400, %v2468
    %v2470 = vpop.f32.mrb[0].mxu0
    %2471 = vdwg.mxu0
    %vm2472 = vcmask 60416
    %2473 = vst.msk [vmem:[#allocation6] sm:$0xf] %vm2472, %v2469
    // Predicated region
    $region30: #{tpu_custom_call.1} parent=1 // pred_check
      _
    $region31: #{tpu_custom_call.1} parent=1 // pred_check_branch
      %2475 = sbr.rel (0) target = $region33
    $region32: #{tpu_custom_call.1} parent=1 // pred_region
      %s2477 = ssub.s32 64, 64
      %2478 = vsyncadd [#allocation5], %s2477
      %s2480 = sshll.u32 [#allocation6], 4
      %s2481 = int_to_ptr.vmem [resolvable:$true] %s2480
      %2483 = dma.vmem_to_hbm [thread:$0]  %s2481, 64, %s6, [#allocation5]
    $region33: #{tpu_custom_call.1} parent=1 // pred_fallthru
      _
    // Predicated region
    $region34: #{tpu_custom_call.1} parent=1 // pred_check
      _
    $region35: #{tpu_custom_call.1} parent=1 // pred_check_branch
      %2485 = sbr.rel (0) target = $region37
    $region36: #{tpu_custom_call.1} parent=1 // pred_region
      %2486 = dma.done [#allocation5], 64
    $region37: #{tpu_custom_call.1} parent=1 // pred_fallthru
      _
    %2487 = vsyncpa [#allocation4], 1
    %2488 = vsyncpa [#allocation5], 1

</llo_original>
